<compile_context>
chip_gen: v5e
topology: v5e:2x2
jax: 0.10.0
libtpu: 0.0.40
codegen_flags: <defaults>
</compile_context>

<pallas_src>
import numpy as np
import jax
import jax.numpy as jnp
from jax import lax
from jax.experimental import pallas as pl
from jax.experimental.pallas import tpu as pltpu

KSIZE = 5
_LAYER_SPECS = [(3, 9), (9, 18), (18, 21)]   # (Cin, Cout) of conv1/2/3
_CIN_EFF = [1, 16, 24]    # kernel-side input channels (layer1 folded, 8-aligned)
_COUT_PAD = [16, 24, 21]  # kernel-side output channels (zero-padded rows)


def _tap_masks(H, W):
    """(25, H*W) f32 validity masks for 'same' zero padding.

    Tap t = kh*5 + kw is 1 at output pixel (h, w) iff the shifted source
    pixel (h+kh-2, w+kw-2) lies inside the image.
    """
    hh = np.arange(H)[:, None]
    ww = np.arange(W)[None, :]
    rows = []
    for kh in range(KSIZE):
        for kw in range(KSIZE):
            dy, dx = kh - KSIZE // 2, kw - KSIZE // 2
            valid = ((hh + dy >= 0) & (hh + dy < H) &
                     (ww + dx >= 0) & (ww + dx < W))
            rows.append(valid.reshape(-1))
    return jnp.asarray(np.stack(rows).astype(np.float32))


def _build_kernel(H, W, nb, cin_pad2, cin_pad3):
    HW = H * W
    taps = [(kh - KSIZE // 2, kw - KSIZE // 2)
            for kh in range(KSIZE) for kw in range(KSIZE)]

    def kernel(x_ref, mask_ref, w1_ref, b1_ref, w2_ref, b2_ref,
               w3_ref, b3_ref, o_ref, col_ref):
        # x_ref:   (nb, 1, HW)        nb single-channel images, H*W on lanes
        # mask_ref:(25, HW)           per-tap validity masks
        # wN_ref:  (CoutN_pad, KN)    BN-scale-folded, zero-padded im2col weights
        # bN_ref:  (CoutN_pad, 1)     folded bias (conv bias + BN shift), padded
        # o_ref:   (nb, 21, HW)       lane-dense output
        # col_ref: (25*cin_pad3, HW)  VMEM im2col scratch (reused by layers 2/3)

        def tap_row(x, t, dy, dx):
            # Row(s) of the im2col matrix for tap t: lane roll + zero-pad mask.
            delta = dy * W + dx
            if delta == 0:                       # center tap: always in-bounds
                return x
            shifted = pltpu.roll(x, (-delta) % HW, 1)
            return shifted * mask_ref[pl.ds(t, 1), :]

        def conv_from_scratch(x, cin_pad, w_ref, b_ref):
            # x: (cin_pad, HW); rows >= real Cin are exactly zero.
            for t, (dy, dx) in enumerate(taps):
                # t*cin_pad is a multiple of 8 -> aligned full-tile stores.
                col_ref[pl.ds(t * cin_pad, cin_pad), :] = tap_row(x, t, dy, dx)
            k = len(taps) * cin_pad
            acc = jnp.dot(w_ref[...], col_ref[pl.ds(0, k), :],
                          preferred_element_type=jnp.float32)
            return jnp.tanh(acc + b_ref[...])    # (Cout_pad, HW)

        def one_image(i, carry):
            x = x_ref[i]                                           # (1, HW)
            # Layer 1: channel-folded (K=25), col kept register-resident.
            col1 = jnp.concatenate(
                [tap_row(x, t, dy, dx) for t, (dy, dx) in enumerate(taps)],
                axis=0)                                            # (25, HW)
            h = jnp.tanh(jnp.dot(w1_ref[...], col1,
                                 preferred_element_type=jnp.float32)
                         + b1_ref[...])                            # (16, HW)
            h = conv_from_scratch(h, cin_pad2, w2_ref, b2_ref)     # (24, HW)
            o_ref[i] = conv_from_scratch(h, cin_pad3, w3_ref, b3_ref)  # (21, HW)
            return carry

        lax.fori_loop(0, nb, one_image, 0, unroll=True)

    return kernel


def res_block_forward(params, image_nchw, *, images_per_step=None):
    """image_nchw: (N, 1, H, W) float -> (N, 21, H, W) float32."""
    N, C, H, W = image_nchw.shape
    assert C == 1, "3 identity ResLayer branches feed a 3-in-channel conv"
    HW = H * W

    if images_per_step is None:
        # Keep >= 2 grid steps so v7x megacore uses both TCs, while
        # amortizing per-step overhead for larger batches.
        images_per_step = max(1, N // 2)
    nb = max(1, min(images_per_step, N))
    n_steps = pl.cdiv(N, nb)
    n_total = n_steps * nb

    x = image_nchw.reshape(N, 1, HW).astype(jnp.float32)
    if n_total != N:
        x = jnp.concatenate(
            [x, jnp.zeros((n_total - N, 1, HW), jnp.float32)], axis=0)

    masks = _tap_masks(H, W)
    cin_pad2, cin_pad3 = params[1]["cin_eff"], params[2]["cin_eff"]
    kernel = _build_kernel(H, W, nb, cin_pad2, cin_pad3)
    cout_last = params[-1]["cout_pad"]                       # 21
    k_max = KSIZE * KSIZE * max(cin_pad2, cin_pad3)          # 600

    flat = [params[0]["wmat"], params[0]["bias_col"],
            params[1]["wmat"], params[1]["bias_col"],
            params[2]["wmat"], params[2]["bias_col"]]
    full = lambda n: (0, 0)

    out = pl.pallas_call(
        kernel,
        out_shape=jax.ShapeDtypeStruct((n_total, cout_last, HW), jnp.float32),
        grid=(n_steps,),
        in_specs=[pl.BlockSpec((nb, 1, HW), lambda n: (n, 0, 0)),
                  pl.BlockSpec(masks.shape, full)]
                 + [pl.BlockSpec(a.shape, full) for a in flat],
        out_specs=pl.BlockSpec((nb, cout_last, HW), lambda n: (n, 0, 0)),
        scratch_shapes=[pltpu.VMEM((k_max, HW), jnp.float32)],
        compiler_params=pltpu.CompilerParams(
            dimension_semantics=("parallel",)),   # batch axis -> both TCs (v7x)
    )(x, masks, *flat)
    return out[:N].reshape(N, cout_last, H, W)


def init_params(key):
    """Deterministic parameters for conv1/2/3 + batchNorm1/2/3 (BN folded).

    Kernel-side layout: BN scale folded into the im2col weight matrix; the 3
    identical layer-1 input channels summed into one; input channels padded
    to 16/24 (zero weight columns) and output channels padded to 16/24 (zero
    weight rows + zero bias) so kernel stores are 8-sublane aligned.
    """
    eps = 1e-5
    params = []
    for i, (cin, cout) in enumerate(_LAYER_SPECS):
        kw_, kb_, kg_, kbt_ = jax.random.split(jax.random.fold_in(key, i), 4)
        bound = 1.0 / (cin * KSIZE * KSIZE) ** 0.5   # PyTorch Conv2d default
        w_oihw = jax.random.uniform(kw_, (cout, cin, KSIZE, KSIZE),
                                    jnp.float32, -bound, bound)
        conv_b = jax.random.uniform(kb_, (cout,), jnp.float32, -bound, bound)
        gamma = 1.0 + 0.1 * jax.random.normal(kg_, (cout,), jnp.float32)
        beta = 0.1 * jax.random.normal(kbt_, (cout,), jnp.float32)
        # BatchNorm2d eval, default running stats (mean=0, var=1); conv bias
        # folded in:  y = scale * conv(x) + bias_eff
        scale = gamma / jnp.sqrt(1.0 + eps)
        bias_eff = scale * conv_b + beta

        w_scaled = scale[:, None, None, None] * w_oihw      # (cout, cin, 5, 5)
        cin_eff = _CIN_EFF[i]
        if i == 0:
            # The 3 input channels are identical copies of the image -> sum.
            wmat = jnp.sum(w_scaled, axis=1).reshape(cout, KSIZE * KSIZE)
        else:
            w_tap = jnp.transpose(w_scaled, (0, 2, 3, 1)) \
                       .reshape(cout, KSIZE * KSIZE, cin)
            wmat = jnp.zeros((cout, KSIZE * KSIZE, cin_eff), jnp.float32)
            wmat = wmat.at[:, :, :cin].set(w_tap)
            wmat = wmat.reshape(cout, KSIZE * KSIZE * cin_eff)

        cout_pad = _COUT_PAD[i]
        if cout_pad != cout:
            wmat = jnp.concatenate(
                [wmat, jnp.zeros((cout_pad - cout, wmat.shape[1]), jnp.float32)],
                axis=0)
            bias_col = jnp.concatenate(
                [bias_eff, jnp.zeros((cout_pad - cout,), jnp.float32)]
            ).reshape(cout_pad, 1)
        else:
            bias_col = bias_eff.reshape(cout, 1)

        params.append({
            "cin": cin, "cout": cout, "cin_eff": cin_eff, "cout_pad": cout_pad,
            "wmat": wmat, "bias_col": bias_col,
            # reference-side (unfused) parameters
            "w_hwio": jnp.transpose(w_oihw, (2, 3, 1, 0)),
            "scale": scale, "bias": bias_eff,
        })
    return params


def ref_forward(params, image_nchw):
    """Pure-JAX reference (lax conv, unfused, unfolded) for correctness."""
    x = jnp.concatenate([image_nchw, image_nchw, image_nchw], axis=1)
    x = jnp.transpose(x, (0, 2, 3, 1))
    for lp in params:
        y = jax.lax.conv_general_dilated(
            x, lp["w_hwio"], window_strides=(1, 1), padding="SAME",
            dimension_numbers=("NHWC", "HWIO", "NHWC"))
        x = jnp.tanh(y * lp["scale"] + lp["bias"])
    return jnp.transpose(x, (0, 3, 1, 2))


if __name__ == "__main__":
    key = jax.random.PRNGKey(0)
    k_img, k_par = jax.random.split(key)
    params = init_params(k_par)
    image = jax.random.normal(k_img, (2, 1, 16, 16), dtype=jnp.float32)

    out = jax.block_until_ready(res_block_forward(params, image))
    assert out.shape == (2, 21, 16, 16), out.shape

    ref = ref_forward(params, image)
    max_err = float(jnp.max(jnp.abs(out - ref)))
    if max_err > 1e-4:
        raise SystemExit(f"mismatch vs reference, max abs err = {max_err:e}")
    print("KERNEL_OK")
</pallas_src>

<mosaic_0001>
module attributes {stable_mosaic.version = 11 : i64} {
  func.func @kernel(%arg0: i32, %arg1: memref<1x1x256xf32, #tpu.memory_space<vmem>>, %arg2: memref<25x256xf32, #tpu.memory_space<vmem>>, %arg3: memref<16x25xf32, #tpu.memory_space<vmem>>, %arg4: memref<16x1xf32, #tpu.memory_space<vmem>>, %arg5: memref<24x400xf32, #tpu.memory_space<vmem>>, %arg6: memref<24x1xf32, #tpu.memory_space<vmem>>, %arg7: memref<21x600xf32, #tpu.memory_space<vmem>>, %arg8: memref<21x1xf32, #tpu.memory_space<vmem>>, %arg9: memref<1x21x256xf32, #tpu.memory_space<vmem>>, %arg10: memref<600x256xf32, #tpu.memory_space<vmem>>) attributes {dimension_semantics = [#tpu.dimension_semantics<parallel>], iteration_bounds = array<i64: 2>, scalar_prefetch = 0 : i64, scratch_operands = 1 : i64, tpu.core_type = #tpu.core_type<tc>, window_params = [{transform_indices = @transform_0, window_bounds = array<i64: 1, 1, 256>}, {pipeline_mode = #tpu.pipeline_mode<synchronous>, transform_indices = @transform_1, window_bounds = array<i64: 25, 256>}, {pipeline_mode = #tpu.pipeline_mode<synchronous>, transform_indices = @transform_2, window_bounds = array<i64: 16, 25>}, {pipeline_mode = #tpu.pipeline_mode<synchronous>, transform_indices = @transform_3, window_bounds = array<i64: 16, 1>}, {pipeline_mode = #tpu.pipeline_mode<synchronous>, transform_indices = @transform_4, window_bounds = array<i64: 24, 400>}, {pipeline_mode = #tpu.pipeline_mode<synchronous>, transform_indices = @transform_5, window_bounds = array<i64: 24, 1>}, {pipeline_mode = #tpu.pipeline_mode<synchronous>, transform_indices = @transform_6, window_bounds = array<i64: 21, 600>}, {pipeline_mode = #tpu.pipeline_mode<synchronous>, transform_indices = @transform_7, window_bounds = array<i64: 21, 1>}, {transform_indices = @transform_8, window_bounds = array<i64: 1, 21, 256>}]} {
    %c0_i32 = arith.constant 0 : i32
    %0 = arith.index_cast %c0_i32 : i32 to index
    %c0 = arith.constant 0 : index
    %c0_0 = arith.constant 0 : index
    %1 = vector.load %arg1[%0, %c0, %c0_0] : memref<1x1x256xf32, #tpu.memory_space<vmem>>, vector<1x1x256xf32>
    %2 = vector.shape_cast %1 : vector<1x1x256xf32> to vector<1x256xf32>
    %c34_i32 = arith.constant 34 : i32
    %3 = tpu.dynamic_rotate %2 by %c34_i32 dim 1 : vector<1x256xf32>, i32 -> vector<1x256xf32>
    %c0_1 = arith.constant 0 : index
    %c0_2 = arith.constant 0 : index
    %4 = vector.load %arg2[%c0_1, %c0_2] : memref<25x256xf32, #tpu.memory_space<vmem>>, vector<1x256xf32>
    %5 = arith.mulf %3, %4 : vector<1x256xf32>
    %c33_i32 = arith.constant 33 : i32
    %6 = tpu.dynamic_rotate %2 by %c33_i32 dim 1 : vector<1x256xf32>, i32 -> vector<1x256xf32>
    %c1 = arith.constant 1 : index
    %c0_3 = arith.constant 0 : index
    %7 = vector.load %arg2[%c1, %c0_3] : memref<25x256xf32, #tpu.memory_space<vmem>>, vector<1x256xf32>
    %8 = arith.mulf %6, %7 : vector<1x256xf32>
    %c32_i32 = arith.constant 32 : i32
    %9 = tpu.dynamic_rotate %2 by %c32_i32 dim 1 : vector<1x256xf32>, i32 -> vector<1x256xf32>
    %c2 = arith.constant 2 : index
    %c0_4 = arith.constant 0 : index
    %10 = vector.load %arg2[%c2, %c0_4] : memref<25x256xf32, #tpu.memory_space<vmem>>, vector<1x256xf32>
    %11 = arith.mulf %9, %10 : vector<1x256xf32>
    %c31_i32 = arith.constant 31 : i32
    %12 = tpu.dynamic_rotate %2 by %c31_i32 dim 1 : vector<1x256xf32>, i32 -> vector<1x256xf32>
    %c3 = arith.constant 3 : index
    %c0_5 = arith.constant 0 : index
    %13 = vector.load %arg2[%c3, %c0_5] : memref<25x256xf32, #tpu.memory_space<vmem>>, vector<1x256xf32>
    %14 = arith.mulf %12, %13 : vector<1x256xf32>
    %c30_i32 = arith.constant 30 : i32
    %15 = tpu.dynamic_rotate %2 by %c30_i32 dim 1 : vector<1x256xf32>, i32 -> vector<1x256xf32>
    %c4 = arith.constant 4 : index
    %c0_6 = arith.constant 0 : index
    %16 = vector.load %arg2[%c4, %c0_6] : memref<25x256xf32, #tpu.memory_space<vmem>>, vector<1x256xf32>
    %17 = arith.mulf %15, %16 : vector<1x256xf32>
    %c18_i32 = arith.constant 18 : i32
    %18 = tpu.dynamic_rotate %2 by %c18_i32 dim 1 : vector<1x256xf32>, i32 -> vector<1x256xf32>
    %c5 = arith.constant 5 : index
    %c0_7 = arith.constant 0 : index
    %19 = vector.load %arg2[%c5, %c0_7] : memref<25x256xf32, #tpu.memory_space<vmem>>, vector<1x256xf32>
    %20 = arith.mulf %18, %19 : vector<1x256xf32>
    %c17_i32 = arith.constant 17 : i32
    %21 = tpu.dynamic_rotate %2 by %c17_i32 dim 1 : vector<1x256xf32>, i32 -> vector<1x256xf32>
    %c6 = arith.constant 6 : index
    %c0_8 = arith.constant 0 : index
    %22 = vector.load %arg2[%c6, %c0_8] : memref<25x256xf32, #tpu.memory_space<vmem>>, vector<1x256xf32>
    %23 = arith.mulf %21, %22 : vector<1x256xf32>
    %c16_i32 = arith.constant 16 : i32
    %24 = tpu.dynamic_rotate %2 by %c16_i32 dim 1 : vector<1x256xf32>, i32 -> vector<1x256xf32>
    %c7 = arith.constant 7 : index
    %c0_9 = arith.constant 0 : index
    %25 = vector.load %arg2[%c7, %c0_9] : memref<25x256xf32, #tpu.memory_space<vmem>>, vector<1x256xf32>
    %26 = arith.mulf %24, %25 : vector<1x256xf32>
    %c15_i32 = arith.constant 15 : i32
    %27 = tpu.dynamic_rotate %2 by %c15_i32 dim 1 : vector<1x256xf32>, i32 -> vector<1x256xf32>
    %c8 = arith.constant 8 : index
    %c0_10 = arith.constant 0 : index
    %28 = vector.load %arg2[%c8, %c0_10] : memref<25x256xf32, #tpu.memory_space<vmem>>, vector<1x256xf32>
    %29 = arith.mulf %27, %28 : vector<1x256xf32>
    %c14_i32 = arith.constant 14 : i32
    %30 = tpu.dynamic_rotate %2 by %c14_i32 dim 1 : vector<1x256xf32>, i32 -> vector<1x256xf32>
    %c9 = arith.constant 9 : index
    %c0_11 = arith.constant 0 : index
    %31 = vector.load %arg2[%c9, %c0_11] : memref<25x256xf32, #tpu.memory_space<vmem>>, vector<1x256xf32>
    %32 = arith.mulf %30, %31 : vector<1x256xf32>
    %c2_i32 = arith.constant 2 : i32
    %33 = tpu.dynamic_rotate %2 by %c2_i32 dim 1 : vector<1x256xf32>, i32 -> vector<1x256xf32>
    %c10 = arith.constant 10 : index
    %c0_12 = arith.constant 0 : index
    %34 = vector.load %arg2[%c10, %c0_12] : memref<25x256xf32, #tpu.memory_space<vmem>>, vector<1x256xf32>
    %35 = arith.mulf %33, %34 : vector<1x256xf32>
    %c1_i32 = arith.constant 1 : i32
    %36 = tpu.dynamic_rotate %2 by %c1_i32 dim 1 : vector<1x256xf32>, i32 -> vector<1x256xf32>
    %c11 = arith.constant 11 : index
    %c0_13 = arith.constant 0 : index
    %37 = vector.load %arg2[%c11, %c0_13] : memref<25x256xf32, #tpu.memory_space<vmem>>, vector<1x256xf32>
    %38 = arith.mulf %36, %37 : vector<1x256xf32>
    %c255_i32 = arith.constant 255 : i32
    %39 = tpu.dynamic_rotate %2 by %c255_i32 dim 1 : vector<1x256xf32>, i32 -> vector<1x256xf32>
    %c13 = arith.constant 13 : index
    %c0_14 = arith.constant 0 : index
    %40 = vector.load %arg2[%c13, %c0_14] : memref<25x256xf32, #tpu.memory_space<vmem>>, vector<1x256xf32>
    %41 = arith.mulf %39, %40 : vector<1x256xf32>
    %c254_i32 = arith.constant 254 : i32
    %42 = tpu.dynamic_rotate %2 by %c254_i32 dim 1 : vector<1x256xf32>, i32 -> vector<1x256xf32>
    %c14 = arith.constant 14 : index
    %c0_15 = arith.constant 0 : index
    %43 = vector.load %arg2[%c14, %c0_15] : memref<25x256xf32, #tpu.memory_space<vmem>>, vector<1x256xf32>
    %44 = arith.mulf %42, %43 : vector<1x256xf32>
    %c242_i32 = arith.constant 242 : i32
    %45 = tpu.dynamic_rotate %2 by %c242_i32 dim 1 : vector<1x256xf32>, i32 -> vector<1x256xf32>
    %c15 = arith.constant 15 : index
    %c0_16 = arith.constant 0 : index
    %46 = vector.load %arg2[%c15, %c0_16] : memref<25x256xf32, #tpu.memory_space<vmem>>, vector<1x256xf32>
    %47 = arith.mulf %45, %46 : vector<1x256xf32>
    %c241_i32 = arith.constant 241 : i32
    %48 = tpu.dynamic_rotate %2 by %c241_i32 dim 1 : vector<1x256xf32>, i32 -> vector<1x256xf32>
    %c16 = arith.constant 16 : index
    %c0_17 = arith.constant 0 : index
    %49 = vector.load %arg2[%c16, %c0_17] : memref<25x256xf32, #tpu.memory_space<vmem>>, vector<1x256xf32>
    %50 = arith.mulf %48, %49 : vector<1x256xf32>
    %c240_i32 = arith.constant 240 : i32
    %51 = tpu.dynamic_rotate %2 by %c240_i32 dim 1 : vector<1x256xf32>, i32 -> vector<1x256xf32>
    %c17 = arith.constant 17 : index
    %c0_18 = arith.constant 0 : index
    %52 = vector.load %arg2[%c17, %c0_18] : memref<25x256xf32, #tpu.memory_space<vmem>>, vector<1x256xf32>
    %53 = arith.mulf %51, %52 : vector<1x256xf32>
    %c239_i32 = arith.constant 239 : i32
    %54 = tpu.dynamic_rotate %2 by %c239_i32 dim 1 : vector<1x256xf32>, i32 -> vector<1x256xf32>
    %c18 = arith.constant 18 : index
    %c0_19 = arith.constant 0 : index
    %55 = vector.load %arg2[%c18, %c0_19] : memref<25x256xf32, #tpu.memory_space<vmem>>, vector<1x256xf32>
    %56 = arith.mulf %54, %55 : vector<1x256xf32>
    %c238_i32 = arith.constant 238 : i32
    %57 = tpu.dynamic_rotate %2 by %c238_i32 dim 1 : vector<1x256xf32>, i32 -> vector<1x256xf32>
    %c19 = arith.constant 19 : index
    %c0_20 = arith.constant 0 : index
    %58 = vector.load %arg2[%c19, %c0_20] : memref<25x256xf32, #tpu.memory_space<vmem>>, vector<1x256xf32>
    %59 = arith.mulf %57, %58 : vector<1x256xf32>
    %c226_i32 = arith.constant 226 : i32
    %60 = tpu.dynamic_rotate %2 by %c226_i32 dim 1 : vector<1x256xf32>, i32 -> vector<1x256xf32>
    %c20 = arith.constant 20 : index
    %c0_21 = arith.constant 0 : index
    %61 = vector.load %arg2[%c20, %c0_21] : memref<25x256xf32, #tpu.memory_space<vmem>>, vector<1x256xf32>
    %62 = arith.mulf %60, %61 : vector<1x256xf32>
    %c225_i32 = arith.constant 225 : i32
    %63 = tpu.dynamic_rotate %2 by %c225_i32 dim 1 : vector<1x256xf32>, i32 -> vector<1x256xf32>
    %c21 = arith.constant 21 : index
    %c0_22 = arith.constant 0 : index
    %64 = vector.load %arg2[%c21, %c0_22] : memref<25x256xf32, #tpu.memory_space<vmem>>, vector<1x256xf32>
    %65 = arith.mulf %63, %64 : vector<1x256xf32>
    %c224_i32 = arith.constant 224 : i32
    %66 = tpu.dynamic_rotate %2 by %c224_i32 dim 1 : vector<1x256xf32>, i32 -> vector<1x256xf32>
    %c22 = arith.constant 22 : index
    %c0_23 = arith.constant 0 : index
    %67 = vector.load %arg2[%c22, %c0_23] : memref<25x256xf32, #tpu.memory_space<vmem>>, vector<1x256xf32>
    %68 = arith.mulf %66, %67 : vector<1x256xf32>
    %c223_i32 = arith.constant 223 : i32
    %69 = tpu.dynamic_rotate %2 by %c223_i32 dim 1 : vector<1x256xf32>, i32 -> vector<1x256xf32>
    %c23 = arith.constant 23 : index
    %c0_24 = arith.constant 0 : index
    %70 = vector.load %arg2[%c23, %c0_24] : memref<25x256xf32, #tpu.memory_space<vmem>>, vector<1x256xf32>
    %71 = arith.mulf %69, %70 : vector<1x256xf32>
    %c222_i32 = arith.constant 222 : i32
    %72 = tpu.dynamic_rotate %2 by %c222_i32 dim 1 : vector<1x256xf32>, i32 -> vector<1x256xf32>
    %c24 = arith.constant 24 : index
    %c0_25 = arith.constant 0 : index
    %73 = vector.load %arg2[%c24, %c0_25] : memref<25x256xf32, #tpu.memory_space<vmem>>, vector<1x256xf32>
    %74 = arith.mulf %72, %73 : vector<1x256xf32>
    %75 = tpu.concatenate %5, %8, %11, %14, %17, %20, %23, %26, %29, %32, %35, %38, %2, %41, %44, %47 in 0 : vector<1x256xf32>, vector<1x256xf32>, vector<1x256xf32>, vector<1x256xf32>, vector<1x256xf32>, vector<1x256xf32>, vector<1x256xf32>, vector<1x256xf32>, vector<1x256xf32>, vector<1x256xf32>, vector<1x256xf32>, vector<1x256xf32>, vector<1x256xf32>, vector<1x256xf32>, vector<1x256xf32>, vector<1x256xf32> -> vector<16x256xf32>
    %76 = tpu.concatenate %50, %53, %56, %59, %62, %65, %68, %71, %74 in 0 : vector<1x256xf32>, vector<1x256xf32>, vector<1x256xf32>, vector<1x256xf32>, vector<1x256xf32>, vector<1x256xf32>, vector<1x256xf32>, vector<1x256xf32>, vector<1x256xf32> -> vector<9x256xf32>
    %77 = tpu.concatenate %75, %76 in 0 : vector<16x256xf32>, vector<9x256xf32> -> vector<25x256xf32>
    %c0_26 = arith.constant 0 : index
    %c0_27 = arith.constant 0 : index
    %78 = vector.load %arg3[%c0_26, %c0_27] : memref<16x25xf32, #tpu.memory_space<vmem>>, vector<16x25xf32>
    %cst = arith.constant dense<0.000000e+00> : vector<16x256xf32>
    %79 = tpu.matmul %78, %77, %cst {dimension_numbers = #tpu.dot_dimension_numbers<[1], [0], [0], [1], [0, 0, 1, 1], [], []>} : vector<16x25xf32>, vector<25x256xf32>, vector<16x256xf32> -> vector<16x256xf32>
    %c0_28 = arith.constant 0 : index
    %c0_29 = arith.constant 0 : index
    %80 = vector.load %arg4[%c0_28, %c0_29] : memref<16x1xf32, #tpu.memory_space<vmem>>, vector<16x1xf32>
    %81 = vector.broadcast %80 : vector<16x1xf32> to vector<16x256xf32>
    %82 = arith.addf %79, %81 : vector<16x256xf32>
    %83 = math.tanh %82 : vector<16x256xf32>
    %c34_i32_30 = arith.constant 34 : i32
    %84 = tpu.dynamic_rotate %83 by %c34_i32_30 dim 1 : vector<16x256xf32>, i32 -> vector<16x256xf32>
    %c0_31 = arith.constant 0 : index
    %c0_32 = arith.constant 0 : index
    %85 = vector.load %arg2[%c0_31, %c0_32] : memref<25x256xf32, #tpu.memory_space<vmem>>, vector<1x256xf32>
    %86 = vector.broadcast %85 : vector<1x256xf32> to vector<16x256xf32>
    %87 = arith.mulf %84, %86 : vector<16x256xf32>
    %c0_33 = arith.constant 0 : index
    %c0_34 = arith.constant 0 : index
    %88 = vector.load %arg10[%c0_33, %c0_34] : memref<600x256xf32, #tpu.memory_space<vmem>>, vector<16x256xf32>
    tpu.vector_store %arg10[%c0_33, %c0_34], %87 {strides = array<i32>} : memref<600x256xf32, #tpu.memory_space<vmem>>, vector<16x256xf32>,
    %c33_i32_35 = arith.constant 33 : i32
    %89 = tpu.dynamic_rotate %83 by %c33_i32_35 dim 1 : vector<16x256xf32>, i32 -> vector<16x256xf32>
    %c1_36 = arith.constant 1 : index
    %c0_37 = arith.constant 0 : index
    %90 = vector.load %arg2[%c1_36, %c0_37] : memref<25x256xf32, #tpu.memory_space<vmem>>, vector<1x256xf32>
    %91 = vector.broadcast %90 : vector<1x256xf32> to vector<16x256xf32>
    %92 = arith.mulf %89, %91 : vector<16x256xf32>
    %c16_38 = arith.constant 16 : index
    %c0_39 = arith.constant 0 : index
    %93 = vector.load %arg10[%c16_38, %c0_39] : memref<600x256xf32, #tpu.memory_space<vmem>>, vector<16x256xf32>
    tpu.vector_store %arg10[%c16_38, %c0_39], %92 {strides = array<i32>} : memref<600x256xf32, #tpu.memory_space<vmem>>, vector<16x256xf32>,
    %c32_i32_40 = arith.constant 32 : i32
    %94 = tpu.dynamic_rotate %83 by %c32_i32_40 dim 1 : vector<16x256xf32>, i32 -> vector<16x256xf32>
    %c2_41 = arith.constant 2 : index
    %c0_42 = arith.constant 0 : index
    %95 = vector.load %arg2[%c2_41, %c0_42] : memref<25x256xf32, #tpu.memory_space<vmem>>, vector<1x256xf32>
    %96 = vector.broadcast %95 : vector<1x256xf32> to vector<16x256xf32>
    %97 = arith.mulf %94, %96 : vector<16x256xf32>
    %c32 = arith.constant 32 : index
    %c0_43 = arith.constant 0 : index
    %98 = vector.load %arg10[%c32, %c0_43] : memref<600x256xf32, #tpu.memory_space<vmem>>, vector<16x256xf32>
    tpu.vector_store %arg10[%c32, %c0_43], %97 {strides = array<i32>} : memref<600x256xf32, #tpu.memory_space<vmem>>, vector<16x256xf32>,
    %c31_i32_44 = arith.constant 31 : i32
    %99 = tpu.dynamic_rotate %83 by %c31_i32_44 dim 1 : vector<16x256xf32>, i32 -> vector<16x256xf32>
    %c3_45 = arith.constant 3 : index
    %c0_46 = arith.constant 0 : index
    %100 = vector.load %arg2[%c3_45, %c0_46] : memref<25x256xf32, #tpu.memory_space<vmem>>, vector<1x256xf32>
    %101 = vector.broadcast %100 : vector<1x256xf32> to vector<16x256xf32>
    %102 = arith.mulf %99, %101 : vector<16x256xf32>
    %c48 = arith.constant 48 : index
    %c0_47 = arith.constant 0 : index
    %103 = vector.load %arg10[%c48, %c0_47] : memref<600x256xf32, #tpu.memory_space<vmem>>, vector<16x256xf32>
    tpu.vector_store %arg10[%c48, %c0_47], %102 {strides = array<i32>} : memref<600x256xf32, #tpu.memory_space<vmem>>, vector<16x256xf32>,
    %c30_i32_48 = arith.constant 30 : i32
    %104 = tpu.dynamic_rotate %83 by %c30_i32_48 dim 1 : vector<16x256xf32>, i32 -> vector<16x256xf32>
    %c4_49 = arith.constant 4 : index
    %c0_50 = arith.constant 0 : index
    %105 = vector.load %arg2[%c4_49, %c0_50] : memref<25x256xf32, #tpu.memory_space<vmem>>, vector<1x256xf32>
    %106 = vector.broadcast %105 : vector<1x256xf32> to vector<16x256xf32>
    %107 = arith.mulf %104, %106 : vector<16x256xf32>
    %c64 = arith.constant 64 : index
    %c0_51 = arith.constant 0 : index
    %108 = vector.load %arg10[%c64, %c0_51] : memref<600x256xf32, #tpu.memory_space<vmem>>, vector<16x256xf32>
    tpu.vector_store %arg10[%c64, %c0_51], %107 {strides = array<i32>} : memref<600x256xf32, #tpu.memory_space<vmem>>, vector<16x256xf32>,
    %c18_i32_52 = arith.constant 18 : i32
    %109 = tpu.dynamic_rotate %83 by %c18_i32_52 dim 1 : vector<16x256xf32>, i32 -> vector<16x256xf32>
    %c5_53 = arith.constant 5 : index
    %c0_54 = arith.constant 0 : index
    %110 = vector.load %arg2[%c5_53, %c0_54] : memref<25x256xf32, #tpu.memory_space<vmem>>, vector<1x256xf32>
    %111 = vector.broadcast %110 : vector<1x256xf32> to vector<16x256xf32>
    %112 = arith.mulf %109, %111 : vector<16x256xf32>
    %c80 = arith.constant 80 : index
    %c0_55 = arith.constant 0 : index
    %113 = vector.load %arg10[%c80, %c0_55] : memref<600x256xf32, #tpu.memory_space<vmem>>, vector<16x256xf32>
    tpu.vector_store %arg10[%c80, %c0_55], %112 {strides = array<i32>} : memref<600x256xf32, #tpu.memory_space<vmem>>, vector<16x256xf32>,
    %c17_i32_56 = arith.constant 17 : i32
    %114 = tpu.dynamic_rotate %83 by %c17_i32_56 dim 1 : vector<16x256xf32>, i32 -> vector<16x256xf32>
    %c6_57 = arith.constant 6 : index
    %c0_58 = arith.constant 0 : index
    %115 = vector.load %arg2[%c6_57, %c0_58] : memref<25x256xf32, #tpu.memory_space<vmem>>, vector<1x256xf32>
    %116 = vector.broadcast %115 : vector<1x256xf32> to vector<16x256xf32>
    %117 = arith.mulf %114, %116 : vector<16x256xf32>
    %c96 = arith.constant 96 : index
    %c0_59 = arith.constant 0 : index
    %118 = vector.load %arg10[%c96, %c0_59] : memref<600x256xf32, #tpu.memory_space<vmem>>, vector<16x256xf32>
    tpu.vector_store %arg10[%c96, %c0_59], %117 {strides = array<i32>} : memref<600x256xf32, #tpu.memory_space<vmem>>, vector<16x256xf32>,
    %c16_i32_60 = arith.constant 16 : i32
    %119 = tpu.dynamic_rotate %83 by %c16_i32_60 dim 1 : vector<16x256xf32>, i32 -> vector<16x256xf32>
    %c7_61 = arith.constant 7 : index
    %c0_62 = arith.constant 0 : index
    %120 = vector.load %arg2[%c7_61, %c0_62] : memref<25x256xf32, #tpu.memory_space<vmem>>, vector<1x256xf32>
    %121 = vector.broadcast %120 : vector<1x256xf32> to vector<16x256xf32>
    %122 = arith.mulf %119, %121 : vector<16x256xf32>
    %c112 = arith.constant 112 : index
    %c0_63 = arith.constant 0 : index
    %123 = vector.load %arg10[%c112, %c0_63] : memref<600x256xf32, #tpu.memory_space<vmem>>, vector<16x256xf32>
    tpu.vector_store %arg10[%c112, %c0_63], %122 {strides = array<i32>} : memref<600x256xf32, #tpu.memory_space<vmem>>, vector<16x256xf32>,
    %c15_i32_64 = arith.constant 15 : i32
    %124 = tpu.dynamic_rotate %83 by %c15_i32_64 dim 1 : vector<16x256xf32>, i32 -> vector<16x256xf32>
    %c8_65 = arith.constant 8 : index
    %c0_66 = arith.constant 0 : index
    %125 = vector.load %arg2[%c8_65, %c0_66] : memref<25x256xf32, #tpu.memory_space<vmem>>, vector<1x256xf32>
    %126 = vector.broadcast %125 : vector<1x256xf32> to vector<16x256xf32>
    %127 = arith.mulf %124, %126 : vector<16x256xf32>
    %c128 = arith.constant 128 : index
    %c0_67 = arith.constant 0 : index
    %128 = vector.load %arg10[%c128, %c0_67] : memref<600x256xf32, #tpu.memory_space<vmem>>, vector<16x256xf32>
    tpu.vector_store %arg10[%c128, %c0_67], %127 {strides = array<i32>} : memref<600x256xf32, #tpu.memory_space<vmem>>, vector<16x256xf32>,
    %c14_i32_68 = arith.constant 14 : i32
    %129 = tpu.dynamic_rotate %83 by %c14_i32_68 dim 1 : vector<16x256xf32>, i32 -> vector<16x256xf32>
    %c9_69 = arith.constant 9 : index
    %c0_70 = arith.constant 0 : index
    %130 = vector.load %arg2[%c9_69, %c0_70] : memref<25x256xf32, #tpu.memory_space<vmem>>, vector<1x256xf32>
    %131 = vector.broadcast %130 : vector<1x256xf32> to vector<16x256xf32>
    %132 = arith.mulf %129, %131 : vector<16x256xf32>
    %c144 = arith.constant 144 : index
    %c0_71 = arith.constant 0 : index
    %133 = vector.load %arg10[%c144, %c0_71] : memref<600x256xf32, #tpu.memory_space<vmem>>, vector<16x256xf32>
    tpu.vector_store %arg10[%c144, %c0_71], %132 {strides = array<i32>} : memref<600x256xf32, #tpu.memory_space<vmem>>, vector<16x256xf32>,
    %c2_i32_72 = arith.constant 2 : i32
    %134 = tpu.dynamic_rotate %83 by %c2_i32_72 dim 1 : vector<16x256xf32>, i32 -> vector<16x256xf32>
    %c10_73 = arith.constant 10 : index
    %c0_74 = arith.constant 0 : index
    %135 = vector.load %arg2[%c10_73, %c0_74] : memref<25x256xf32, #tpu.memory_space<vmem>>, vector<1x256xf32>
    %136 = vector.broadcast %135 : vector<1x256xf32> to vector<16x256xf32>
    %137 = arith.mulf %134, %136 : vector<16x256xf32>
    %c160 = arith.constant 160 : index
    %c0_75 = arith.constant 0 : index
    %138 = vector.load %arg10[%c160, %c0_75] : memref<600x256xf32, #tpu.memory_space<vmem>>, vector<16x256xf32>
    tpu.vector_store %arg10[%c160, %c0_75], %137 {strides = array<i32>} : memref<600x256xf32, #tpu.memory_space<vmem>>, vector<16x256xf32>,
    %c1_i32_76 = arith.constant 1 : i32
    %139 = tpu.dynamic_rotate %83 by %c1_i32_76 dim 1 : vector<16x256xf32>, i32 -> vector<16x256xf32>
    %c11_77 = arith.constant 11 : index
    %c0_78 = arith.constant 0 : index
    %140 = vector.load %arg2[%c11_77, %c0_78] : memref<25x256xf32, #tpu.memory_space<vmem>>, vector<1x256xf32>
    %141 = vector.broadcast %140 : vector<1x256xf32> to vector<16x256xf32>
    %142 = arith.mulf %139, %141 : vector<16x256xf32>
    %c176 = arith.constant 176 : index
    %c0_79 = arith.constant 0 : index
    %143 = vector.load %arg10[%c176, %c0_79] : memref<600x256xf32, #tpu.memory_space<vmem>>, vector<16x256xf32>
    tpu.vector_store %arg10[%c176, %c0_79], %142 {strides = array<i32>} : memref<600x256xf32, #tpu.memory_space<vmem>>, vector<16x256xf32>,
    %c192 = arith.constant 192 : index
    %c0_80 = arith.constant 0 : index
    %144 = vector.load %arg10[%c192, %c0_80] : memref<600x256xf32, #tpu.memory_space<vmem>>, vector<16x256xf32>
    tpu.vector_store %arg10[%c192, %c0_80], %83 {strides = array<i32>} : memref<600x256xf32, #tpu.memory_space<vmem>>, vector<16x256xf32>,
    %c255_i32_81 = arith.constant 255 : i32
    %145 = tpu.dynamic_rotate %83 by %c255_i32_81 dim 1 : vector<16x256xf32>, i32 -> vector<16x256xf32>
    %c13_82 = arith.constant 13 : index
    %c0_83 = arith.constant 0 : index
    %146 = vector.load %arg2[%c13_82, %c0_83] : memref<25x256xf32, #tpu.memory_space<vmem>>, vector<1x256xf32>
    %147 = vector.broadcast %146 : vector<1x256xf32> to vector<16x256xf32>
    %148 = arith.mulf %145, %147 : vector<16x256xf32>
    %c208 = arith.constant 208 : index
    %c0_84 = arith.constant 0 : index
    %149 = vector.load %arg10[%c208, %c0_84] : memref<600x256xf32, #tpu.memory_space<vmem>>, vector<16x256xf32>
    tpu.vector_store %arg10[%c208, %c0_84], %148 {strides = array<i32>} : memref<600x256xf32, #tpu.memory_space<vmem>>, vector<16x256xf32>,
    %c254_i32_85 = arith.constant 254 : i32
    %150 = tpu.dynamic_rotate %83 by %c254_i32_85 dim 1 : vector<16x256xf32>, i32 -> vector<16x256xf32>
    %c14_86 = arith.constant 14 : index
    %c0_87 = arith.constant 0 : index
    %151 = vector.load %arg2[%c14_86, %c0_87] : memref<25x256xf32, #tpu.memory_space<vmem>>, vector<1x256xf32>
    %152 = vector.broadcast %151 : vector<1x256xf32> to vector<16x256xf32>
    %153 = arith.mulf %150, %152 : vector<16x256xf32>
    %c224 = arith.constant 224 : index
    %c0_88 = arith.constant 0 : index
    %154 = vector.load %arg10[%c224, %c0_88] : memref<600x256xf32, #tpu.memory_space<vmem>>, vector<16x256xf32>
    tpu.vector_store %arg10[%c224, %c0_88], %153 {strides = array<i32>} : memref<600x256xf32, #tpu.memory_space<vmem>>, vector<16x256xf32>,
    %c242_i32_89 = arith.constant 242 : i32
    %155 = tpu.dynamic_rotate %83 by %c242_i32_89 dim 1 : vector<16x256xf32>, i32 -> vector<16x256xf32>
    %c15_90 = arith.constant 15 : index
    %c0_91 = arith.constant 0 : index
    %156 = vector.load %arg2[%c15_90, %c0_91] : memref<25x256xf32, #tpu.memory_space<vmem>>, vector<1x256xf32>
    %157 = vector.broadcast %156 : vector<1x256xf32> to vector<16x256xf32>
    %158 = arith.mulf %155, %157 : vector<16x256xf32>
    %c240 = arith.constant 240 : index
    %c0_92 = arith.constant 0 : index
    %159 = vector.load %arg10[%c240, %c0_92] : memref<600x256xf32, #tpu.memory_space<vmem>>, vector<16x256xf32>
    tpu.vector_store %arg10[%c240, %c0_92], %158 {strides = array<i32>} : memref<600x256xf32, #tpu.memory_space<vmem>>, vector<16x256xf32>,
    %c241_i32_93 = arith.constant 241 : i32
    %160 = tpu.dynamic_rotate %83 by %c241_i32_93 dim 1 : vector<16x256xf32>, i32 -> vector<16x256xf32>
    %c16_94 = arith.constant 16 : index
    %c0_95 = arith.constant 0 : index
    %161 = vector.load %arg2[%c16_94, %c0_95] : memref<25x256xf32, #tpu.memory_space<vmem>>, vector<1x256xf32>
    %162 = vector.broadcast %161 : vector<1x256xf32> to vector<16x256xf32>
    %163 = arith.mulf %160, %162 : vector<16x256xf32>
    %c256 = arith.constant 256 : index
    %c0_96 = arith.constant 0 : index
    %164 = vector.load %arg10[%c256, %c0_96] : memref<600x256xf32, #tpu.memory_space<vmem>>, vector<16x256xf32>
    tpu.vector_store %arg10[%c256, %c0_96], %163 {strides = array<i32>} : memref<600x256xf32, #tpu.memory_space<vmem>>, vector<16x256xf32>,
    %c240_i32_97 = arith.constant 240 : i32
    %165 = tpu.dynamic_rotate %83 by %c240_i32_97 dim 1 : vector<16x256xf32>, i32 -> vector<16x256xf32>
    %c17_98 = arith.constant 17 : index
    %c0_99 = arith.constant 0 : index
    %166 = vector.load %arg2[%c17_98, %c0_99] : memref<25x256xf32, #tpu.memory_space<vmem>>, vector<1x256xf32>
    %167 = vector.broadcast %166 : vector<1x256xf32> to vector<16x256xf32>
    %168 = arith.mulf %165, %167 : vector<16x256xf32>
    %c272 = arith.constant 272 : index
    %c0_100 = arith.constant 0 : index
    %169 = vector.load %arg10[%c272, %c0_100] : memref<600x256xf32, #tpu.memory_space<vmem>>, vector<16x256xf32>
    tpu.vector_store %arg10[%c272, %c0_100], %168 {strides = array<i32>} : memref<600x256xf32, #tpu.memory_space<vmem>>, vector<16x256xf32>,
    %c239_i32_101 = arith.constant 239 : i32
    %170 = tpu.dynamic_rotate %83 by %c239_i32_101 dim 1 : vector<16x256xf32>, i32 -> vector<16x256xf32>
    %c18_102 = arith.constant 18 : index
    %c0_103 = arith.constant 0 : index
    %171 = vector.load %arg2[%c18_102, %c0_103] : memref<25x256xf32, #tpu.memory_space<vmem>>, vector<1x256xf32>
    %172 = vector.broadcast %171 : vector<1x256xf32> to vector<16x256xf32>
    %173 = arith.mulf %170, %172 : vector<16x256xf32>
    %c288 = arith.constant 288 : index
    %c0_104 = arith.constant 0 : index
    %174 = vector.load %arg10[%c288, %c0_104] : memref<600x256xf32, #tpu.memory_space<vmem>>, vector<16x256xf32>
    tpu.vector_store %arg10[%c288, %c0_104], %173 {strides = array<i32>} : memref<600x256xf32, #tpu.memory_space<vmem>>, vector<16x256xf32>,
    %c238_i32_105 = arith.constant 238 : i32
    %175 = tpu.dynamic_rotate %83 by %c238_i32_105 dim 1 : vector<16x256xf32>, i32 -> vector<16x256xf32>
    %c19_106 = arith.constant 19 : index
    %c0_107 = arith.constant 0 : index
    %176 = vector.load %arg2[%c19_106, %c0_107] : memref<25x256xf32, #tpu.memory_space<vmem>>, vector<1x256xf32>
    %177 = vector.broadcast %176 : vector<1x256xf32> to vector<16x256xf32>
    %178 = arith.mulf %175, %177 : vector<16x256xf32>
    %c304 = arith.constant 304 : index
    %c0_108 = arith.constant 0 : index
    %179 = vector.load %arg10[%c304, %c0_108] : memref<600x256xf32, #tpu.memory_space<vmem>>, vector<16x256xf32>
    tpu.vector_store %arg10[%c304, %c0_108], %178 {strides = array<i32>} : memref<600x256xf32, #tpu.memory_space<vmem>>, vector<16x256xf32>,
    %c226_i32_109 = arith.constant 226 : i32
    %180 = tpu.dynamic_rotate %83 by %c226_i32_109 dim 1 : vector<16x256xf32>, i32 -> vector<16x256xf32>
    %c20_110 = arith.constant 20 : index
    %c0_111 = arith.constant 0 : index
    %181 = vector.load %arg2[%c20_110, %c0_111] : memref<25x256xf32, #tpu.memory_space<vmem>>, vector<1x256xf32>
    %182 = vector.broadcast %181 : vector<1x256xf32> to vector<16x256xf32>
    %183 = arith.mulf %180, %182 : vector<16x256xf32>
    %c320 = arith.constant 320 : index
    %c0_112 = arith.constant 0 : index
    %184 = vector.load %arg10[%c320, %c0_112] : memref<600x256xf32, #tpu.memory_space<vmem>>, vector<16x256xf32>
    tpu.vector_store %arg10[%c320, %c0_112], %183 {strides = array<i32>} : memref<600x256xf32, #tpu.memory_space<vmem>>, vector<16x256xf32>,
    %c225_i32_113 = arith.constant 225 : i32
    %185 = tpu.dynamic_rotate %83 by %c225_i32_113 dim 1 : vector<16x256xf32>, i32 -> vector<16x256xf32>
    %c21_114 = arith.constant 21 : index
    %c0_115 = arith.constant 0 : index
    %186 = vector.load %arg2[%c21_114, %c0_115] : memref<25x256xf32, #tpu.memory_space<vmem>>, vector<1x256xf32>
    %187 = vector.broadcast %186 : vector<1x256xf32> to vector<16x256xf32>
    %188 = arith.mulf %185, %187 : vector<16x256xf32>
    %c336 = arith.constant 336 : index
    %c0_116 = arith.constant 0 : index
    %189 = vector.load %arg10[%c336, %c0_116] : memref<600x256xf32, #tpu.memory_space<vmem>>, vector<16x256xf32>
    tpu.vector_store %arg10[%c336, %c0_116], %188 {strides = array<i32>} : memref<600x256xf32, #tpu.memory_space<vmem>>, vector<16x256xf32>,
    %c224_i32_117 = arith.constant 224 : i32
    %190 = tpu.dynamic_rotate %83 by %c224_i32_117 dim 1 : vector<16x256xf32>, i32 -> vector<16x256xf32>
    %c22_118 = arith.constant 22 : index
    %c0_119 = arith.constant 0 : index
    %191 = vector.load %arg2[%c22_118, %c0_119] : memref<25x256xf32, #tpu.memory_space<vmem>>, vector<1x256xf32>
    %192 = vector.broadcast %191 : vector<1x256xf32> to vector<16x256xf32>
    %193 = arith.mulf %190, %192 : vector<16x256xf32>
    %c352 = arith.constant 352 : index
    %c0_120 = arith.constant 0 : index
    %194 = vector.load %arg10[%c352, %c0_120] : memref<600x256xf32, #tpu.memory_space<vmem>>, vector<16x256xf32>
    tpu.vector_store %arg10[%c352, %c0_120], %193 {strides = array<i32>} : memref<600x256xf32, #tpu.memory_space<vmem>>, vector<16x256xf32>,
    %c223_i32_121 = arith.constant 223 : i32
    %195 = tpu.dynamic_rotate %83 by %c223_i32_121 dim 1 : vector<16x256xf32>, i32 -> vector<16x256xf32>
    %c23_122 = arith.constant 23 : index
    %c0_123 = arith.constant 0 : index
    %196 = vector.load %arg2[%c23_122, %c0_123] : memref<25x256xf32, #tpu.memory_space<vmem>>, vector<1x256xf32>
    %197 = vector.broadcast %196 : vector<1x256xf32> to vector<16x256xf32>
    %198 = arith.mulf %195, %197 : vector<16x256xf32>
    %c368 = arith.constant 368 : index
    %c0_124 = arith.constant 0 : index
    %199 = vector.load %arg10[%c368, %c0_124] : memref<600x256xf32, #tpu.memory_space<vmem>>, vector<16x256xf32>
    tpu.vector_store %arg10[%c368, %c0_124], %198 {strides = array<i32>} : memref<600x256xf32, #tpu.memory_space<vmem>>, vector<16x256xf32>,
    %c222_i32_125 = arith.constant 222 : i32
    %200 = tpu.dynamic_rotate %83 by %c222_i32_125 dim 1 : vector<16x256xf32>, i32 -> vector<16x256xf32>
    %c24_126 = arith.constant 24 : index
    %c0_127 = arith.constant 0 : index
    %201 = vector.load %arg2[%c24_126, %c0_127] : memref<25x256xf32, #tpu.memory_space<vmem>>, vector<1x256xf32>
    %202 = vector.broadcast %201 : vector<1x256xf32> to vector<16x256xf32>
    %203 = arith.mulf %200, %202 : vector<16x256xf32>
    %c384 = arith.constant 384 : index
    %c0_128 = arith.constant 0 : index
    %204 = vector.load %arg10[%c384, %c0_128] : memref<600x256xf32, #tpu.memory_space<vmem>>, vector<16x256xf32>
    tpu.vector_store %arg10[%c384, %c0_128], %203 {strides = array<i32>} : memref<600x256xf32, #tpu.memory_space<vmem>>, vector<16x256xf32>,
    %c0_129 = arith.constant 0 : index
    %c0_130 = arith.constant 0 : index
    %205 = vector.load %arg5[%c0_129, %c0_130] : memref<24x400xf32, #tpu.memory_space<vmem>>, vector<24x400xf32>
    %c0_131 = arith.constant 0 : index
    %c0_132 = arith.constant 0 : index
    %206 = vector.load %arg10[%c0_131, %c0_132] : memref<600x256xf32, #tpu.memory_space<vmem>>, vector<400x256xf32>
    %cst_133 = arith.constant dense<0.000000e+00> : vector<24x256xf32>
    %207 = tpu.matmul %205, %206, %cst_133 {dimension_numbers = #tpu.dot_dimension_numbers<[1], [0], [0], [1], [0, 0, 1, 1], [], []>} : vector<24x400xf32>, vector<400x256xf32>, vector<24x256xf32> -> vector<24x256xf32>
    %c0_134 = arith.constant 0 : index
    %c0_135 = arith.constant 0 : index
    %208 = vector.load %arg6[%c0_134, %c0_135] : memref<24x1xf32, #tpu.memory_space<vmem>>, vector<24x1xf32>
    %209 = vector.broadcast %208 : vector<24x1xf32> to vector<24x256xf32>
    %210 = arith.addf %207, %209 : vector<24x256xf32>
    %211 = math.tanh %210 : vector<24x256xf32>
    %c34_i32_136 = arith.constant 34 : i32
    %212 = tpu.dynamic_rotate %211 by %c34_i32_136 dim 1 : vector<24x256xf32>, i32 -> vector<24x256xf32>
    %c0_137 = arith.constant 0 : index
    %c0_138 = arith.constant 0 : index
    %213 = vector.load %arg2[%c0_137, %c0_138] : memref<25x256xf32, #tpu.memory_space<vmem>>, vector<1x256xf32>
    %214 = vector.broadcast %213 : vector<1x256xf32> to vector<24x256xf32>
    %215 = arith.mulf %212, %214 : vector<24x256xf32>
    %c0_139 = arith.constant 0 : index
    %c0_140 = arith.constant 0 : index
    %216 = vector.load %arg10[%c0_139, %c0_140] : memref<600x256xf32, #tpu.memory_space<vmem>>, vector<24x256xf32>
    tpu.vector_store %arg10[%c0_139, %c0_140], %215 {strides = array<i32>} : memref<600x256xf32, #tpu.memory_space<vmem>>, vector<24x256xf32>,
    %c33_i32_141 = arith.constant 33 : i32
    %217 = tpu.dynamic_rotate %211 by %c33_i32_141 dim 1 : vector<24x256xf32>, i32 -> vector<24x256xf32>
    %c1_142 = arith.constant 1 : index
    %c0_143 = arith.constant 0 : index
    %218 = vector.load %arg2[%c1_142, %c0_143] : memref<25x256xf32, #tpu.memory_space<vmem>>, vector<1x256xf32>
    %219 = vector.broadcast %218 : vector<1x256xf32> to vector<24x256xf32>
    %220 = arith.mulf %217, %219 : vector<24x256xf32>
    %c24_144 = arith.constant 24 : index
    %c0_145 = arith.constant 0 : index
    %221 = vector.load %arg10[%c24_144, %c0_145] : memref<600x256xf32, #tpu.memory_space<vmem>>, vector<24x256xf32>
    tpu.vector_store %arg10[%c24_144, %c0_145], %220 {strides = array<i32>} : memref<600x256xf32, #tpu.memory_space<vmem>>, vector<24x256xf32>,
    %c32_i32_146 = arith.constant 32 : i32
    %222 = tpu.dynamic_rotate %211 by %c32_i32_146 dim 1 : vector<24x256xf32>, i32 -> vector<24x256xf32>
    %c2_147 = arith.constant 2 : index
    %c0_148 = arith.constant 0 : index
    %223 = vector.load %arg2[%c2_147, %c0_148] : memref<25x256xf32, #tpu.memory_space<vmem>>, vector<1x256xf32>
    %224 = vector.broadcast %223 : vector<1x256xf32> to vector<24x256xf32>
    %225 = arith.mulf %222, %224 : vector<24x256xf32>
    %c48_149 = arith.constant 48 : index
    %c0_150 = arith.constant 0 : index
    %226 = vector.load %arg10[%c48_149, %c0_150] : memref<600x256xf32, #tpu.memory_space<vmem>>, vector<24x256xf32>
    tpu.vector_store %arg10[%c48_149, %c0_150], %225 {strides = array<i32>} : memref<600x256xf32, #tpu.memory_space<vmem>>, vector<24x256xf32>,
    %c31_i32_151 = arith.constant 31 : i32
    %227 = tpu.dynamic_rotate %211 by %c31_i32_151 dim 1 : vector<24x256xf32>, i32 -> vector<24x256xf32>
    %c3_152 = arith.constant 3 : index
    %c0_153 = arith.constant 0 : index
    %228 = vector.load %arg2[%c3_152, %c0_153] : memref<25x256xf32, #tpu.memory_space<vmem>>, vector<1x256xf32>
    %229 = vector.broadcast %228 : vector<1x256xf32> to vector<24x256xf32>
    %230 = arith.mulf %227, %229 : vector<24x256xf32>
    %c72 = arith.constant 72 : index
    %c0_154 = arith.constant 0 : index
    %231 = vector.load %arg10[%c72, %c0_154] : memref<600x256xf32, #tpu.memory_space<vmem>>, vector<24x256xf32>
    tpu.vector_store %arg10[%c72, %c0_154], %230 {strides = array<i32>} : memref<600x256xf32, #tpu.memory_space<vmem>>, vector<24x256xf32>,
    %c30_i32_155 = arith.constant 30 : i32
    %232 = tpu.dynamic_rotate %211 by %c30_i32_155 dim 1 : vector<24x256xf32>, i32 -> vector<24x256xf32>
    %c4_156 = arith.constant 4 : index
    %c0_157 = arith.constant 0 : index
    %233 = vector.load %arg2[%c4_156, %c0_157] : memref<25x256xf32, #tpu.memory_space<vmem>>, vector<1x256xf32>
    %234 = vector.broadcast %233 : vector<1x256xf32> to vector<24x256xf32>
    %235 = arith.mulf %232, %234 : vector<24x256xf32>
    %c96_158 = arith.constant 96 : index
    %c0_159 = arith.constant 0 : index
    %236 = vector.load %arg10[%c96_158, %c0_159] : memref<600x256xf32, #tpu.memory_space<vmem>>, vector<24x256xf32>
    tpu.vector_store %arg10[%c96_158, %c0_159], %235 {strides = array<i32>} : memref<600x256xf32, #tpu.memory_space<vmem>>, vector<24x256xf32>,
    %c18_i32_160 = arith.constant 18 : i32
    %237 = tpu.dynamic_rotate %211 by %c18_i32_160 dim 1 : vector<24x256xf32>, i32 -> vector<24x256xf32>
    %c5_161 = arith.constant 5 : index
    %c0_162 = arith.constant 0 : index
    %238 = vector.load %arg2[%c5_161, %c0_162] : memref<25x256xf32, #tpu.memory_space<vmem>>, vector<1x256xf32>
    %239 = vector.broadcast %238 : vector<1x256xf32> to vector<24x256xf32>
    %240 = arith.mulf %237, %239 : vector<24x256xf32>
    %c120 = arith.constant 120 : index
    %c0_163 = arith.constant 0 : index
    %241 = vector.load %arg10[%c120, %c0_163] : memref<600x256xf32, #tpu.memory_space<vmem>>, vector<24x256xf32>
    tpu.vector_store %arg10[%c120, %c0_163], %240 {strides = array<i32>} : memref<600x256xf32, #tpu.memory_space<vmem>>, vector<24x256xf32>,
    %c17_i32_164 = arith.constant 17 : i32
    %242 = tpu.dynamic_rotate %211 by %c17_i32_164 dim 1 : vector<24x256xf32>, i32 -> vector<24x256xf32>
    %c6_165 = arith.constant 6 : index
    %c0_166 = arith.constant 0 : index
    %243 = vector.load %arg2[%c6_165, %c0_166] : memref<25x256xf32, #tpu.memory_space<vmem>>, vector<1x256xf32>
    %244 = vector.broadcast %243 : vector<1x256xf32> to vector<24x256xf32>
    %245 = arith.mulf %242, %244 : vector<24x256xf32>
    %c144_167 = arith.constant 144 : index
    %c0_168 = arith.constant 0 : index
    %246 = vector.load %arg10[%c144_167, %c0_168] : memref<600x256xf32, #tpu.memory_space<vmem>>, vector<24x256xf32>
    tpu.vector_store %arg10[%c144_167, %c0_168], %245 {strides = array<i32>} : memref<600x256xf32, #tpu.memory_space<vmem>>, vector<24x256xf32>,
    %c16_i32_169 = arith.constant 16 : i32
    %247 = tpu.dynamic_rotate %211 by %c16_i32_169 dim 1 : vector<24x256xf32>, i32 -> vector<24x256xf32>
    %c7_170 = arith.constant 7 : index
    %c0_171 = arith.constant 0 : index
    %248 = vector.load %arg2[%c7_170, %c0_171] : memref<25x256xf32, #tpu.memory_space<vmem>>, vector<1x256xf32>
    %249 = vector.broadcast %248 : vector<1x256xf32> to vector<24x256xf32>
    %250 = arith.mulf %247, %249 : vector<24x256xf32>
    %c168 = arith.constant 168 : index
    %c0_172 = arith.constant 0 : index
    %251 = vector.load %arg10[%c168, %c0_172] : memref<600x256xf32, #tpu.memory_space<vmem>>, vector<24x256xf32>
    tpu.vector_store %arg10[%c168, %c0_172], %250 {strides = array<i32>} : memref<600x256xf32, #tpu.memory_space<vmem>>, vector<24x256xf32>,
    %c15_i32_173 = arith.constant 15 : i32
    %252 = tpu.dynamic_rotate %211 by %c15_i32_173 dim 1 : vector<24x256xf32>, i32 -> vector<24x256xf32>
    %c8_174 = arith.constant 8 : index
    %c0_175 = arith.constant 0 : index
    %253 = vector.load %arg2[%c8_174, %c0_175] : memref<25x256xf32, #tpu.memory_space<vmem>>, vector<1x256xf32>
    %254 = vector.broadcast %253 : vector<1x256xf32> to vector<24x256xf32>
    %255 = arith.mulf %252, %254 : vector<24x256xf32>
    %c192_176 = arith.constant 192 : index
    %c0_177 = arith.constant 0 : index
    %256 = vector.load %arg10[%c192_176, %c0_177] : memref<600x256xf32, #tpu.memory_space<vmem>>, vector<24x256xf32>
    tpu.vector_store %arg10[%c192_176, %c0_177], %255 {strides = array<i32>} : memref<600x256xf32, #tpu.memory_space<vmem>>, vector<24x256xf32>,
    %c14_i32_178 = arith.constant 14 : i32
    %257 = tpu.dynamic_rotate %211 by %c14_i32_178 dim 1 : vector<24x256xf32>, i32 -> vector<24x256xf32>
    %c9_179 = arith.constant 9 : index
    %c0_180 = arith.constant 0 : index
    %258 = vector.load %arg2[%c9_179, %c0_180] : memref<25x256xf32, #tpu.memory_space<vmem>>, vector<1x256xf32>
    %259 = vector.broadcast %258 : vector<1x256xf32> to vector<24x256xf32>
    %260 = arith.mulf %257, %259 : vector<24x256xf32>
    %c216 = arith.constant 216 : index
    %c0_181 = arith.constant 0 : index
    %261 = vector.load %arg10[%c216, %c0_181] : memref<600x256xf32, #tpu.memory_space<vmem>>, vector<24x256xf32>
    tpu.vector_store %arg10[%c216, %c0_181], %260 {strides = array<i32>} : memref<600x256xf32, #tpu.memory_space<vmem>>, vector<24x256xf32>,
    %c2_i32_182 = arith.constant 2 : i32
    %262 = tpu.dynamic_rotate %211 by %c2_i32_182 dim 1 : vector<24x256xf32>, i32 -> vector<24x256xf32>
    %c10_183 = arith.constant 10 : index
    %c0_184 = arith.constant 0 : index
    %263 = vector.load %arg2[%c10_183, %c0_184] : memref<25x256xf32, #tpu.memory_space<vmem>>, vector<1x256xf32>
    %264 = vector.broadcast %263 : vector<1x256xf32> to vector<24x256xf32>
    %265 = arith.mulf %262, %264 : vector<24x256xf32>
    %c240_185 = arith.constant 240 : index
    %c0_186 = arith.constant 0 : index
    %266 = vector.load %arg10[%c240_185, %c0_186] : memref<600x256xf32, #tpu.memory_space<vmem>>, vector<24x256xf32>
    tpu.vector_store %arg10[%c240_185, %c0_186], %265 {strides = array<i32>} : memref<600x256xf32, #tpu.memory_space<vmem>>, vector<24x256xf32>,
    %c1_i32_187 = arith.constant 1 : i32
    %267 = tpu.dynamic_rotate %211 by %c1_i32_187 dim 1 : vector<24x256xf32>, i32 -> vector<24x256xf32>
    %c11_188 = arith.constant 11 : index
    %c0_189 = arith.constant 0 : index
    %268 = vector.load %arg2[%c11_188, %c0_189] : memref<25x256xf32, #tpu.memory_space<vmem>>, vector<1x256xf32>
    %269 = vector.broadcast %268 : vector<1x256xf32> to vector<24x256xf32>
    %270 = arith.mulf %267, %269 : vector<24x256xf32>
    %c264 = arith.constant 264 : index
    %c0_190 = arith.constant 0 : index
    %271 = vector.load %arg10[%c264, %c0_190] : memref<600x256xf32, #tpu.memory_space<vmem>>, vector<24x256xf32>
    tpu.vector_store %arg10[%c264, %c0_190], %270 {strides = array<i32>} : memref<600x256xf32, #tpu.memory_space<vmem>>, vector<24x256xf32>,
    %c288_191 = arith.constant 288 : index
    %c0_192 = arith.constant 0 : index
    %272 = vector.load %arg10[%c288_191, %c0_192] : memref<600x256xf32, #tpu.memory_space<vmem>>, vector<24x256xf32>
    tpu.vector_store %arg10[%c288_191, %c0_192], %211 {strides = array<i32>} : memref<600x256xf32, #tpu.memory_space<vmem>>, vector<24x256xf32>,
    %c255_i32_193 = arith.constant 255 : i32
    %273 = tpu.dynamic_rotate %211 by %c255_i32_193 dim 1 : vector<24x256xf32>, i32 -> vector<24x256xf32>
    %c13_194 = arith.constant 13 : index
    %c0_195 = arith.constant 0 : index
    %274 = vector.load %arg2[%c13_194, %c0_195] : memref<25x256xf32, #tpu.memory_space<vmem>>, vector<1x256xf32>
    %275 = vector.broadcast %274 : vector<1x256xf32> to vector<24x256xf32>
    %276 = arith.mulf %273, %275 : vector<24x256xf32>
    %c312 = arith.constant 312 : index
    %c0_196 = arith.constant 0 : index
    %277 = vector.load %arg10[%c312, %c0_196] : memref<600x256xf32, #tpu.memory_space<vmem>>, vector<24x256xf32>
    tpu.vector_store %arg10[%c312, %c0_196], %276 {strides = array<i32>} : memref<600x256xf32, #tpu.memory_space<vmem>>, vector<24x256xf32>,
    %c254_i32_197 = arith.constant 254 : i32
    %278 = tpu.dynamic_rotate %211 by %c254_i32_197 dim 1 : vector<24x256xf32>, i32 -> vector<24x256xf32>
    %c14_198 = arith.constant 14 : index
    %c0_199 = arith.constant 0 : index
    %279 = vector.load %arg2[%c14_198, %c0_199] : memref<25x256xf32, #tpu.memory_space<vmem>>, vector<1x256xf32>
    %280 = vector.broadcast %279 : vector<1x256xf32> to vector<24x256xf32>
    %281 = arith.mulf %278, %280 : vector<24x256xf32>
    %c336_200 = arith.constant 336 : index
    %c0_201 = arith.constant 0 : index
    %282 = vector.load %arg10[%c336_200, %c0_201] : memref<600x256xf32, #tpu.memory_space<vmem>>, vector<24x256xf32>
    tpu.vector_store %arg10[%c336_200, %c0_201], %281 {strides = array<i32>} : memref<600x256xf32, #tpu.memory_space<vmem>>, vector<24x256xf32>,
    %c242_i32_202 = arith.constant 242 : i32
    %283 = tpu.dynamic_rotate %211 by %c242_i32_202 dim 1 : vector<24x256xf32>, i32 -> vector<24x256xf32>
    %c15_203 = arith.constant 15 : index
    %c0_204 = arith.constant 0 : index
    %284 = vector.load %arg2[%c15_203, %c0_204] : memref<25x256xf32, #tpu.memory_space<vmem>>, vector<1x256xf32>
    %285 = vector.broadcast %284 : vector<1x256xf32> to vector<24x256xf32>
    %286 = arith.mulf %283, %285 : vector<24x256xf32>
    %c360 = arith.constant 360 : index
    %c0_205 = arith.constant 0 : index
    %287 = vector.load %arg10[%c360, %c0_205] : memref<600x256xf32, #tpu.memory_space<vmem>>, vector<24x256xf32>
    tpu.vector_store %arg10[%c360, %c0_205], %286 {strides = array<i32>} : memref<600x256xf32, #tpu.memory_space<vmem>>, vector<24x256xf32>,
    %c241_i32_206 = arith.constant 241 : i32
    %288 = tpu.dynamic_rotate %211 by %c241_i32_206 dim 1 : vector<24x256xf32>, i32 -> vector<24x256xf32>
    %c16_207 = arith.constant 16 : index
    %c0_208 = arith.constant 0 : index
    %289 = vector.load %arg2[%c16_207, %c0_208] : memref<25x256xf32, #tpu.memory_space<vmem>>, vector<1x256xf32>
    %290 = vector.broadcast %289 : vector<1x256xf32> to vector<24x256xf32>
    %291 = arith.mulf %288, %290 : vector<24x256xf32>
    %c384_209 = arith.constant 384 : index
    %c0_210 = arith.constant 0 : index
    %292 = vector.load %arg10[%c384_209, %c0_210] : memref<600x256xf32, #tpu.memory_space<vmem>>, vector<24x256xf32>
    tpu.vector_store %arg10[%c384_209, %c0_210], %291 {strides = array<i32>} : memref<600x256xf32, #tpu.memory_space<vmem>>, vector<24x256xf32>,
    %c240_i32_211 = arith.constant 240 : i32
    %293 = tpu.dynamic_rotate %211 by %c240_i32_211 dim 1 : vector<24x256xf32>, i32 -> vector<24x256xf32>
    %c17_212 = arith.constant 17 : index
    %c0_213 = arith.constant 0 : index
    %294 = vector.load %arg2[%c17_212, %c0_213] : memref<25x256xf32, #tpu.memory_space<vmem>>, vector<1x256xf32>
    %295 = vector.broadcast %294 : vector<1x256xf32> to vector<24x256xf32>
    %296 = arith.mulf %293, %295 : vector<24x256xf32>
    %c408 = arith.constant 408 : index
    %c0_214 = arith.constant 0 : index
    %297 = vector.load %arg10[%c408, %c0_214] : memref<600x256xf32, #tpu.memory_space<vmem>>, vector<24x256xf32>
    tpu.vector_store %arg10[%c408, %c0_214], %296 {strides = array<i32>} : memref<600x256xf32, #tpu.memory_space<vmem>>, vector<24x256xf32>,
    %c239_i32_215 = arith.constant 239 : i32
    %298 = tpu.dynamic_rotate %211 by %c239_i32_215 dim 1 : vector<24x256xf32>, i32 -> vector<24x256xf32>
    %c18_216 = arith.constant 18 : index
    %c0_217 = arith.constant 0 : index
    %299 = vector.load %arg2[%c18_216, %c0_217] : memref<25x256xf32, #tpu.memory_space<vmem>>, vector<1x256xf32>
    %300 = vector.broadcast %299 : vector<1x256xf32> to vector<24x256xf32>
    %301 = arith.mulf %298, %300 : vector<24x256xf32>
    %c432 = arith.constant 432 : index
    %c0_218 = arith.constant 0 : index
    %302 = vector.load %arg10[%c432, %c0_218] : memref<600x256xf32, #tpu.memory_space<vmem>>, vector<24x256xf32>
    tpu.vector_store %arg10[%c432, %c0_218], %301 {strides = array<i32>} : memref<600x256xf32, #tpu.memory_space<vmem>>, vector<24x256xf32>,
    %c238_i32_219 = arith.constant 238 : i32
    %303 = tpu.dynamic_rotate %211 by %c238_i32_219 dim 1 : vector<24x256xf32>, i32 -> vector<24x256xf32>
    %c19_220 = arith.constant 19 : index
    %c0_221 = arith.constant 0 : index
    %304 = vector.load %arg2[%c19_220, %c0_221] : memref<25x256xf32, #tpu.memory_space<vmem>>, vector<1x256xf32>
    %305 = vector.broadcast %304 : vector<1x256xf32> to vector<24x256xf32>
    %306 = arith.mulf %303, %305 : vector<24x256xf32>
    %c456 = arith.constant 456 : index
    %c0_222 = arith.constant 0 : index
    %307 = vector.load %arg10[%c456, %c0_222] : memref<600x256xf32, #tpu.memory_space<vmem>>, vector<24x256xf32>
    tpu.vector_store %arg10[%c456, %c0_222], %306 {strides = array<i32>} : memref<600x256xf32, #tpu.memory_space<vmem>>, vector<24x256xf32>,
    %c226_i32_223 = arith.constant 226 : i32
    %308 = tpu.dynamic_rotate %211 by %c226_i32_223 dim 1 : vector<24x256xf32>, i32 -> vector<24x256xf32>
    %c20_224 = arith.constant 20 : index
    %c0_225 = arith.constant 0 : index
    %309 = vector.load %arg2[%c20_224, %c0_225] : memref<25x256xf32, #tpu.memory_space<vmem>>, vector<1x256xf32>
    %310 = vector.broadcast %309 : vector<1x256xf32> to vector<24x256xf32>
    %311 = arith.mulf %308, %310 : vector<24x256xf32>
    %c480 = arith.constant 480 : index
    %c0_226 = arith.constant 0 : index
    %312 = vector.load %arg10[%c480, %c0_226] : memref<600x256xf32, #tpu.memory_space<vmem>>, vector<24x256xf32>
    tpu.vector_store %arg10[%c480, %c0_226], %311 {strides = array<i32>} : memref<600x256xf32, #tpu.memory_space<vmem>>, vector<24x256xf32>,
    %c225_i32_227 = arith.constant 225 : i32
    %313 = tpu.dynamic_rotate %211 by %c225_i32_227 dim 1 : vector<24x256xf32>, i32 -> vector<24x256xf32>
    %c21_228 = arith.constant 21 : index
    %c0_229 = arith.constant 0 : index
    %314 = vector.load %arg2[%c21_228, %c0_229] : memref<25x256xf32, #tpu.memory_space<vmem>>, vector<1x256xf32>
    %315 = vector.broadcast %314 : vector<1x256xf32> to vector<24x256xf32>
    %316 = arith.mulf %313, %315 : vector<24x256xf32>
    %c504 = arith.constant 504 : index
    %c0_230 = arith.constant 0 : index
    %317 = vector.load %arg10[%c504, %c0_230] : memref<600x256xf32, #tpu.memory_space<vmem>>, vector<24x256xf32>
    tpu.vector_store %arg10[%c504, %c0_230], %316 {strides = array<i32>} : memref<600x256xf32, #tpu.memory_space<vmem>>, vector<24x256xf32>,
    %c224_i32_231 = arith.constant 224 : i32
    %318 = tpu.dynamic_rotate %211 by %c224_i32_231 dim 1 : vector<24x256xf32>, i32 -> vector<24x256xf32>
    %c22_232 = arith.constant 22 : index
    %c0_233 = arith.constant 0 : index
    %319 = vector.load %arg2[%c22_232, %c0_233] : memref<25x256xf32, #tpu.memory_space<vmem>>, vector<1x256xf32>
    %320 = vector.broadcast %319 : vector<1x256xf32> to vector<24x256xf32>
    %321 = arith.mulf %318, %320 : vector<24x256xf32>
    %c528 = arith.constant 528 : index
    %c0_234 = arith.constant 0 : index
    %322 = vector.load %arg10[%c528, %c0_234] : memref<600x256xf32, #tpu.memory_space<vmem>>, vector<24x256xf32>
    tpu.vector_store %arg10[%c528, %c0_234], %321 {strides = array<i32>} : memref<600x256xf32, #tpu.memory_space<vmem>>, vector<24x256xf32>,
    %c223_i32_235 = arith.constant 223 : i32
    %323 = tpu.dynamic_rotate %211 by %c223_i32_235 dim 1 : vector<24x256xf32>, i32 -> vector<24x256xf32>
    %c23_236 = arith.constant 23 : index
    %c0_237 = arith.constant 0 : index
    %324 = vector.load %arg2[%c23_236, %c0_237] : memref<25x256xf32, #tpu.memory_space<vmem>>, vector<1x256xf32>
    %325 = vector.broadcast %324 : vector<1x256xf32> to vector<24x256xf32>
    %326 = arith.mulf %323, %325 : vector<24x256xf32>
    %c552 = arith.constant 552 : index
    %c0_238 = arith.constant 0 : index
    %327 = vector.load %arg10[%c552, %c0_238] : memref<600x256xf32, #tpu.memory_space<vmem>>, vector<24x256xf32>
    tpu.vector_store %arg10[%c552, %c0_238], %326 {strides = array<i32>} : memref<600x256xf32, #tpu.memory_space<vmem>>, vector<24x256xf32>,
    %c222_i32_239 = arith.constant 222 : i32
    %328 = tpu.dynamic_rotate %211 by %c222_i32_239 dim 1 : vector<24x256xf32>, i32 -> vector<24x256xf32>
    %c24_240 = arith.constant 24 : index
    %c0_241 = arith.constant 0 : index
    %329 = vector.load %arg2[%c24_240, %c0_241] : memref<25x256xf32, #tpu.memory_space<vmem>>, vector<1x256xf32>
    %330 = vector.broadcast %329 : vector<1x256xf32> to vector<24x256xf32>
    %331 = arith.mulf %328, %330 : vector<24x256xf32>
    %c576 = arith.constant 576 : index
    %c0_242 = arith.constant 0 : index
    %332 = vector.load %arg10[%c576, %c0_242] : memref<600x256xf32, #tpu.memory_space<vmem>>, vector<24x256xf32>
    tpu.vector_store %arg10[%c576, %c0_242], %331 {strides = array<i32>} : memref<600x256xf32, #tpu.memory_space<vmem>>, vector<24x256xf32>,
    %c0_243 = arith.constant 0 : index
    %c0_244 = arith.constant 0 : index
    %333 = vector.load %arg7[%c0_243, %c0_244] : memref<21x600xf32, #tpu.memory_space<vmem>>, vector<21x600xf32>
    %c0_245 = arith.constant 0 : index
    %c0_246 = arith.constant 0 : index
    %334 = vector.load %arg10[%c0_245, %c0_246] : memref<600x256xf32, #tpu.memory_space<vmem>>, vector<600x256xf32>
    %cst_247 = arith.constant dense<0.000000e+00> : vector<21x256xf32>
    %335 = tpu.matmul %333, %334, %cst_247 {dimension_numbers = #tpu.dot_dimension_numbers<[1], [0], [0], [1], [0, 0, 1, 1], [], []>} : vector<21x600xf32>, vector<600x256xf32>, vector<21x256xf32> -> vector<21x256xf32>
    %c0_248 = arith.constant 0 : index
    %c0_249 = arith.constant 0 : index
    %336 = vector.load %arg8[%c0_248, %c0_249] : memref<21x1xf32, #tpu.memory_space<vmem>>, vector<21x1xf32>
    %337 = vector.broadcast %336 : vector<21x1xf32> to vector<21x256xf32>
    %338 = arith.addf %335, %337 : vector<21x256xf32>
    %339 = math.tanh %338 : vector<21x256xf32>
    %340 = arith.index_cast %c0_i32 : i32 to index
    %c0_250 = arith.constant 0 : index
    %c0_251 = arith.constant 0 : index
    %341 = vector.load %arg9[%340, %c0_250, %c0_251] : memref<1x21x256xf32, #tpu.memory_space<vmem>>, vector<1x21x256xf32>
    %342 = vector.shape_cast %341 : vector<1x21x256xf32> to vector<21x256xf32>
    %343 = vector.shape_cast %339 : vector<21x256xf32> to vector<1x21x256xf32>
    tpu.vector_store %arg9[%340, %c0_250, %c0_251], %343 {strides = array<i32>} : memref<1x21x256xf32, #tpu.memory_space<vmem>>, vector<1x21x256xf32>,
    %c1_i32_252 = arith.constant 1 : i32
    return
  }
  func.func @transform_0(%arg0: i32) -> (i32, i32, i32) {
    %c0_i32 = arith.constant 0 : i32
    %c0_i32_0 = arith.constant 0 : i32
    %c0_i32_1 = arith.constant 0 : i32
    return %arg0, %c0_i32, %c0_i32_0 : i32, i32, i32
  }
  func.func @transform_1(%arg0: i32) -> (i32, i32) {
    %c0_i32 = arith.constant 0 : i32
    %c0_i32_0 = arith.constant 0 : i32
    %c0_i32_1 = arith.constant 0 : i32
    return %c0_i32, %c0_i32_0 : i32, i32
  }
  func.func @transform_2(%arg0: i32) -> (i32, i32) {
    %c0_i32 = arith.constant 0 : i32
    %c0_i32_0 = arith.constant 0 : i32
    %c0_i32_1 = arith.constant 0 : i32
    return %c0_i32, %c0_i32_0 : i32, i32
  }
  func.func @transform_3(%arg0: i32) -> (i32, i32) {
    %c0_i32 = arith.constant 0 : i32
    %c0_i32_0 = arith.constant 0 : i32
    %c0_i32_1 = arith.constant 0 : i32
    return %c0_i32, %c0_i32_0 : i32, i32
  }
  func.func @transform_4(%arg0: i32) -> (i32, i32) {
    %c0_i32 = arith.constant 0 : i32
    %c0_i32_0 = arith.constant 0 : i32
    %c0_i32_1 = arith.constant 0 : i32
    return %c0_i32, %c0_i32_0 : i32, i32
  }
  func.func @transform_5(%arg0: i32) -> (i32, i32) {
    %c0_i32 = arith.constant 0 : i32
    %c0_i32_0 = arith.constant 0 : i32
    %c0_i32_1 = arith.constant 0 : i32
    return %c0_i32, %c0_i32_0 : i32, i32
  }
  func.func @transform_6(%arg0: i32) -> (i32, i32) {
    %c0_i32 = arith.constant 0 : i32
    %c0_i32_0 = arith.constant 0 : i32
    %c0_i32_1 = arith.constant 0 : i32
    return %c0_i32, %c0_i32_0 : i32, i32
  }
  func.func @transform_7(%arg0: i32) -> (i32, i32) {
    %c0_i32 = arith.constant 0 : i32
    %c0_i32_0 = arith.constant 0 : i32
    %c0_i32_1 = arith.constant 0 : i32
    return %c0_i32, %c0_i32_0 : i32, i32
  }
  func.func @transform_8(%arg0: i32) -> (i32, i32, i32) {
    %c0_i32 = arith.constant 0 : i32
    %c0_i32_0 = arith.constant 0 : i32
    %c0_i32_1 = arith.constant 0 : i32
    return %arg0, %c0_i32, %c0_i32_0 : i32, i32, i32
  }
}

</mosaic_0001>

<llo_original>
// kernel: tpu_custom_call.1
$region0: #{tpu_custom_call.1}
  #allocation0 [shape = 'u32[]', space=smem, size = 0x4, offset = 0x4, fixed_abs, tag = 'smem constant byte address 0x4 - core index']
  #allocation1 [shape = 'u32[72,128]{1,0:T(1,128)}', space=vmem, size = 0x9000, scoped, tag = 'internal scratch']
  #allocation2 [shape = 'f32[600,256]{1,0:T(8,128)}', space=vmem, size = 0x96000, scoped, tag = 'scratch operand']
  %s0 = inlined_call_operand.vmem [shape: f32[2,1,256], index: 0, kind: input, shape index: {}]
  %s1 = inlined_call_operand.hbm [shape: f32[25,256], index: 1, kind: input, shape index: {}]
  %s2 = inlined_call_operand.vmem [shape: f32[16,25], index: 2, kind: input, shape index: {}]
  %s3 = inlined_call_operand.vmem [shape: f32[16,1], index: 3, kind: input, shape index: {}]
  %s4 = inlined_call_operand.hbm [shape: f32[24,400], index: 4, kind: input, shape index: {}]
  %s5 = inlined_call_operand.vmem [shape: f32[24,1], index: 5, kind: input, shape index: {}]
  %s6 = inlined_call_operand.hbm [shape: f32[21,600], index: 6, kind: input, shape index: {}]
  %s7 = inlined_call_operand.vmem [shape: f32[21,1], index: 7, kind: input, shape index: {}]
  %s8 = inlined_call_operand.vmem [shape: f32[2,21,256], index: 8, kind: output, shape index: {}]
  %s9 = sld [smem:[#allocation0]]
  $region77: #{tpu_custom_call.1} parent=0
    _
  %s11 = ssub.s32 1, %s9
  %s12 = scalar_select 0, %s11, %s9
  $region1: #{tpu_custom_call.1} parent=0
    #allocation3 [shape = 'u8[32768]{0}', space=vmem, size = 0x8000, scoped, tag = 'input window, operand 1, single buffered']
    #allocation4 [shape = 's32[2]{0}', space=sflag, size = 0x8, scoped, tag = 'scoped memory for tpu_custom_call.1']
    #allocation5 [shape = 'u8[49152]{0}', space=vmem, size = 0xc000, scoped, tag = 'input window, operand 4, single buffered']
    #allocation6 [shape = 's32[1]{0}', space=sflag, size = 0x4, scoped, tag = 'scoped memory for tpu_custom_call.1']
    #allocation7 [shape = 'u8[61440]{0}', space=vmem, size = 0xf000, scoped, tag = 'input window, operand 6, single buffered']
    %13 = vsyncpa [#allocation4], 0
    %14 = vsyncpa [#allocation6], 0
    loop: start=0, step=1, limit=4
    $region2: #{tpu_custom_call.1} parent=1 // loop_pre_header
      _
    $region3: #{tpu_custom_call.1} parent=1 // loop_header
      %s16 = sphi 0, %s20
      %p17 = scmp.ge.s32.totalorder %s16, 4
      %s26 = sphi 0, %s28
      %s29 = sphi 0, %s26
      %s30 = sphi 0, %s29
      %s46 = sphi 0, %s30
      %s50 = sphi 0, %s50
      %s52 = sphi 0, %s50
      %s53 = sphi 0, %s52
      %s67 = sphi 0, %s53
      %s71 = sphi 0, %s71
      %s73 = sphi 0, %s71
      %s74 = sphi 0, %s73
      %s88 = sphi 0, %s74
      %s92 = sphi 0, %s92
      %s94 = sphi 0, %s92
      %s95 = sphi 0, %s94
      %s109 = sphi 0, %s95
      %s113 = sphi 0, %s113
      %s115 = sphi 0, %s113
      %s116 = sphi 0, %s115
      %s130 = sphi 0, %s116
      %s134 = sphi 0, %s134
      %s136 = sphi 0, %s134
      %s137 = sphi 0, %s136
      %s151 = sphi 0, %s137
      %s155 = sphi 0, %s155
      %s157 = sphi 0, %s155
      %s158 = sphi 0, %s157
      %s172 = sphi 0, %s158
      %s176 = sphi 0, %s176
      %s178 = sphi 0, %s176
      %s179 = sphi 0, %s178
      %s193 = sphi 0, %s179
      %s199 = sphi 0, %s201
      %s202 = sphi 0, %s199
      %s203 = sphi 0, %s202
      %s219 = sphi 0, %s203
    $region4: #{tpu_custom_call.1} parent=1 // loop_header_branch
      %19 = sbr.rel (%p17) target = $region8
    $region5: #{tpu_custom_call.1} parent=1 // loop_body
      %s21 = ssub.s32 %s16, 1
      %s22 = ssub.s32 %s16, 2
      %s23 = sadd.s32 %s16, 1
      %s24 = ssub.s32 %s16, %s23
      %p25 = scmp.eq.s32.totalorder %s24, 0
      %s27 = sadd.s32 %s26, 1
      %s28 = scalar_select %p25, %s26, %s27
      %p31 = pneg %p25
      %p32 = scmp.eq.s32.totalorder %s16, 1
      %p33 = por %p31, %p32
      %p34 = scmp.ne.s32.totalorder %s26, %s29
      %p35 = scmp.eq.s32.totalorder %s16, 0
      %p36 = por %p34, %p35
      %p37 = scmp.ne.s32.totalorder %s26, %s29
      %p38 = scmp.eq.s32.totalorder %s21, 1
      %p39 = por %p37, %p38
      %p40 = scmp.ne.s32.totalorder %s29, %s30
      %p41 = scmp.eq.s32.totalorder %s21, 0
      %p42 = por %p40, %p41
      %p43 = scmp.ne.s32.totalorder %s29, %s30
      %p44 = scmp.eq.s32.totalorder %s22, 1
      %p45 = por %p43, %p44
      %p47 = scmp.ne.s32.totalorder %s30, %s46
      %p48 = scmp.eq.s32.totalorder %s22, 0
      %p49 = por %p47, %p48
      %s51 = sadd.s32 %s50, 1
      %p54 = scmp.eq.s32.totalorder %s16, 1
      %p55 = scmp.ne.s32.totalorder %s50, %s52
      %p56 = scmp.eq.s32.totalorder %s16, 0
      %p57 = por %p55, %p56
      %p58 = scmp.ne.s32.totalorder %s50, %s52
      %p59 = scmp.eq.s32.totalorder %s21, 1
      %p60 = por %p58, %p59
      %p61 = scmp.ne.s32.totalorder %s52, %s53
      %p62 = scmp.eq.s32.totalorder %s21, 0
      %p63 = por %p61, %p62
      %p64 = scmp.ne.s32.totalorder %s52, %s53
      %p65 = scmp.eq.s32.totalorder %s22, 1
      %p66 = por %p64, %p65
      %p68 = scmp.ne.s32.totalorder %s53, %s67
      %p69 = scmp.eq.s32.totalorder %s22, 0
      %p70 = por %p68, %p69
      %s72 = sadd.s32 %s71, 1
      %p75 = scmp.eq.s32.totalorder %s16, 1
      %p76 = scmp.ne.s32.totalorder %s71, %s73
      %p77 = scmp.eq.s32.totalorder %s16, 0
      %p78 = por %p76, %p77
      %p79 = scmp.ne.s32.totalorder %s71, %s73
      %p80 = scmp.eq.s32.totalorder %s21, 1
      %p81 = por %p79, %p80
      %p82 = scmp.ne.s32.totalorder %s73, %s74
      %p83 = scmp.eq.s32.totalorder %s21, 0
      %p84 = por %p82, %p83
      %p85 = scmp.ne.s32.totalorder %s73, %s74
      %p86 = scmp.eq.s32.totalorder %s22, 1
      %p87 = por %p85, %p86
      %p89 = scmp.ne.s32.totalorder %s74, %s88
      %p90 = scmp.eq.s32.totalorder %s22, 0
      %p91 = por %p89, %p90
      %s93 = sadd.s32 %s92, 1
      %p96 = scmp.eq.s32.totalorder %s16, 1
      %p97 = scmp.ne.s32.totalorder %s92, %s94
      %p98 = scmp.eq.s32.totalorder %s16, 0
      %p99 = por %p97, %p98
      %p100 = scmp.ne.s32.totalorder %s92, %s94
      %p101 = scmp.eq.s32.totalorder %s21, 1
      %p102 = por %p100, %p101
      %p103 = scmp.ne.s32.totalorder %s94, %s95
      %p104 = scmp.eq.s32.totalorder %s21, 0
      %p105 = por %p103, %p104
      %p106 = scmp.ne.s32.totalorder %s94, %s95
      %p107 = scmp.eq.s32.totalorder %s22, 1
      %p108 = por %p106, %p107
      %p110 = scmp.ne.s32.totalorder %s95, %s109
      %p111 = scmp.eq.s32.totalorder %s22, 0
      %p112 = por %p110, %p111
      %s114 = sadd.s32 %s113, 1
      %p117 = scmp.eq.s32.totalorder %s16, 1
      %p118 = scmp.ne.s32.totalorder %s113, %s115
      %p119 = scmp.eq.s32.totalorder %s16, 0
      %p120 = por %p118, %p119
      %p121 = scmp.ne.s32.totalorder %s113, %s115
      %p122 = scmp.eq.s32.totalorder %s21, 1
      %p123 = por %p121, %p122
      %p124 = scmp.ne.s32.totalorder %s115, %s116
      %p125 = scmp.eq.s32.totalorder %s21, 0
      %p126 = por %p124, %p125
      %p127 = scmp.ne.s32.totalorder %s115, %s116
      %p128 = scmp.eq.s32.totalorder %s22, 1
      %p129 = por %p127, %p128
      %p131 = scmp.ne.s32.totalorder %s116, %s130
      %p132 = scmp.eq.s32.totalorder %s22, 0
      %p133 = por %p131, %p132
      %s135 = sadd.s32 %s134, 1
      %p138 = scmp.eq.s32.totalorder %s16, 1
      %p139 = scmp.ne.s32.totalorder %s134, %s136
      %p140 = scmp.eq.s32.totalorder %s16, 0
      %p141 = por %p139, %p140
      %p142 = scmp.ne.s32.totalorder %s134, %s136
      %p143 = scmp.eq.s32.totalorder %s21, 1
      %p144 = por %p142, %p143
      %p145 = scmp.ne.s32.totalorder %s136, %s137
      %p146 = scmp.eq.s32.totalorder %s21, 0
      %p147 = por %p145, %p146
      %p148 = scmp.ne.s32.totalorder %s136, %s137
      %p149 = scmp.eq.s32.totalorder %s22, 1
      %p150 = por %p148, %p149
      %p152 = scmp.ne.s32.totalorder %s137, %s151
      %p153 = scmp.eq.s32.totalorder %s22, 0
      %p154 = por %p152, %p153
      %s156 = sadd.s32 %s155, 1
      %p159 = scmp.eq.s32.totalorder %s16, 1
      %p160 = scmp.ne.s32.totalorder %s155, %s157
      %p161 = scmp.eq.s32.totalorder %s16, 0
      %p162 = por %p160, %p161
      %p163 = scmp.ne.s32.totalorder %s155, %s157
      %p164 = scmp.eq.s32.totalorder %s21, 1
      %p165 = por %p163, %p164
      %p166 = scmp.ne.s32.totalorder %s157, %s158
      %p167 = scmp.eq.s32.totalorder %s21, 0
      %p168 = por %p166, %p167
      %p169 = scmp.ne.s32.totalorder %s157, %s158
      %p170 = scmp.eq.s32.totalorder %s22, 1
      %p171 = por %p169, %p170
      %p173 = scmp.ne.s32.totalorder %s158, %s172
      %p174 = scmp.eq.s32.totalorder %s22, 0
      %p175 = por %p173, %p174
      %s177 = sadd.s32 %s176, 1
      %p180 = scmp.eq.s32.totalorder %s16, 1
      %p181 = scmp.ne.s32.totalorder %s176, %s178
      %p182 = scmp.eq.s32.totalorder %s16, 0
      %p183 = por %p181, %p182
      %p184 = scmp.ne.s32.totalorder %s176, %s178
      %p185 = scmp.eq.s32.totalorder %s21, 1
      %p186 = por %p184, %p185
      %p187 = scmp.ne.s32.totalorder %s178, %s179
      %p188 = scmp.eq.s32.totalorder %s21, 0
      %p189 = por %p187, %p188
      %p190 = scmp.ne.s32.totalorder %s178, %s179
      %p191 = scmp.eq.s32.totalorder %s22, 1
      %p192 = por %p190, %p191
      %p194 = scmp.ne.s32.totalorder %s179, %s193
      %p195 = scmp.eq.s32.totalorder %s22, 0
      %p196 = por %p194, %p195
      %s197 = ssub.s32 %s16, %s23
      %p198 = scmp.eq.s32.totalorder %s197, 0
      %s200 = sadd.s32 %s199, 1
      %s201 = scalar_select %p198, %s199, %s200
      %p204 = pneg %p198
      %p205 = scmp.eq.s32.totalorder %s16, 1
      %p206 = por %p204, %p205
      %p207 = scmp.ne.s32.totalorder %s199, %s202
      %p208 = scmp.eq.s32.totalorder %s16, 0
      %p209 = por %p207, %p208
      %p210 = scmp.ne.s32.totalorder %s199, %s202
      %p211 = scmp.eq.s32.totalorder %s21, 1
      %p212 = por %p210, %p211
      %p213 = scmp.ne.s32.totalorder %s202, %s203
      %p214 = scmp.eq.s32.totalorder %s21, 0
      %p215 = por %p213, %p214
      %p216 = scmp.ne.s32.totalorder %s202, %s203
      %p217 = scmp.eq.s32.totalorder %s22, 1
      %p218 = por %p216, %p217
      %p220 = scmp.ne.s32.totalorder %s203, %s219
      %p221 = scmp.eq.s32.totalorder %s22, 0
      %p222 = por %p220, %p221
      %p223 = scmp.le.s32.totalorder 1, %s16
      %p224 = scmp.lt.s32.totalorder %s16, 3
      %p225 = pnand %p223, %p224
      %p226 = pneg %p225
      // Predicated region
      $region9: #{tpu_custom_call.1} parent=5 // pred_check
        _
      $region10: #{tpu_custom_call.1} parent=5 // pred_check_branch
        %228 = sbr.rel (%p225) target = $region12
      $region11: #{tpu_custom_call.1} parent=5 // pred_region
        %s229 = ssub.s32 %s16, 1
        // Predicated region
        $region13: #{tpu_custom_call.1} parent=11 // pred_check
          %p230 = pneg %p63
        $region14: #{tpu_custom_call.1} parent=11 // pred_check_branch
          %232 = sbr.rel (%p230) target = $region16
        $region15: #{tpu_custom_call.1} parent=11 // pred_region
          %234 = vsyncadd [#allocation4], 0
          %s235 = sshll.u32 %s1, 4
          %s236 = int_to_ptr.hbm [resolvable:$true] %s235
          %s237 = sshll.u32 [#allocation3], 4
          %s238 = int_to_ptr.vmem [resolvable:$true] %s237
          %243 = dma.hbm_to_vmem [thread:$0]  %s236, 1024, %s238, [#allocation4], 256, 256, 16
        $region16: #{tpu_custom_call.1} parent=11 // pred_fallthru
          _
        // Predicated region
        $region17: #{tpu_custom_call.1} parent=11 // pred_check
          %p244 = pneg %p84
        $region18: #{tpu_custom_call.1} parent=11 // pred_check_branch
          %246 = sbr.rel (%p244) target = $region20
        $region19: #{tpu_custom_call.1} parent=11 // pred_region
          _
        $region20: #{tpu_custom_call.1} parent=11 // pred_fallthru
          _
        // Predicated region
        $region21: #{tpu_custom_call.1} parent=11 // pred_check
          %p247 = pneg %p105
        $region22: #{tpu_custom_call.1} parent=11 // pred_check_branch
          %249 = sbr.rel (%p247) target = $region24
        $region23: #{tpu_custom_call.1} parent=11 // pred_region
          _
        $region24: #{tpu_custom_call.1} parent=11 // pred_fallthru
          _
        // Predicated region
        $region25: #{tpu_custom_call.1} parent=11 // pred_check
          %p250 = pneg %p126
        $region26: #{tpu_custom_call.1} parent=11 // pred_check_branch
          %252 = sbr.rel (%p250) target = $region28
        $region27: #{tpu_custom_call.1} parent=11 // pred_region
          %254 = vsyncadd [#allocation6], 0
          %s255 = sshll.u32 %s4, 4
          %s256 = int_to_ptr.hbm [resolvable:$true] %s255
          %s257 = sshll.u32 [#allocation5], 4
          %s258 = int_to_ptr.vmem [resolvable:$true] %s257
          %263 = dma.hbm_to_vmem [thread:$0]  %s256, 1536, %s258, [#allocation6], 512, 512, 32
        $region28: #{tpu_custom_call.1} parent=11 // pred_fallthru
          _
        // Predicated region
        $region29: #{tpu_custom_call.1} parent=11 // pred_check
          %p264 = pneg %p147
        $region30: #{tpu_custom_call.1} parent=11 // pred_check_branch
          %266 = sbr.rel (%p264) target = $region32
        $region31: #{tpu_custom_call.1} parent=11 // pred_region
          _
        $region32: #{tpu_custom_call.1} parent=11 // pred_fallthru
          _
        // Predicated region
        $region33: #{tpu_custom_call.1} parent=11 // pred_check
          %p267 = pneg %p168
        $region34: #{tpu_custom_call.1} parent=11 // pred_check_branch
          %269 = sbr.rel (%p267) target = $region36
        $region35: #{tpu_custom_call.1} parent=11 // pred_region
          %271 = vsyncadd [#allocation6], 0
          %s272 = sshll.u32 %s6, 4
          %s273 = int_to_ptr.hbm [resolvable:$true] %s272
          %s274 = sshll.u32 [#allocation7], 4
          %s275 = int_to_ptr.vmem [resolvable:$true] %s274
          %280 = dma.hbm_to_vmem [thread:$0]  %s273, 1920, %s275, [#allocation6], 640, 640, 40
        $region36: #{tpu_custom_call.1} parent=11 // pred_fallthru
          _
        // Predicated region
        $region37: #{tpu_custom_call.1} parent=11 // pred_check
          %p281 = pneg %p189
        $region38: #{tpu_custom_call.1} parent=11 // pred_check_branch
          %283 = sbr.rel (%p281) target = $region40
        $region39: #{tpu_custom_call.1} parent=11 // pred_region
          _
        $region40: #{tpu_custom_call.1} parent=11 // pred_fallthru
          _
      $region12: #{tpu_custom_call.1} parent=5 // pred_fallthru
        _
      %p284 = scmp.lt.s32.totalorder %s16, 2
      // Predicated region
      $region41: #{tpu_custom_call.1} parent=5 // pred_check
        %p285 = pneg %p284
      $region42: #{tpu_custom_call.1} parent=5 // pred_check_branch
        %287 = sbr.rel (%p285) target = $region44
      $region43: #{tpu_custom_call.1} parent=5 // pred_region
        // Predicated region
        $region45: #{tpu_custom_call.1} parent=43 // pred_check
          %p288 = pneg %p36
        $region46: #{tpu_custom_call.1} parent=43 // pred_check_branch
          %290 = sbr.rel (%p288) target = $region48
        $region47: #{tpu_custom_call.1} parent=43 // pred_region
          %p291 = scmp.lt.s32.totalorder %s16, 1
          %s292 = scalar_select %p291, %s16, 1
          %s293 = smul.addr %s292, 2
          %s294 = scalar_lea.vmem %s0, %s293
        $region48: #{tpu_custom_call.1} parent=43 // pred_fallthru
          _
      $region44: #{tpu_custom_call.1} parent=5 // pred_fallthru
        _
      %p295 = scmp.le.s32.totalorder 1, %s16
      %p296 = scmp.lt.s32.totalorder %s16, 3
      %p297 = pnand %p295, %p296
      %p298 = pneg %p297
      // Predicated region
      $region49: #{tpu_custom_call.1} parent=5 // pred_check
        _
      $region50: #{tpu_custom_call.1} parent=5 // pred_check_branch
        %300 = sbr.rel (%p297) target = $region52
      $region51: #{tpu_custom_call.1} parent=5 // pred_region
        %s301 = ssub.s32 %s16, 1
        // Predicated region
        $region53: #{tpu_custom_call.1} parent=51 // pred_check
          %p302 = pneg %p63
        $region54: #{tpu_custom_call.1} parent=51 // pred_check_branch
          %304 = sbr.rel (%p302) target = $region56
        $region55: #{tpu_custom_call.1} parent=51 // pred_region
          %306 = dma.done [#allocation4], 1024
        $region56: #{tpu_custom_call.1} parent=51 // pred_fallthru
          _
        // Predicated region
        $region57: #{tpu_custom_call.1} parent=51 // pred_check
          %p307 = pneg %p126
        $region58: #{tpu_custom_call.1} parent=51 // pred_check_branch
          %309 = sbr.rel (%p307) target = $region60
        $region59: #{tpu_custom_call.1} parent=51 // pred_region
          %311 = dma.done [#allocation6], 1536
        $region60: #{tpu_custom_call.1} parent=51 // pred_fallthru
          _
        // Predicated region
        $region61: #{tpu_custom_call.1} parent=51 // pred_check
          %p312 = pneg %p168
        $region62: #{tpu_custom_call.1} parent=51 // pred_check_branch
          %314 = sbr.rel (%p312) target = $region64
        $region63: #{tpu_custom_call.1} parent=51 // pred_region
          %316 = dma.done [#allocation6], 1920
        $region64: #{tpu_custom_call.1} parent=51 // pred_fallthru
          _
        %p317 = scmp.lt.s32.totalorder %s21, 1
        %s318 = scalar_select %p317, %s21, 1
        %s319 = smul.addr %s318, 2
        %s320 = scalar_lea.vmem %s0, %s319
        %p321 = pneg %p42
        %p322 = pneg %p39
        %p323 = pneg %p63
        %p324 = pneg %p60
        %p325 = pneg %p84
        %p326 = pneg %p81
        %p327 = pneg %p105
        %p328 = pneg %p102
        %p329 = pneg %p126
        %p330 = pneg %p123
        %p331 = pneg %p147
        %p332 = pneg %p144
        %p333 = pneg %p168
        %p334 = pneg %p165
        %p335 = pneg %p189
        %p336 = pneg %p186
        %p337 = pneg %p215
        %p338 = pneg %p212
        %p339 = scmp.lt.s32.totalorder %s21, 1
        %s340 = scalar_select %p339, %s21, 1
        %s341 = smul.addr %s340, 6
        %s342 = smul.addr %s341, 8
        %s343 = scalar_lea.vmem %s8, %s342
        %p344 = scmp.lt.s32.totalorder %s21, 1
        %s345 = scalar_select %p344, %s21, 1
        %s346 = smul.addr %s345, 2
        %s347 = scalar_lea.vmem %s0, %s346
        %p348 = scmp.lt.s32.totalorder %s21, 1
        %s349 = scalar_select %p348, %s21, 1
        %s350 = smul.addr %s349, 6
        %s351 = smul.addr %s350, 8
        %s352 = scalar_lea.vmem %s8, %s351
        %v353 = vld [vmem:[%s347] sm:$0x3]
        %v355 = vperm.slane %v353, 0
        %v356 = vperm.slane %v353, 1
        %359 = vrot.lane.b32.xlu0 %v355, 34
        %v360 = vpop.permute.xlu0 %359
        %361 = vrot.lane.b32.xlu0 %v356, 34
        %v362 = vpop.permute.xlu0 %361
        %v363 = vlaneseq
        %v364 = vand.u32 %v363, 127
        %vm365 = vcmp.lt.s32.totalorder %v364, 34
        %v366 = vsel %vm365, %v360, %v362
        %v367 = vsel %vm365, %v362, %v360
        %v368 = vld [vmem:[#allocation3] ss:$8 sm:$0x3]
        %v370 = vperm.slane %v368, 0
        %v371 = vperm.slane %v368, 1
        %v374 = vmul.f32 %v367, %v370
        %v375 = vmul.f32 %v366, %v371
        %376 = vrot.lane.b32.xlu0 %v355, 33
        %v377 = vpop.permute.xlu0 %376
        %378 = vrot.lane.b32.xlu0 %v356, 33
        %v379 = vpop.permute.xlu0 %378
        %vm380 = vcmp.lt.s32.totalorder %v364, 33
        %v381 = vsel %vm380, %v377, %v379
        %v382 = vsel %vm380, %v379, %v377
        %s383 = scalar_lea.vmem [#allocation3], 1
        %v384 = vld [vmem:[%s383] ss:$8 sm:$0x3]
        %v386 = vperm.slane %v384, 0
        %v387 = vperm.slane %v384, 1
        %v390 = vmul.f32 %v382, %v386
        %v391 = vmul.f32 %v381, %v387
        %392 = vrot.lane.b32.xlu0 %v355, 32
        %v393 = vpop.permute.xlu0 %392
        %394 = vrot.lane.b32.xlu0 %v356, 32
        %v395 = vpop.permute.xlu0 %394
        %vm396 = vcmp.lt.s32.totalorder %v364, 32
        %v397 = vsel %vm396, %v393, %v395
        %v398 = vsel %vm396, %v395, %v393
        %s399 = scalar_lea.vmem [#allocation3], 2
        %v400 = vld [vmem:[%s399] ss:$8 sm:$0x3]
        %v402 = vperm.slane %v400, 0
        %v403 = vperm.slane %v400, 1
        %v406 = vmul.f32 %v398, %v402
        %v407 = vmul.f32 %v397, %v403
        %408 = vrot.lane.b32.xlu0 %v355, 31
        %v409 = vpop.permute.xlu0 %408
        %410 = vrot.lane.b32.xlu0 %v356, 31
        %v411 = vpop.permute.xlu0 %410
        %vm412 = vcmp.lt.s32.totalorder %v364, 31
        %v413 = vsel %vm412, %v409, %v411
        %v414 = vsel %vm412, %v411, %v409
        %s415 = scalar_lea.vmem [#allocation3], 3
        %v416 = vld [vmem:[%s415] ss:$8 sm:$0x3]
        %v418 = vperm.slane %v416, 0
        %v419 = vperm.slane %v416, 1
        %v422 = vmul.f32 %v414, %v418
        %v423 = vmul.f32 %v413, %v419
        %424 = vrot.lane.b32.xlu0 %v355, 30
        %v425 = vpop.permute.xlu0 %424
        %426 = vrot.lane.b32.xlu0 %v356, 30
        %v427 = vpop.permute.xlu0 %426
        %vm428 = vcmp.lt.s32.totalorder %v364, 30
        %v429 = vsel %vm428, %v425, %v427
        %v430 = vsel %vm428, %v427, %v425
        %s431 = scalar_lea.vmem [#allocation3], 4
        %v432 = vld [vmem:[%s431] ss:$8 sm:$0x3]
        %v434 = vperm.slane %v432, 0
        %v435 = vperm.slane %v432, 1
        %v438 = vmul.f32 %v430, %v434
        %v439 = vmul.f32 %v429, %v435
        %440 = vrot.lane.b32.xlu0 %v355, 18
        %v441 = vpop.permute.xlu0 %440
        %442 = vrot.lane.b32.xlu0 %v356, 18
        %v443 = vpop.permute.xlu0 %442
        %vm444 = vcmp.lt.s32.totalorder %v364, 18
        %v445 = vsel %vm444, %v441, %v443
        %v446 = vsel %vm444, %v443, %v441
        %s447 = scalar_lea.vmem [#allocation3], 5
        %v448 = vld [vmem:[%s447] ss:$8 sm:$0x3]
        %v450 = vperm.slane %v448, 0
        %v451 = vperm.slane %v448, 1
        %v454 = vmul.f32 %v446, %v450
        %v455 = vmul.f32 %v445, %v451
        %456 = vrot.lane.b32.xlu0 %v355, 17
        %v457 = vpop.permute.xlu0 %456
        %458 = vrot.lane.b32.xlu0 %v356, 17
        %v459 = vpop.permute.xlu0 %458
        %vm460 = vcmp.lt.s32.totalorder %v364, 17
        %v461 = vsel %vm460, %v457, %v459
        %v462 = vsel %vm460, %v459, %v457
        %s463 = scalar_lea.vmem [#allocation3], 6
        %v464 = vld [vmem:[%s463] ss:$8 sm:$0x3]
        %v466 = vperm.slane %v464, 0
        %v467 = vperm.slane %v464, 1
        %v470 = vmul.f32 %v462, %v466
        %v471 = vmul.f32 %v461, %v467
        %472 = vrot.lane.b32.xlu0 %v355, 16
        %v473 = vpop.permute.xlu0 %472
        %474 = vrot.lane.b32.xlu0 %v356, 16
        %v475 = vpop.permute.xlu0 %474
        %vm476 = vcmp.lt.s32.totalorder %v364, 16
        %v477 = vsel %vm476, %v473, %v475
        %v478 = vsel %vm476, %v475, %v473
        %s479 = scalar_lea.vmem [#allocation3], 7
        %v480 = vld [vmem:[%s479] ss:$8 sm:$0x3]
        %v482 = vperm.slane %v480, 0
        %v483 = vperm.slane %v480, 1
        %v486 = vmul.f32 %v478, %v482
        %v487 = vmul.f32 %v477, %v483
        %488 = vrot.lane.b32.xlu0 %v355, 15
        %v489 = vpop.permute.xlu0 %488
        %490 = vrot.lane.b32.xlu0 %v356, 15
        %v491 = vpop.permute.xlu0 %490
        %vm492 = vcmp.lt.s32.totalorder %v364, 15
        %v493 = vsel %vm492, %v489, %v491
        %v494 = vsel %vm492, %v491, %v489
        %s495 = scalar_lea.vmem [#allocation3], 16
        %v496 = vld [vmem:[%s495] ss:$8 sm:$0x3]
        %v498 = vperm.slane %v496, 0
        %v499 = vperm.slane %v496, 1
        %v502 = vmul.f32 %v494, %v498
        %v503 = vmul.f32 %v493, %v499
        %504 = vrot.lane.b32.xlu0 %v355, 14
        %v505 = vpop.permute.xlu0 %504
        %506 = vrot.lane.b32.xlu0 %v356, 14
        %v507 = vpop.permute.xlu0 %506
        %vm508 = vcmp.lt.s32.totalorder %v364, 14
        %v509 = vsel %vm508, %v505, %v507
        %v510 = vsel %vm508, %v507, %v505
        %s511 = scalar_lea.vmem [#allocation3], 17
        %v512 = vld [vmem:[%s511] ss:$8 sm:$0x3]
        %v514 = vperm.slane %v512, 0
        %v515 = vperm.slane %v512, 1
        %v518 = vmul.f32 %v510, %v514
        %v519 = vmul.f32 %v509, %v515
        %520 = vrot.lane.b32.xlu0 %v355, 2
        %v521 = vpop.permute.xlu0 %520
        %522 = vrot.lane.b32.xlu0 %v356, 2
        %v523 = vpop.permute.xlu0 %522
        %vm524 = vcmp.lt.s32.totalorder %v364, 2
        %v525 = vsel %vm524, %v521, %v523
        %v526 = vsel %vm524, %v523, %v521
        %s527 = scalar_lea.vmem [#allocation3], 18
        %v528 = vld [vmem:[%s527] ss:$8 sm:$0x3]
        %v530 = vperm.slane %v528, 0
        %v531 = vperm.slane %v528, 1
        %v534 = vmul.f32 %v526, %v530
        %v535 = vmul.f32 %v525, %v531
        %536 = vrot.lane.b32.xlu0 %v355, 1
        %v537 = vpop.permute.xlu0 %536
        %538 = vrot.lane.b32.xlu0 %v356, 1
        %v539 = vpop.permute.xlu0 %538
        %vm540 = vcmp.lt.s32.totalorder %v364, 1
        %v541 = vsel %vm540, %v537, %v539
        %v542 = vsel %vm540, %v539, %v537
        %s543 = scalar_lea.vmem [#allocation3], 19
        %v544 = vld [vmem:[%s543] ss:$8 sm:$0x3]
        %v546 = vperm.slane %v544, 0
        %v547 = vperm.slane %v544, 1
        %v550 = vmul.f32 %v542, %v546
        %v551 = vmul.f32 %v541, %v547
        %552 = vrot.lane.b32.xlu0 %v355, 127
        %v553 = vpop.permute.xlu0 %552
        %554 = vrot.lane.b32.xlu0 %v356, 127
        %v555 = vpop.permute.xlu0 %554
        %vm556 = vcmp.lt.s32.totalorder %v364, 127
        %v557 = vsel %vm556, %v553, %v555
        %v558 = vsel %vm556, %v555, %v553
        %s559 = scalar_lea.vmem [#allocation3], 21
        %v560 = vld [vmem:[%s559] ss:$8 sm:$0x3]
        %v562 = vperm.slane %v560, 0
        %v563 = vperm.slane %v560, 1
        %v566 = vmul.f32 %v557, %v562
        %v567 = vmul.f32 %v558, %v563
        %568 = vrot.lane.b32.xlu0 %v355, 126
        %v569 = vpop.permute.xlu0 %568
        %570 = vrot.lane.b32.xlu0 %v356, 126
        %v571 = vpop.permute.xlu0 %570
        %vm572 = vcmp.lt.s32.totalorder %v364, 126
        %v573 = vsel %vm572, %v569, %v571
        %v574 = vsel %vm572, %v571, %v569
        %s575 = scalar_lea.vmem [#allocation3], 22
        %v576 = vld [vmem:[%s575] ss:$8 sm:$0x3]
        %v578 = vperm.slane %v576, 0
        %v579 = vperm.slane %v576, 1
        %v582 = vmul.f32 %v573, %v578
        %v583 = vmul.f32 %v574, %v579
        %584 = vrot.lane.b32.xlu0 %v355, 114
        %v585 = vpop.permute.xlu0 %584
        %586 = vrot.lane.b32.xlu0 %v356, 114
        %v587 = vpop.permute.xlu0 %586
        %vm588 = vcmp.lt.s32.totalorder %v364, 114
        %v589 = vsel %vm588, %v585, %v587
        %v590 = vsel %vm588, %v587, %v585
        %s591 = scalar_lea.vmem [#allocation3], 23
        %v592 = vld [vmem:[%s591] ss:$8 sm:$0x3]
        %v594 = vperm.slane %v592, 0
        %v595 = vperm.slane %v592, 1
        %v598 = vmul.f32 %v589, %v594
        %v599 = vmul.f32 %v590, %v595
        %600 = vrot.lane.b32.xlu0 %v355, 113
        %v601 = vpop.permute.xlu0 %600
        %602 = vrot.lane.b32.xlu0 %v356, 113
        %v603 = vpop.permute.xlu0 %602
        %vm604 = vcmp.lt.s32.totalorder %v364, 113
        %v605 = vsel %vm604, %v601, %v603
        %v606 = vsel %vm604, %v603, %v601
        %s607 = scalar_lea.vmem [#allocation3], 32
        %v608 = vld [vmem:[%s607] ss:$8 sm:$0x3]
        %v610 = vperm.slane %v608, 0
        %v611 = vperm.slane %v608, 1
        %v614 = vmul.f32 %v605, %v610
        %v615 = vmul.f32 %v606, %v611
        %616 = vrot.lane.b32.xlu0 %v355, 112
        %v617 = vpop.permute.xlu0 %616
        %618 = vrot.lane.b32.xlu0 %v356, 112
        %v619 = vpop.permute.xlu0 %618
        %vm620 = vcmp.lt.s32.totalorder %v364, 112
        %v621 = vsel %vm620, %v617, %v619
        %v622 = vsel %vm620, %v619, %v617
        %s623 = scalar_lea.vmem [#allocation3], 33
        %v624 = vld [vmem:[%s623] ss:$8 sm:$0x3]
        %v626 = vperm.slane %v624, 0
        %v627 = vperm.slane %v624, 1
        %v630 = vmul.f32 %v621, %v626
        %v631 = vmul.f32 %v622, %v627
        %632 = vrot.lane.b32.xlu0 %v355, 111
        %v633 = vpop.permute.xlu0 %632
        %634 = vrot.lane.b32.xlu0 %v356, 111
        %v635 = vpop.permute.xlu0 %634
        %vm636 = vcmp.lt.s32.totalorder %v364, 111
        %v637 = vsel %vm636, %v633, %v635
        %v638 = vsel %vm636, %v635, %v633
        %s639 = scalar_lea.vmem [#allocation3], 34
        %v640 = vld [vmem:[%s639] ss:$8 sm:$0x3]
        %v642 = vperm.slane %v640, 0
        %v643 = vperm.slane %v640, 1
        %v646 = vmul.f32 %v637, %v642
        %v647 = vmul.f32 %v638, %v643
        %648 = vrot.lane.b32.xlu0 %v355, 110
        %v649 = vpop.permute.xlu0 %648
        %650 = vrot.lane.b32.xlu0 %v356, 110
        %v651 = vpop.permute.xlu0 %650
        %vm652 = vcmp.lt.s32.totalorder %v364, 110
        %v653 = vsel %vm652, %v649, %v651
        %v654 = vsel %vm652, %v651, %v649
        %s655 = scalar_lea.vmem [#allocation3], 35
        %v656 = vld [vmem:[%s655] ss:$8 sm:$0x3]
        %v658 = vperm.slane %v656, 0
        %v659 = vperm.slane %v656, 1
        %v662 = vmul.f32 %v653, %v658
        %v663 = vmul.f32 %v654, %v659
        %664 = vrot.lane.b32.xlu0 %v355, 98
        %v665 = vpop.permute.xlu0 %664
        %666 = vrot.lane.b32.xlu0 %v356, 98
        %v667 = vpop.permute.xlu0 %666
        %vm668 = vcmp.lt.s32.totalorder %v364, 98
        %v669 = vsel %vm668, %v665, %v667
        %v670 = vsel %vm668, %v667, %v665
        %s671 = scalar_lea.vmem [#allocation3], 36
        %v672 = vld [vmem:[%s671] ss:$8 sm:$0x3]
        %v674 = vperm.slane %v672, 0
        %v675 = vperm.slane %v672, 1
        %v678 = vmul.f32 %v669, %v674
        %v679 = vmul.f32 %v670, %v675
        %680 = vrot.lane.b32.xlu0 %v355, 97
        %v681 = vpop.permute.xlu0 %680
        %682 = vrot.lane.b32.xlu0 %v356, 97
        %v683 = vpop.permute.xlu0 %682
        %vm684 = vcmp.lt.s32.totalorder %v364, 97
        %v685 = vsel %vm684, %v681, %v683
        %v686 = vsel %vm684, %v683, %v681
        %s687 = scalar_lea.vmem [#allocation3], 37
        %v688 = vld [vmem:[%s687] ss:$8 sm:$0x3]
        %v690 = vperm.slane %v688, 0
        %v691 = vperm.slane %v688, 1
        %v694 = vmul.f32 %v685, %v690
        %v695 = vmul.f32 %v686, %v691
        %696 = vrot.lane.b32.xlu0 %v355, 96
        %v697 = vpop.permute.xlu0 %696
        %698 = vrot.lane.b32.xlu0 %v356, 96
        %v699 = vpop.permute.xlu0 %698
        %vm700 = vcmp.lt.s32.totalorder %v364, 96
        %v701 = vsel %vm700, %v697, %v699
        %v702 = vsel %vm700, %v699, %v697
        %s703 = scalar_lea.vmem [#allocation3], 38
        %v704 = vld [vmem:[%s703] ss:$8 sm:$0x3]
        %v706 = vperm.slane %v704, 0
        %v707 = vperm.slane %v704, 1
        %v710 = vmul.f32 %v701, %v706
        %v711 = vmul.f32 %v702, %v707
        %712 = vrot.lane.b32.xlu0 %v355, 95
        %v713 = vpop.permute.xlu0 %712
        %714 = vrot.lane.b32.xlu0 %v356, 95
        %v715 = vpop.permute.xlu0 %714
        %vm716 = vcmp.lt.s32.totalorder %v364, 95
        %v717 = vsel %vm716, %v713, %v715
        %v718 = vsel %vm716, %v715, %v713
        %s719 = scalar_lea.vmem [#allocation3], 39
        %v720 = vld [vmem:[%s719] ss:$8 sm:$0x3]
        %v722 = vperm.slane %v720, 0
        %v723 = vperm.slane %v720, 1
        %v726 = vmul.f32 %v717, %v722
        %v727 = vmul.f32 %v718, %v723
        %728 = vrot.lane.b32.xlu0 %v355, 94
        %v729 = vpop.permute.xlu0 %728
        %730 = vrot.lane.b32.xlu0 %v356, 94
        %v731 = vpop.permute.xlu0 %730
        %vm732 = vcmp.lt.s32.totalorder %v364, 94
        %v733 = vsel %vm732, %v729, %v731
        %v734 = vsel %vm732, %v731, %v729
        %s735 = scalar_lea.vmem [#allocation3], 48
        %v736 = vld [vmem:[%s735] ss:$8 sm:$0x3]
        %v738 = vperm.slane %v736, 0
        %v739 = vperm.slane %v736, 1
        %v742 = vmul.f32 %v733, %v738
        %v743 = vmul.f32 %v734, %v739
        %v746 = vrot.slane %v390, 7
        %v747 = vrot.slane %v391, 7
        %v752 = vrot.slane %v406, 6
        %v753 = vrot.slane %v407, 6
        %v758 = vrot.slane %v422, 5
        %v759 = vrot.slane %v423, 5
        %v764 = vrot.slane %v438, 4
        %v765 = vrot.slane %v439, 4
        %v770 = vrot.slane %v454, 3
        %v771 = vrot.slane %v455, 3
        %v776 = vrot.slane %v470, 2
        %v777 = vrot.slane %v471, 2
        %v782 = vrot.slane %v486, 1
        %v783 = vrot.slane %v487, 1
        %v788 = vrot.slane %v518, 7
        %v789 = vrot.slane %v519, 7
        %v794 = vrot.slane %v534, 6
        %v795 = vrot.slane %v535, 6
        %v800 = vrot.slane %v550, 5
        %v801 = vrot.slane %v551, 5
        %v806 = vrot.slane %v566, 3
        %v807 = vrot.slane %v567, 3
        %v812 = vrot.slane %v582, 2
        %v813 = vrot.slane %v583, 2
        %v818 = vrot.slane %v598, 1
        %v819 = vrot.slane %v599, 1
        %vm822 = vcmask 1040384
        %v823 = vsel %vm822, %v374, %v746
        %v824 = vsel %vm822, %v375, %v747
        %vm825 = vcmask 1041408
        %v826 = vsel %vm825, %v823, %v752
        %v827 = vsel %vm825, %v824, %v753
        %vm828 = vcmask 1042432
        %v829 = vsel %vm828, %v826, %v758
        %v830 = vsel %vm828, %v827, %v759
        %vm831 = vcmask 1043456
        %v832 = vsel %vm831, %v829, %v764
        %v833 = vsel %vm831, %v830, %v765
        %vm834 = vcmask 1044480
        %v835 = vsel %vm834, %v832, %v770
        %v836 = vsel %vm834, %v833, %v771
        %vm837 = vcmask 1045504
        %v838 = vsel %vm837, %v835, %v776
        %v839 = vsel %vm837, %v836, %v777
        %vm840 = vcmask 1046528
        %v841 = vsel %vm840, %v838, %v782
        %v842 = vsel %vm840, %v839, %v783
        %v843 = vsel %vm822, %v502, %v788
        %v844 = vsel %vm822, %v503, %v789
        %v845 = vsel %vm825, %v843, %v794
        %v846 = vsel %vm825, %v844, %v795
        %v847 = vsel %vm828, %v845, %v800
        %v848 = vsel %vm828, %v846, %v801
        %v849 = vsel %vm831, %v847, %v355
        %v850 = vsel %vm831, %v848, %v356
        %v851 = vsel %vm834, %v849, %v806
        %v852 = vsel %vm834, %v850, %v807
        %v853 = vsel %vm837, %v851, %v812
        %v854 = vsel %vm837, %v852, %v813
        %v855 = vsel %vm840, %v853, %v818
        %v856 = vsel %vm840, %v854, %v819
        %v859 = vrot.slane %v630, 7
        %v860 = vrot.slane %v631, 7
        %v865 = vrot.slane %v646, 6
        %v866 = vrot.slane %v647, 6
        %v871 = vrot.slane %v662, 5
        %v872 = vrot.slane %v663, 5
        %v877 = vrot.slane %v678, 4
        %v878 = vrot.slane %v679, 4
        %v883 = vrot.slane %v694, 3
        %v884 = vrot.slane %v695, 3
        %v889 = vrot.slane %v710, 2
        %v890 = vrot.slane %v711, 2
        %v895 = vrot.slane %v726, 1
        %v896 = vrot.slane %v727, 1
        %v899 = vsel %vm822, %v614, %v859
        %v900 = vsel %vm822, %v615, %v860
        %v901 = vsel %vm825, %v899, %v865
        %v902 = vsel %vm825, %v900, %v866
        %v903 = vsel %vm828, %v901, %v871
        %v904 = vsel %vm828, %v902, %v872
        %v905 = vsel %vm831, %v903, %v877
        %v906 = vsel %vm831, %v904, %v878
        %v907 = vsel %vm834, %v905, %v883
        %v908 = vsel %vm834, %v906, %v884
        %v909 = vsel %vm837, %v907, %v889
        %v910 = vsel %vm837, %v908, %v890
        %v911 = vsel %vm840, %v909, %v895
        %v912 = vsel %vm840, %v910, %v896
        %v913 = vld [vmem:[%s2] sm:$0xff]
        %v914 = vld [vmem:[%s2 + $0x8] sm:$0xff]
        %v915 = vld [vmem:[%s3] sm:$0xff]
        %v916 = vld [vmem:[%s3 + $0x8] sm:$0xff]
        %918 = vset.pattern.permute.xlu0 0
        %919 = vperm.xlu0 %918, %v915
        %v920 = vpop.permute.xlu0 %919
        %923 = vset.pattern.permute.xlu0 0
        %924 = vperm.xlu0 %923, %v916
        %v925 = vpop.permute.xlu0 %924
        %vm927 = vcmask 203776
        %v929 = vsel %vm927, %v913, 0
        %v932 = vsel %vm927, %v914, 0
        %v935 = vsel %vm822, %v742, 0
        %v938 = vsel %vm822, %v743, 0
        %940 = vmatpush.msra.mxu0 0.0
        %941 = vmatpush.msra.mxu0 0.0
        %942 = vmatpush.msra.mxu0 0.0
        %943 = vmatpush.msra.mxu0 0.0
        %944 = vmatpush.msra.mxu0 0.0
        %945 = vmatpush.msra.mxu0 0.0
        %946 = vmatpush.msra.mxu0 0.0
        %947 = vmatpush.msra.mxu0 0.0
        %948 = vmatpush.msra.mxu0 0.0
        %949 = vmatpush.msra.mxu0 0.0
        %950 = vmatpush.msra.mxu0 0.0
        %951 = vmatpush.msra.mxu0 0.0
        %952 = vmatpush.msra.mxu0 %v935
        %953 = vmatpush.msra.mxu0 %v911
        %954 = vmatpush.msra.mxu0 %v855
        %955 = vmatpush.msra.mxu0 %v841
        %956 = vmatmul.f32.gmra.mxu0 %v929
        %v957 = vpop.f32.mrf.mxu0
        %v958 = vadd.f32 %v920, %v957
        %959 = vmatmul.f32.gmra.mxu0 %v932
        %v960 = vpop.f32.mrf.mxu0
        %v961 = vadd.f32 %v925, %v960
        %962 = vdwg.mxu0
        %963 = vmatpush.msra.mxu0 0.0
        %964 = vmatpush.msra.mxu0 0.0
        %965 = vmatpush.msra.mxu0 0.0
        %966 = vmatpush.msra.mxu0 0.0
        %967 = vmatpush.msra.mxu0 0.0
        %968 = vmatpush.msra.mxu0 0.0
        %969 = vmatpush.msra.mxu0 0.0
        %970 = vmatpush.msra.mxu0 0.0
        %971 = vmatpush.msra.mxu0 0.0
        %972 = vmatpush.msra.mxu0 0.0
        %973 = vmatpush.msra.mxu0 0.0
        %974 = vmatpush.msra.mxu0 0.0
        %975 = vmatpush.msra.mxu0 %v938
        %976 = vmatpush.msra.mxu0 %v912
        %977 = vmatpush.msra.mxu0 %v856
        %978 = vmatpush.msra.mxu0 %v842
        %979 = vmatmul.f32.gmra.mxu0 %v929
        %v980 = vpop.f32.mrf.mxu0
        %v981 = vadd.f32 %v920, %v980
        %982 = vmatmul.f32.gmra.mxu0 %v932
        %v983 = vpop.f32.mrf.mxu0
        %v984 = vadd.f32 %v925, %v983
        %985 = vdwg.mxu0
        %v986 = vtanh.pop %v958
        %v987 = vtanh.pop %v981
        %v988 = vtanh.pop %v961
        %v989 = vtanh.pop %v984
        %990 = vrot.lane.b32.xlu0 %v986, 34
        %v991 = vpop.permute.xlu0 %990
        %992 = vrot.lane.b32.xlu0 %v988, 34
        %v993 = vpop.permute.xlu0 %992
        %994 = vrot.lane.b32.xlu0 %v987, 34
        %v995 = vpop.permute.xlu0 %994
        %996 = vrot.lane.b32.xlu0 %v989, 34
        %v997 = vpop.permute.xlu0 %996
        %v998 = vsel %vm365, %v991, %v995
        %v999 = vsel %vm365, %v993, %v997
        %v1000 = vsel %vm365, %v995, %v991
        %v1001 = vsel %vm365, %v997, %v993
        %v1002 = vmul.f32 %v1000, %v370
        %v1003 = vmul.f32 %v998, %v371
        %v1004 = vmul.f32 %v1001, %v370
        %v1005 = vmul.f32 %v999, %v371
        %1006 = vst [vmem:[#allocation2] sm:$0xff] %v1002
        %1007 = vst [vmem:[#allocation2 + $0x8] sm:$0xff] %v1003
        %1008 = vst [vmem:[#allocation2 + $0x10] sm:$0xff] %v1004
        %1009 = vst [vmem:[#allocation2 + $0x18] sm:$0xff] %v1005
        %1010 = vrot.lane.b32.xlu0 %v986, 33
        %v1011 = vpop.permute.xlu0 %1010
        %1012 = vrot.lane.b32.xlu0 %v988, 33
        %v1013 = vpop.permute.xlu0 %1012
        %1014 = vrot.lane.b32.xlu0 %v987, 33
        %v1015 = vpop.permute.xlu0 %1014
        %1016 = vrot.lane.b32.xlu0 %v989, 33
        %v1017 = vpop.permute.xlu0 %1016
        %v1018 = vsel %vm380, %v1011, %v1015
        %v1019 = vsel %vm380, %v1013, %v1017
        %v1020 = vsel %vm380, %v1015, %v1011
        %v1021 = vsel %vm380, %v1017, %v1013
        %v1022 = vld [vmem:[%s383] ss:$8 sm:$0x3]
        %v1024 = vperm.slane %v1022, 0
        %v1025 = vperm.slane %v1022, 1
        %v1028 = vmul.f32 %v1020, %v1024
        %v1029 = vmul.f32 %v1018, %v1025
        %v1030 = vmul.f32 %v1021, %v1024
        %v1031 = vmul.f32 %v1019, %v1025
        %1032 = vst [vmem:[#allocation2 + $0x20] sm:$0xff] %v1028
        %1033 = vst [vmem:[#allocation2 + $0x28] sm:$0xff] %v1029
        %1034 = vst [vmem:[#allocation2 + $0x30] sm:$0xff] %v1030
        %1035 = vst [vmem:[#allocation2 + $0x38] sm:$0xff] %v1031
        %1036 = vrot.lane.b32.xlu0 %v986, 32
        %v1037 = vpop.permute.xlu0 %1036
        %1038 = vrot.lane.b32.xlu0 %v988, 32
        %v1039 = vpop.permute.xlu0 %1038
        %1040 = vrot.lane.b32.xlu0 %v987, 32
        %v1041 = vpop.permute.xlu0 %1040
        %1042 = vrot.lane.b32.xlu0 %v989, 32
        %v1043 = vpop.permute.xlu0 %1042
        %v1044 = vsel %vm396, %v1037, %v1041
        %v1045 = vsel %vm396, %v1039, %v1043
        %v1046 = vsel %vm396, %v1041, %v1037
        %v1047 = vsel %vm396, %v1043, %v1039
        %v1048 = vld [vmem:[%s399] ss:$8 sm:$0x3]
        %v1050 = vperm.slane %v1048, 0
        %v1051 = vperm.slane %v1048, 1
        %v1054 = vmul.f32 %v1046, %v1050
        %v1055 = vmul.f32 %v1044, %v1051
        %v1056 = vmul.f32 %v1047, %v1050
        %v1057 = vmul.f32 %v1045, %v1051
        %1058 = vst [vmem:[#allocation2 + $0x40] sm:$0xff] %v1054
        %1059 = vst [vmem:[#allocation2 + $0x48] sm:$0xff] %v1055
        %1060 = vst [vmem:[#allocation2 + $0x50] sm:$0xff] %v1056
        %1061 = vst [vmem:[#allocation2 + $0x58] sm:$0xff] %v1057
        %1062 = vrot.lane.b32.xlu0 %v986, 31
        %v1063 = vpop.permute.xlu0 %1062
        %1064 = vrot.lane.b32.xlu0 %v988, 31
        %v1065 = vpop.permute.xlu0 %1064
        %1066 = vrot.lane.b32.xlu0 %v987, 31
        %v1067 = vpop.permute.xlu0 %1066
        %1068 = vrot.lane.b32.xlu0 %v989, 31
        %v1069 = vpop.permute.xlu0 %1068
        %v1070 = vsel %vm412, %v1063, %v1067
        %v1071 = vsel %vm412, %v1065, %v1069
        %v1072 = vsel %vm412, %v1067, %v1063
        %v1073 = vsel %vm412, %v1069, %v1065
        %v1074 = vld [vmem:[%s415] ss:$8 sm:$0x3]
        %v1076 = vperm.slane %v1074, 0
        %v1077 = vperm.slane %v1074, 1
        %v1080 = vmul.f32 %v1072, %v1076
        %v1081 = vmul.f32 %v1070, %v1077
        %v1082 = vmul.f32 %v1073, %v1076
        %v1083 = vmul.f32 %v1071, %v1077
        %1084 = vst [vmem:[#allocation2 + $0x60] sm:$0xff] %v1080
        %1085 = vst [vmem:[#allocation2 + $0x68] sm:$0xff] %v1081
        %1086 = vst [vmem:[#allocation2 + $0x70] sm:$0xff] %v1082
        %1087 = vst [vmem:[#allocation2 + $0x78] sm:$0xff] %v1083
        %1088 = vrot.lane.b32.xlu0 %v986, 30
        %v1089 = vpop.permute.xlu0 %1088
        %1090 = vrot.lane.b32.xlu0 %v988, 30
        %v1091 = vpop.permute.xlu0 %1090
        %1092 = vrot.lane.b32.xlu0 %v987, 30
        %v1093 = vpop.permute.xlu0 %1092
        %1094 = vrot.lane.b32.xlu0 %v989, 30
        %v1095 = vpop.permute.xlu0 %1094
        %v1096 = vsel %vm428, %v1089, %v1093
        %v1097 = vsel %vm428, %v1091, %v1095
        %v1098 = vsel %vm428, %v1093, %v1089
        %v1099 = vsel %vm428, %v1095, %v1091
        %v1100 = vld [vmem:[%s431] ss:$8 sm:$0x3]
        %v1102 = vperm.slane %v1100, 0
        %v1103 = vperm.slane %v1100, 1
        %v1106 = vmul.f32 %v1098, %v1102
        %v1107 = vmul.f32 %v1096, %v1103
        %v1108 = vmul.f32 %v1099, %v1102
        %v1109 = vmul.f32 %v1097, %v1103
        %1110 = vst [vmem:[#allocation2 + $0x80] sm:$0xff] %v1106
        %1111 = vst [vmem:[#allocation2 + $0x88] sm:$0xff] %v1107
        %1112 = vst [vmem:[#allocation2 + $0x90] sm:$0xff] %v1108
        %1113 = vst [vmem:[#allocation2 + $0x98] sm:$0xff] %v1109
        %1114 = vrot.lane.b32.xlu0 %v986, 18
        %v1115 = vpop.permute.xlu0 %1114
        %1116 = vrot.lane.b32.xlu0 %v988, 18
        %v1117 = vpop.permute.xlu0 %1116
        %1118 = vrot.lane.b32.xlu0 %v987, 18
        %v1119 = vpop.permute.xlu0 %1118
        %1120 = vrot.lane.b32.xlu0 %v989, 18
        %v1121 = vpop.permute.xlu0 %1120
        %v1122 = vsel %vm444, %v1115, %v1119
        %v1123 = vsel %vm444, %v1117, %v1121
        %v1124 = vsel %vm444, %v1119, %v1115
        %v1125 = vsel %vm444, %v1121, %v1117
        %v1126 = vld [vmem:[%s447] ss:$8 sm:$0x3]
        %v1128 = vperm.slane %v1126, 0
        %v1129 = vperm.slane %v1126, 1
        %v1132 = vmul.f32 %v1124, %v1128
        %v1133 = vmul.f32 %v1122, %v1129
        %v1134 = vmul.f32 %v1125, %v1128
        %v1135 = vmul.f32 %v1123, %v1129
        %1136 = vst [vmem:[#allocation2 + $0xa0] sm:$0xff] %v1132
        %1137 = vst [vmem:[#allocation2 + $0xa8] sm:$0xff] %v1133
        %1138 = vst [vmem:[#allocation2 + $0xb0] sm:$0xff] %v1134
        %1139 = vst [vmem:[#allocation2 + $0xb8] sm:$0xff] %v1135
        %1140 = vrot.lane.b32.xlu0 %v986, 17
        %v1141 = vpop.permute.xlu0 %1140
        %1142 = vrot.lane.b32.xlu0 %v988, 17
        %v1143 = vpop.permute.xlu0 %1142
        %1144 = vrot.lane.b32.xlu0 %v987, 17
        %v1145 = vpop.permute.xlu0 %1144
        %1146 = vrot.lane.b32.xlu0 %v989, 17
        %v1147 = vpop.permute.xlu0 %1146
        %v1148 = vsel %vm460, %v1141, %v1145
        %v1149 = vsel %vm460, %v1143, %v1147
        %v1150 = vsel %vm460, %v1145, %v1141
        %v1151 = vsel %vm460, %v1147, %v1143
        %v1152 = vld [vmem:[%s463] ss:$8 sm:$0x3]
        %v1154 = vperm.slane %v1152, 0
        %v1155 = vperm.slane %v1152, 1
        %v1158 = vmul.f32 %v1150, %v1154
        %v1159 = vmul.f32 %v1148, %v1155
        %v1160 = vmul.f32 %v1151, %v1154
        %v1161 = vmul.f32 %v1149, %v1155
        %1162 = vst [vmem:[#allocation2 + $0xc0] sm:$0xff] %v1158
        %1163 = vst [vmem:[#allocation2 + $0xc8] sm:$0xff] %v1159
        %1164 = vst [vmem:[#allocation2 + $0xd0] sm:$0xff] %v1160
        %1165 = vst [vmem:[#allocation2 + $0xd8] sm:$0xff] %v1161
        %1166 = vrot.lane.b32.xlu0 %v986, 16
        %v1167 = vpop.permute.xlu0 %1166
        %1168 = vrot.lane.b32.xlu0 %v988, 16
        %v1169 = vpop.permute.xlu0 %1168
        %1170 = vrot.lane.b32.xlu0 %v987, 16
        %v1171 = vpop.permute.xlu0 %1170
        %1172 = vrot.lane.b32.xlu0 %v989, 16
        %v1173 = vpop.permute.xlu0 %1172
        %v1174 = vsel %vm476, %v1167, %v1171
        %v1175 = vsel %vm476, %v1169, %v1173
        %v1176 = vsel %vm476, %v1171, %v1167
        %v1177 = vsel %vm476, %v1173, %v1169
        %v1178 = vld [vmem:[%s479] ss:$8 sm:$0x3]
        %v1180 = vperm.slane %v1178, 0
        %v1181 = vperm.slane %v1178, 1
        %v1184 = vmul.f32 %v1176, %v1180
        %v1185 = vmul.f32 %v1174, %v1181
        %v1186 = vmul.f32 %v1177, %v1180
        %v1187 = vmul.f32 %v1175, %v1181
        %1188 = vst [vmem:[#allocation2 + $0xe0] sm:$0xff] %v1184
        %1189 = vst [vmem:[#allocation2 + $0xe8] sm:$0xff] %v1185
        %1190 = vst [vmem:[#allocation2 + $0xf0] sm:$0xff] %v1186
        %1191 = vst [vmem:[#allocation2 + $0xf8] sm:$0xff] %v1187
        %1192 = vrot.lane.b32.xlu0 %v986, 15
        %v1193 = vpop.permute.xlu0 %1192
        %1194 = vrot.lane.b32.xlu0 %v988, 15
        %v1195 = vpop.permute.xlu0 %1194
        %1196 = vrot.lane.b32.xlu0 %v987, 15
        %v1197 = vpop.permute.xlu0 %1196
        %1198 = vrot.lane.b32.xlu0 %v989, 15
        %v1199 = vpop.permute.xlu0 %1198
        %v1200 = vsel %vm492, %v1193, %v1197
        %v1201 = vsel %vm492, %v1195, %v1199
        %v1202 = vsel %vm492, %v1197, %v1193
        %v1203 = vsel %vm492, %v1199, %v1195
        %v1204 = vld [vmem:[%s495] ss:$8 sm:$0x3]
        %v1206 = vperm.slane %v1204, 0
        %v1207 = vperm.slane %v1204, 1
        %v1210 = vmul.f32 %v1202, %v1206
        %v1211 = vmul.f32 %v1200, %v1207
        %v1212 = vmul.f32 %v1203, %v1206
        %v1213 = vmul.f32 %v1201, %v1207
        %1214 = vst [vmem:[#allocation2 + $0x100] sm:$0xff] %v1210
        %1215 = vst [vmem:[#allocation2 + $0x108] sm:$0xff] %v1211
        %1216 = vst [vmem:[#allocation2 + $0x110] sm:$0xff] %v1212
        %1217 = vst [vmem:[#allocation2 + $0x118] sm:$0xff] %v1213
        %1218 = vrot.lane.b32.xlu0 %v986, 14
        %v1219 = vpop.permute.xlu0 %1218
        %1220 = vrot.lane.b32.xlu0 %v988, 14
        %v1221 = vpop.permute.xlu0 %1220
        %1222 = vrot.lane.b32.xlu0 %v987, 14
        %v1223 = vpop.permute.xlu0 %1222
        %1224 = vrot.lane.b32.xlu0 %v989, 14
        %v1225 = vpop.permute.xlu0 %1224
        %v1226 = vsel %vm508, %v1219, %v1223
        %v1227 = vsel %vm508, %v1221, %v1225
        %v1228 = vsel %vm508, %v1223, %v1219
        %v1229 = vsel %vm508, %v1225, %v1221
        %v1230 = vld [vmem:[%s511] ss:$8 sm:$0x3]
        %v1232 = vperm.slane %v1230, 0
        %v1233 = vperm.slane %v1230, 1
        %v1236 = vmul.f32 %v1228, %v1232
        %v1237 = vmul.f32 %v1226, %v1233
        %v1238 = vmul.f32 %v1229, %v1232
        %v1239 = vmul.f32 %v1227, %v1233
        %1240 = vst [vmem:[#allocation2 + $0x120] sm:$0xff] %v1236
        %1241 = vst [vmem:[#allocation2 + $0x128] sm:$0xff] %v1237
        %1242 = vst [vmem:[#allocation2 + $0x130] sm:$0xff] %v1238
        %1243 = vst [vmem:[#allocation2 + $0x138] sm:$0xff] %v1239
        %1244 = vrot.lane.b32.xlu0 %v986, 2
        %v1245 = vpop.permute.xlu0 %1244
        %1246 = vrot.lane.b32.xlu0 %v988, 2
        %v1247 = vpop.permute.xlu0 %1246
        %1248 = vrot.lane.b32.xlu0 %v987, 2
        %v1249 = vpop.permute.xlu0 %1248
        %1250 = vrot.lane.b32.xlu0 %v989, 2
        %v1251 = vpop.permute.xlu0 %1250
        %v1252 = vsel %vm524, %v1245, %v1249
        %v1253 = vsel %vm524, %v1247, %v1251
        %v1254 = vsel %vm524, %v1249, %v1245
        %v1255 = vsel %vm524, %v1251, %v1247
        %v1256 = vld [vmem:[%s527] ss:$8 sm:$0x3]
        %v1258 = vperm.slane %v1256, 0
        %v1259 = vperm.slane %v1256, 1
        %v1262 = vmul.f32 %v1254, %v1258
        %v1263 = vmul.f32 %v1252, %v1259
        %v1264 = vmul.f32 %v1255, %v1258
        %v1265 = vmul.f32 %v1253, %v1259
        %1266 = vst [vmem:[#allocation2 + $0x140] sm:$0xff] %v1262
        %1267 = vst [vmem:[#allocation2 + $0x148] sm:$0xff] %v1263
        %1268 = vst [vmem:[#allocation2 + $0x150] sm:$0xff] %v1264
        %1269 = vst [vmem:[#allocation2 + $0x158] sm:$0xff] %v1265
        %1270 = vrot.lane.b32.xlu0 %v986, 1
        %v1271 = vpop.permute.xlu0 %1270
        %1272 = vrot.lane.b32.xlu0 %v988, 1
        %v1273 = vpop.permute.xlu0 %1272
        %1274 = vrot.lane.b32.xlu0 %v987, 1
        %v1275 = vpop.permute.xlu0 %1274
        %1276 = vrot.lane.b32.xlu0 %v989, 1
        %v1277 = vpop.permute.xlu0 %1276
        %v1278 = vsel %vm540, %v1271, %v1275
        %v1279 = vsel %vm540, %v1273, %v1277
        %v1280 = vsel %vm540, %v1275, %v1271
        %v1281 = vsel %vm540, %v1277, %v1273
        %v1282 = vld [vmem:[%s543] ss:$8 sm:$0x3]
        %v1284 = vperm.slane %v1282, 0
        %v1285 = vperm.slane %v1282, 1
        %v1288 = vmul.f32 %v1280, %v1284
        %v1289 = vmul.f32 %v1278, %v1285
        %v1290 = vmul.f32 %v1281, %v1284
        %v1291 = vmul.f32 %v1279, %v1285
        %1292 = vst [vmem:[#allocation2 + $0x160] sm:$0xff] %v1288
        %1293 = vst [vmem:[#allocation2 + $0x168] sm:$0xff] %v1289
        %1294 = vst [vmem:[#allocation2 + $0x170] sm:$0xff] %v1290
        %1295 = vst [vmem:[#allocation2 + $0x178] sm:$0xff] %v1291
        %1296 = vst [vmem:[#allocation2 + $0x180] sm:$0xff] %v986
        %1297 = vst [vmem:[#allocation2 + $0x188] sm:$0xff] %v987
        %1298 = vst [vmem:[#allocation2 + $0x190] sm:$0xff] %v988
        %1299 = vst [vmem:[#allocation2 + $0x198] sm:$0xff] %v989
        %1300 = vrot.lane.b32.xlu0 %v986, 127
        %v1301 = vpop.permute.xlu0 %1300
        %1302 = vrot.lane.b32.xlu0 %v988, 127
        %v1303 = vpop.permute.xlu0 %1302
        %1304 = vrot.lane.b32.xlu0 %v987, 127
        %v1305 = vpop.permute.xlu0 %1304
        %1306 = vrot.lane.b32.xlu0 %v989, 127
        %v1307 = vpop.permute.xlu0 %1306
        %v1308 = vsel %vm556, %v1301, %v1305
        %v1309 = vsel %vm556, %v1303, %v1307
        %v1310 = vsel %vm556, %v1305, %v1301
        %v1311 = vsel %vm556, %v1307, %v1303
        %v1312 = vld [vmem:[%s559] ss:$8 sm:$0x3]
        %v1314 = vperm.slane %v1312, 0
        %v1315 = vperm.slane %v1312, 1
        %v1318 = vmul.f32 %v1308, %v1314
        %v1319 = vmul.f32 %v1310, %v1315
        %v1320 = vmul.f32 %v1309, %v1314
        %v1321 = vmul.f32 %v1311, %v1315
        %1322 = vst [vmem:[#allocation2 + $0x1a0] sm:$0xff] %v1318
        %1323 = vst [vmem:[#allocation2 + $0x1a8] sm:$0xff] %v1319
        %1324 = vst [vmem:[#allocation2 + $0x1b0] sm:$0xff] %v1320
        %1325 = vst [vmem:[#allocation2 + $0x1b8] sm:$0xff] %v1321
        %1326 = vrot.lane.b32.xlu0 %v986, 126
        %v1327 = vpop.permute.xlu0 %1326
        %1328 = vrot.lane.b32.xlu0 %v988, 126
        %v1329 = vpop.permute.xlu0 %1328
        %1330 = vrot.lane.b32.xlu0 %v987, 126
        %v1331 = vpop.permute.xlu0 %1330
        %1332 = vrot.lane.b32.xlu0 %v989, 126
        %v1333 = vpop.permute.xlu0 %1332
        %v1334 = vsel %vm572, %v1327, %v1331
        %v1335 = vsel %vm572, %v1329, %v1333
        %v1336 = vsel %vm572, %v1331, %v1327
        %v1337 = vsel %vm572, %v1333, %v1329
        %v1338 = vld [vmem:[%s575] ss:$8 sm:$0x3]
        %v1340 = vperm.slane %v1338, 0
        %v1341 = vperm.slane %v1338, 1
        %v1344 = vmul.f32 %v1334, %v1340
        %v1345 = vmul.f32 %v1336, %v1341
        %v1346 = vmul.f32 %v1335, %v1340
        %v1347 = vmul.f32 %v1337, %v1341
        %1348 = vst [vmem:[#allocation2 + $0x1c0] sm:$0xff] %v1344
        %1349 = vst [vmem:[#allocation2 + $0x1c8] sm:$0xff] %v1345
        %1350 = vst [vmem:[#allocation2 + $0x1d0] sm:$0xff] %v1346
        %1351 = vst [vmem:[#allocation2 + $0x1d8] sm:$0xff] %v1347
        %1352 = vrot.lane.b32.xlu0 %v986, 114
        %v1353 = vpop.permute.xlu0 %1352
        %1354 = vrot.lane.b32.xlu0 %v988, 114
        %v1355 = vpop.permute.xlu0 %1354
        %1356 = vrot.lane.b32.xlu0 %v987, 114
        %v1357 = vpop.permute.xlu0 %1356
        %1358 = vrot.lane.b32.xlu0 %v989, 114
        %v1359 = vpop.permute.xlu0 %1358
        %v1360 = vsel %vm588, %v1353, %v1357
        %v1361 = vsel %vm588, %v1355, %v1359
        %v1362 = vsel %vm588, %v1357, %v1353
        %v1363 = vsel %vm588, %v1359, %v1355
        %v1364 = vld [vmem:[%s591] ss:$8 sm:$0x3]
        %v1366 = vperm.slane %v1364, 0
        %v1367 = vperm.slane %v1364, 1
        %v1370 = vmul.f32 %v1360, %v1366
        %v1371 = vmul.f32 %v1362, %v1367
        %v1372 = vmul.f32 %v1361, %v1366
        %v1373 = vmul.f32 %v1363, %v1367
        %1374 = vst [vmem:[#allocation2 + $0x1e0] sm:$0xff] %v1370
        %1375 = vst [vmem:[#allocation2 + $0x1e8] sm:$0xff] %v1371
        %1376 = vst [vmem:[#allocation2 + $0x1f0] sm:$0xff] %v1372
        %1377 = vst [vmem:[#allocation2 + $0x1f8] sm:$0xff] %v1373
        %1378 = vrot.lane.b32.xlu0 %v986, 113
        %v1379 = vpop.permute.xlu0 %1378
        %1380 = vrot.lane.b32.xlu0 %v988, 113
        %v1381 = vpop.permute.xlu0 %1380
        %1382 = vrot.lane.b32.xlu0 %v987, 113
        %v1383 = vpop.permute.xlu0 %1382
        %1384 = vrot.lane.b32.xlu0 %v989, 113
        %v1385 = vpop.permute.xlu0 %1384
        %v1386 = vsel %vm604, %v1379, %v1383
        %v1387 = vsel %vm604, %v1381, %v1385
        %v1388 = vsel %vm604, %v1383, %v1379
        %v1389 = vsel %vm604, %v1385, %v1381
        %v1390 = vld [vmem:[%s607] ss:$8 sm:$0x3]
        %v1392 = vperm.slane %v1390, 0
        %v1393 = vperm.slane %v1390, 1
        %v1396 = vmul.f32 %v1386, %v1392
        %v1397 = vmul.f32 %v1388, %v1393
        %v1398 = vmul.f32 %v1387, %v1392
        %v1399 = vmul.f32 %v1389, %v1393
        %1400 = vst [vmem:[#allocation2 + $0x200] sm:$0xff] %v1396
        %1401 = vst [vmem:[#allocation2 + $0x208] sm:$0xff] %v1397
        %1402 = vst [vmem:[#allocation2 + $0x210] sm:$0xff] %v1398
        %1403 = vst [vmem:[#allocation2 + $0x218] sm:$0xff] %v1399
        %1404 = vrot.lane.b32.xlu0 %v986, 112
        %v1405 = vpop.permute.xlu0 %1404
        %1406 = vrot.lane.b32.xlu0 %v988, 112
        %v1407 = vpop.permute.xlu0 %1406
        %1408 = vrot.lane.b32.xlu0 %v987, 112
        %v1409 = vpop.permute.xlu0 %1408
        %1410 = vrot.lane.b32.xlu0 %v989, 112
        %v1411 = vpop.permute.xlu0 %1410
        %v1412 = vsel %vm620, %v1405, %v1409
        %v1413 = vsel %vm620, %v1407, %v1411
        %v1414 = vsel %vm620, %v1409, %v1405
        %v1415 = vsel %vm620, %v1411, %v1407
        %v1416 = vld [vmem:[%s623] ss:$8 sm:$0x3]
        %v1418 = vperm.slane %v1416, 0
        %v1419 = vperm.slane %v1416, 1
        %v1422 = vmul.f32 %v1412, %v1418
        %v1423 = vmul.f32 %v1414, %v1419
        %v1424 = vmul.f32 %v1413, %v1418
        %v1425 = vmul.f32 %v1415, %v1419
        %1426 = vst [vmem:[#allocation2 + $0x220] sm:$0xff] %v1422
        %1427 = vst [vmem:[#allocation2 + $0x228] sm:$0xff] %v1423
        %1428 = vst [vmem:[#allocation2 + $0x230] sm:$0xff] %v1424
        %1429 = vst [vmem:[#allocation2 + $0x238] sm:$0xff] %v1425
        %1430 = vrot.lane.b32.xlu0 %v986, 111
        %v1431 = vpop.permute.xlu0 %1430
        %1432 = vrot.lane.b32.xlu0 %v988, 111
        %v1433 = vpop.permute.xlu0 %1432
        %1434 = vrot.lane.b32.xlu0 %v987, 111
        %v1435 = vpop.permute.xlu0 %1434
        %1436 = vrot.lane.b32.xlu0 %v989, 111
        %v1437 = vpop.permute.xlu0 %1436
        %v1438 = vsel %vm636, %v1431, %v1435
        %v1439 = vsel %vm636, %v1433, %v1437
        %v1440 = vsel %vm636, %v1435, %v1431
        %v1441 = vsel %vm636, %v1437, %v1433
        %v1442 = vld [vmem:[%s639] ss:$8 sm:$0x3]
        %v1444 = vperm.slane %v1442, 0
        %v1445 = vperm.slane %v1442, 1
        %v1448 = vmul.f32 %v1438, %v1444
        %v1449 = vmul.f32 %v1440, %v1445
        %v1450 = vmul.f32 %v1439, %v1444
        %v1451 = vmul.f32 %v1441, %v1445
        %1452 = vst [vmem:[#allocation2 + $0x240] sm:$0xff] %v1448
        %1453 = vst [vmem:[#allocation2 + $0x248] sm:$0xff] %v1449
        %1454 = vst [vmem:[#allocation2 + $0x250] sm:$0xff] %v1450
        %1455 = vst [vmem:[#allocation2 + $0x258] sm:$0xff] %v1451
        %1456 = vrot.lane.b32.xlu0 %v986, 110
        %v1457 = vpop.permute.xlu0 %1456
        %1458 = vrot.lane.b32.xlu0 %v988, 110
        %v1459 = vpop.permute.xlu0 %1458
        %1460 = vrot.lane.b32.xlu0 %v987, 110
        %v1461 = vpop.permute.xlu0 %1460
        %1462 = vrot.lane.b32.xlu0 %v989, 110
        %v1463 = vpop.permute.xlu0 %1462
        %v1464 = vsel %vm652, %v1457, %v1461
        %v1465 = vsel %vm652, %v1459, %v1463
        %v1466 = vsel %vm652, %v1461, %v1457
        %v1467 = vsel %vm652, %v1463, %v1459
        %v1468 = vld [vmem:[%s655] ss:$8 sm:$0x3]
        %v1470 = vperm.slane %v1468, 0
        %v1471 = vperm.slane %v1468, 1
        %v1474 = vmul.f32 %v1464, %v1470
        %v1475 = vmul.f32 %v1466, %v1471
        %v1476 = vmul.f32 %v1465, %v1470
        %v1477 = vmul.f32 %v1467, %v1471
        %1478 = vst [vmem:[#allocation2 + $0x260] sm:$0xff] %v1474
        %1479 = vst [vmem:[#allocation2 + $0x268] sm:$0xff] %v1475
        %1480 = vst [vmem:[#allocation2 + $0x270] sm:$0xff] %v1476
        %1481 = vst [vmem:[#allocation2 + $0x278] sm:$0xff] %v1477
        %1482 = vrot.lane.b32.xlu0 %v986, 98
        %v1483 = vpop.permute.xlu0 %1482
        %1484 = vrot.lane.b32.xlu0 %v988, 98
        %v1485 = vpop.permute.xlu0 %1484
        %1486 = vrot.lane.b32.xlu0 %v987, 98
        %v1487 = vpop.permute.xlu0 %1486
        %1488 = vrot.lane.b32.xlu0 %v989, 98
        %v1489 = vpop.permute.xlu0 %1488
        %v1490 = vsel %vm668, %v1483, %v1487
        %v1491 = vsel %vm668, %v1485, %v1489
        %v1492 = vsel %vm668, %v1487, %v1483
        %v1493 = vsel %vm668, %v1489, %v1485
        %v1494 = vld [vmem:[%s671] ss:$8 sm:$0x3]
        %v1496 = vperm.slane %v1494, 0
        %v1497 = vperm.slane %v1494, 1
        %v1500 = vmul.f32 %v1490, %v1496
        %v1501 = vmul.f32 %v1492, %v1497
        %v1502 = vmul.f32 %v1491, %v1496
        %v1503 = vmul.f32 %v1493, %v1497
        %1504 = vst [vmem:[#allocation2 + $0x280] sm:$0xff] %v1500
        %1505 = vst [vmem:[#allocation2 + $0x288] sm:$0xff] %v1501
        %1506 = vst [vmem:[#allocation2 + $0x290] sm:$0xff] %v1502
        %1507 = vst [vmem:[#allocation2 + $0x298] sm:$0xff] %v1503
        %1508 = vrot.lane.b32.xlu0 %v986, 97
        %v1509 = vpop.permute.xlu0 %1508
        %1510 = vrot.lane.b32.xlu0 %v988, 97
        %v1511 = vpop.permute.xlu0 %1510
        %1512 = vrot.lane.b32.xlu0 %v987, 97
        %v1513 = vpop.permute.xlu0 %1512
        %1514 = vrot.lane.b32.xlu0 %v989, 97
        %v1515 = vpop.permute.xlu0 %1514
        %v1516 = vsel %vm684, %v1509, %v1513
        %v1517 = vsel %vm684, %v1511, %v1515
        %v1518 = vsel %vm684, %v1513, %v1509
        %v1519 = vsel %vm684, %v1515, %v1511
        %v1520 = vld [vmem:[%s687] ss:$8 sm:$0x3]
        %v1522 = vperm.slane %v1520, 0
        %v1523 = vperm.slane %v1520, 1
        %v1526 = vmul.f32 %v1516, %v1522
        %v1527 = vmul.f32 %v1518, %v1523
        %v1528 = vmul.f32 %v1517, %v1522
        %v1529 = vmul.f32 %v1519, %v1523
        %1530 = vst [vmem:[#allocation2 + $0x2a0] sm:$0xff] %v1526
        %1531 = vst [vmem:[#allocation2 + $0x2a8] sm:$0xff] %v1527
        %1532 = vst [vmem:[#allocation2 + $0x2b0] sm:$0xff] %v1528
        %1533 = vst [vmem:[#allocation2 + $0x2b8] sm:$0xff] %v1529
        %1534 = vrot.lane.b32.xlu0 %v986, 96
        %v1535 = vpop.permute.xlu0 %1534
        %1536 = vrot.lane.b32.xlu0 %v988, 96
        %v1537 = vpop.permute.xlu0 %1536
        %1538 = vrot.lane.b32.xlu0 %v987, 96
        %v1539 = vpop.permute.xlu0 %1538
        %1540 = vrot.lane.b32.xlu0 %v989, 96
        %v1541 = vpop.permute.xlu0 %1540
        %v1542 = vsel %vm700, %v1535, %v1539
        %v1543 = vsel %vm700, %v1537, %v1541
        %v1544 = vsel %vm700, %v1539, %v1535
        %v1545 = vsel %vm700, %v1541, %v1537
        %v1546 = vld [vmem:[%s703] ss:$8 sm:$0x3]
        %v1548 = vperm.slane %v1546, 0
        %v1549 = vperm.slane %v1546, 1
        %v1552 = vmul.f32 %v1542, %v1548
        %v1553 = vmul.f32 %v1544, %v1549
        %v1554 = vmul.f32 %v1543, %v1548
        %v1555 = vmul.f32 %v1545, %v1549
        %1556 = vst [vmem:[#allocation2 + $0x2c0] sm:$0xff] %v1552
        %1557 = vst [vmem:[#allocation2 + $0x2c8] sm:$0xff] %v1553
        %1558 = vst [vmem:[#allocation2 + $0x2d0] sm:$0xff] %v1554
        %1559 = vst [vmem:[#allocation2 + $0x2d8] sm:$0xff] %v1555
        %1560 = vrot.lane.b32.xlu0 %v986, 95
        %v1561 = vpop.permute.xlu0 %1560
        %1562 = vrot.lane.b32.xlu0 %v988, 95
        %v1563 = vpop.permute.xlu0 %1562
        %1564 = vrot.lane.b32.xlu0 %v987, 95
        %v1565 = vpop.permute.xlu0 %1564
        %1566 = vrot.lane.b32.xlu0 %v989, 95
        %v1567 = vpop.permute.xlu0 %1566
        %v1568 = vsel %vm716, %v1561, %v1565
        %v1569 = vsel %vm716, %v1563, %v1567
        %v1570 = vsel %vm716, %v1565, %v1561
        %v1571 = vsel %vm716, %v1567, %v1563
        %v1572 = vld [vmem:[%s719] ss:$8 sm:$0x3]
        %v1574 = vperm.slane %v1572, 0
        %v1575 = vperm.slane %v1572, 1
        %v1578 = vmul.f32 %v1568, %v1574
        %v1579 = vmul.f32 %v1570, %v1575
        %v1580 = vmul.f32 %v1569, %v1574
        %v1581 = vmul.f32 %v1571, %v1575
        %1582 = vst [vmem:[#allocation2 + $0x2e0] sm:$0xff] %v1578
        %1583 = vst [vmem:[#allocation2 + $0x2e8] sm:$0xff] %v1579
        %1584 = vst [vmem:[#allocation2 + $0x2f0] sm:$0xff] %v1580
        %1585 = vst [vmem:[#allocation2 + $0x2f8] sm:$0xff] %v1581
        %1586 = vrot.lane.b32.xlu0 %v986, 94
        %v1587 = vpop.permute.xlu0 %1586
        %1588 = vrot.lane.b32.xlu0 %v988, 94
        %v1589 = vpop.permute.xlu0 %1588
        %1590 = vrot.lane.b32.xlu0 %v987, 94
        %v1591 = vpop.permute.xlu0 %1590
        %1592 = vrot.lane.b32.xlu0 %v989, 94
        %v1593 = vpop.permute.xlu0 %1592
        %v1594 = vsel %vm732, %v1587, %v1591
        %v1595 = vsel %vm732, %v1589, %v1593
        %v1596 = vsel %vm732, %v1591, %v1587
        %v1597 = vsel %vm732, %v1593, %v1589
        %v1598 = vld [vmem:[%s735] ss:$8 sm:$0x3]
        %v1600 = vperm.slane %v1598, 0
        %v1601 = vperm.slane %v1598, 1
        %v1604 = vmul.f32 %v1594, %v1600
        %v1605 = vmul.f32 %v1596, %v1601
        %v1606 = vmul.f32 %v1595, %v1600
        %v1607 = vmul.f32 %v1597, %v1601
        %1608 = vst [vmem:[#allocation2 + $0x300] sm:$0xff] %v1604
        %1609 = vst [vmem:[#allocation2 + $0x308] sm:$0xff] %v1605
        %1610 = vst [vmem:[#allocation2 + $0x310] sm:$0xff] %v1606
        %1611 = vst [vmem:[#allocation2 + $0x318] sm:$0xff] %v1607
        %v1612 = vld [vmem:[#allocation5] sm:$0xff]
        %v1613 = vld [vmem:[#allocation5 + $0x8] sm:$0xff]
        %v1614 = vld [vmem:[#allocation5 + $0x10] sm:$0xff]
        %v1615 = vld [vmem:[#allocation5 + $0x18] sm:$0xff]
        %v1616 = vld [vmem:[#allocation5 + $0x20] sm:$0xff]
        %v1617 = vld [vmem:[#allocation5 + $0x28] sm:$0xff]
        %v1618 = vld [vmem:[#allocation5 + $0x30] sm:$0xff]
        %v1619 = vld [vmem:[#allocation5 + $0x38] sm:$0xff]
        %v1620 = vld [vmem:[#allocation5 + $0x40] sm:$0xff]
        %v1621 = vld [vmem:[#allocation5 + $0x48] sm:$0xff]
        %v1622 = vld [vmem:[#allocation5 + $0x50] sm:$0xff]
        %v1623 = vld [vmem:[#allocation5 + $0x58] sm:$0xff]
        %v1624 = vld [vmem:[#allocation2] sm:$0xff]
        %v1625 = vld [vmem:[#allocation2 + $0x8] sm:$0xff]
        %v1626 = vld [vmem:[#allocation2 + $0x10] sm:$0xff]
        %v1627 = vld [vmem:[#allocation2 + $0x18] sm:$0xff]
        %v1628 = vld [vmem:[#allocation2 + $0x20] sm:$0xff]
        %v1629 = vld [vmem:[#allocation2 + $0x28] sm:$0xff]
        %v1630 = vld [vmem:[#allocation2 + $0x30] sm:$0xff]
        %v1631 = vld [vmem:[#allocation2 + $0x38] sm:$0xff]
        %v1632 = vld [vmem:[#allocation2 + $0x40] sm:$0xff]
        %v1633 = vld [vmem:[#allocation2 + $0x48] sm:$0xff]
        %v1634 = vld [vmem:[#allocation2 + $0x50] sm:$0xff]
        %v1635 = vld [vmem:[#allocation2 + $0x58] sm:$0xff]
        %v1636 = vld [vmem:[#allocation2 + $0x60] sm:$0xff]
        %v1637 = vld [vmem:[#allocation2 + $0x68] sm:$0xff]
        %v1638 = vld [vmem:[#allocation2 + $0x70] sm:$0xff]
        %v1639 = vld [vmem:[#allocation2 + $0x78] sm:$0xff]
        %v1640 = vld [vmem:[#allocation2 + $0x80] sm:$0xff]
        %v1641 = vld [vmem:[#allocation2 + $0x88] sm:$0xff]
        %v1642 = vld [vmem:[#allocation2 + $0x90] sm:$0xff]
        %v1643 = vld [vmem:[#allocation2 + $0x98] sm:$0xff]
        %v1644 = vld [vmem:[#allocation2 + $0xa0] sm:$0xff]
        %v1645 = vld [vmem:[#allocation2 + $0xa8] sm:$0xff]
        %v1646 = vld [vmem:[#allocation2 + $0xb0] sm:$0xff]
        %v1647 = vld [vmem:[#allocation2 + $0xb8] sm:$0xff]
        %v1648 = vld [vmem:[#allocation2 + $0xc0] sm:$0xff]
        %v1649 = vld [vmem:[#allocation2 + $0xc8] sm:$0xff]
        %v1650 = vld [vmem:[#allocation2 + $0xd0] sm:$0xff]
        %v1651 = vld [vmem:[#allocation2 + $0xd8] sm:$0xff]
        %v1652 = vld [vmem:[#allocation2 + $0xe0] sm:$0xff]
        %v1653 = vld [vmem:[#allocation2 + $0xe8] sm:$0xff]
        %v1654 = vld [vmem:[#allocation2 + $0xf0] sm:$0xff]
        %v1655 = vld [vmem:[#allocation2 + $0xf8] sm:$0xff]
        %v1656 = vld [vmem:[#allocation2 + $0x100] sm:$0xff]
        %v1657 = vld [vmem:[#allocation2 + $0x108] sm:$0xff]
        %v1658 = vld [vmem:[#allocation2 + $0x110] sm:$0xff]
        %v1659 = vld [vmem:[#allocation2 + $0x118] sm:$0xff]
        %v1660 = vld [vmem:[#allocation2 + $0x120] sm:$0xff]
        %v1661 = vld [vmem:[#allocation2 + $0x128] sm:$0xff]
        %v1662 = vld [vmem:[#allocation2 + $0x130] sm:$0xff]
        %v1663 = vld [vmem:[#allocation2 + $0x138] sm:$0xff]
        %v1664 = vld [vmem:[#allocation2 + $0x140] sm:$0xff]
        %v1665 = vld [vmem:[#allocation2 + $0x148] sm:$0xff]
        %v1666 = vld [vmem:[#allocation2 + $0x150] sm:$0xff]
        %v1667 = vld [vmem:[#allocation2 + $0x158] sm:$0xff]
        %v1668 = vld [vmem:[#allocation2 + $0x160] sm:$0xff]
        %v1669 = vld [vmem:[#allocation2 + $0x168] sm:$0xff]
        %v1670 = vld [vmem:[#allocation2 + $0x170] sm:$0xff]
        %v1671 = vld [vmem:[#allocation2 + $0x178] sm:$0xff]
        %v1672 = vld [vmem:[#allocation2 + $0x180] sm:$0xff]
        %v1673 = vld [vmem:[#allocation2 + $0x188] sm:$0xff]
        %v1674 = vld [vmem:[#allocation2 + $0x190] sm:$0xff]
        %v1675 = vld [vmem:[#allocation2 + $0x198] sm:$0xff]
        %v1676 = vld [vmem:[#allocation2 + $0x1a0] sm:$0xff]
        %v1677 = vld [vmem:[#allocation2 + $0x1a8] sm:$0xff]
        %v1678 = vld [vmem:[#allocation2 + $0x1b0] sm:$0xff]
        %v1679 = vld [vmem:[#allocation2 + $0x1b8] sm:$0xff]
        %v1680 = vld [vmem:[#allocation2 + $0x1c0] sm:$0xff]
        %v1681 = vld [vmem:[#allocation2 + $0x1c8] sm:$0xff]
        %v1682 = vld [vmem:[#allocation2 + $0x1d0] sm:$0xff]
        %v1683 = vld [vmem:[#allocation2 + $0x1d8] sm:$0xff]
        %v1684 = vld [vmem:[#allocation2 + $0x1e0] sm:$0xff]
        %v1685 = vld [vmem:[#allocation2 + $0x1e8] sm:$0xff]
        %v1686 = vld [vmem:[#allocation2 + $0x1f0] sm:$0xff]
        %v1687 = vld [vmem:[#allocation2 + $0x1f8] sm:$0xff]
        %v1688 = vld [vmem:[#allocation2 + $0x200] sm:$0xff]
        %v1689 = vld [vmem:[#allocation2 + $0x208] sm:$0xff]
        %v1690 = vld [vmem:[#allocation2 + $0x210] sm:$0xff]
        %v1691 = vld [vmem:[#allocation2 + $0x218] sm:$0xff]
        %v1692 = vld [vmem:[#allocation2 + $0x220] sm:$0xff]
        %v1693 = vld [vmem:[#allocation2 + $0x228] sm:$0xff]
        %v1694 = vld [vmem:[#allocation2 + $0x230] sm:$0xff]
        %v1695 = vld [vmem:[#allocation2 + $0x238] sm:$0xff]
        %v1696 = vld [vmem:[#allocation2 + $0x240] sm:$0xff]
        %v1697 = vld [vmem:[#allocation2 + $0x248] sm:$0xff]
        %v1698 = vld [vmem:[#allocation2 + $0x250] sm:$0xff]
        %v1699 = vld [vmem:[#allocation2 + $0x258] sm:$0xff]
        %v1700 = vld [vmem:[#allocation2 + $0x260] sm:$0xff]
        %v1701 = vld [vmem:[#allocation2 + $0x268] sm:$0xff]
        %v1702 = vld [vmem:[#allocation2 + $0x270] sm:$0xff]
        %v1703 = vld [vmem:[#allocation2 + $0x278] sm:$0xff]
        %v1704 = vld [vmem:[#allocation2 + $0x280] sm:$0xff]
        %v1705 = vld [vmem:[#allocation2 + $0x288] sm:$0xff]
        %v1706 = vld [vmem:[#allocation2 + $0x290] sm:$0xff]
        %v1707 = vld [vmem:[#allocation2 + $0x298] sm:$0xff]
        %v1708 = vld [vmem:[#allocation2 + $0x2a0] sm:$0xff]
        %v1709 = vld [vmem:[#allocation2 + $0x2a8] sm:$0xff]
        %v1710 = vld [vmem:[#allocation2 + $0x2b0] sm:$0xff]
        %v1711 = vld [vmem:[#allocation2 + $0x2b8] sm:$0xff]
        %v1712 = vld [vmem:[#allocation2 + $0x2c0] sm:$0xff]
        %v1713 = vld [vmem:[#allocation2 + $0x2c8] sm:$0xff]
        %v1714 = vld [vmem:[#allocation2 + $0x2d0] sm:$0xff]
        %v1715 = vld [vmem:[#allocation2 + $0x2d8] sm:$0xff]
        %v1716 = vld [vmem:[#allocation2 + $0x2e0] sm:$0xff]
        %v1717 = vld [vmem:[#allocation2 + $0x2e8] sm:$0xff]
        %v1718 = vld [vmem:[#allocation2 + $0x2f0] sm:$0xff]
        %v1719 = vld [vmem:[#allocation2 + $0x2f8] sm:$0xff]
        %v1720 = vld [vmem:[#allocation2 + $0x300] sm:$0xff]
        %v1721 = vld [vmem:[#allocation2 + $0x308] sm:$0xff]
        %v1722 = vld [vmem:[#allocation2 + $0x310] sm:$0xff]
        %v1723 = vld [vmem:[#allocation2 + $0x318] sm:$0xff]
        %v1724 = vld [vmem:[%s5] sm:$0xff]
        %v1725 = vld [vmem:[%s5 + $0x8] sm:$0xff]
        %v1726 = vld [vmem:[%s5 + $0x10] sm:$0xff]
        %1728 = vset.pattern.permute.xlu0 0
        %1729 = vperm.xlu0 %1728, %v1724
        %v1730 = vpop.permute.xlu0 %1729
        %1733 = vset.pattern.permute.xlu0 0
        %1734 = vperm.xlu0 %1733, %v1725
        %v1735 = vpop.permute.xlu0 %1734
        %1738 = vset.pattern.permute.xlu0 0
        %1739 = vperm.xlu0 %1738, %v1726
        %v1740 = vpop.permute.xlu0 %1739
        %vm1742 = vcmask 130048
        %v1744 = vsel %vm1742, %v1615, 0
        %v1747 = vsel %vm1742, %v1619, 0
        %v1750 = vsel %vm1742, %v1623, 0
        %1752 = vmatpush.msra.mxu0 %v1654
        %1753 = vmatpush.msra.mxu0 %v1652
        %1754 = vmatpush.msra.mxu0 %v1650
        %1755 = vmatpush.msra.mxu0 %v1648
        %1756 = vmatpush.msra.mxu0 %v1646
        %1757 = vmatpush.msra.mxu0 %v1644
        %1758 = vmatpush.msra.mxu0 %v1642
        %1759 = vmatpush.msra.mxu0 %v1640
        %1760 = vmatpush.msra.mxu0 %v1638
        %1761 = vmatpush.msra.mxu0 %v1636
        %1762 = vmatpush.msra.mxu0 %v1634
        %1763 = vmatpush.msra.mxu0 %v1632
        %1764 = vmatpush.msra.mxu0 %v1630
        %1765 = vmatpush.msra.mxu0 %v1628
        %1766 = vmatpush.msra.mxu0 %v1626
        %1767 = vmatpush.msra.mxu0 %v1624
        %1768 = vmatmul.f32.gmra.mxu0 %v1612
        %v1769 = vpop.f32.mrf.mxu0
        %v1770 = vadd.f32 %v1730, %v1769
        %1771 = vmatmul.f32.gmra.mxu0 %v1616
        %v1772 = vpop.f32.mrf.mxu0
        %v1773 = vadd.f32 %v1735, %v1772
        %1774 = vmatmul.f32.gmra.mxu0 %v1620
        %v1775 = vpop.f32.mrf.mxu0
        %v1776 = vadd.f32 %v1740, %v1775
        %1777 = vdwg.mxu0
        %1778 = vmatpush.msra.mxu0 %v1686
        %1779 = vmatpush.msra.mxu0 %v1684
        %1780 = vmatpush.msra.mxu0 %v1682
        %1781 = vmatpush.msra.mxu0 %v1680
        %1782 = vmatpush.msra.mxu0 %v1678
        %1783 = vmatpush.msra.mxu0 %v1676
        %1784 = vmatpush.msra.mxu0 %v1674
        %1785 = vmatpush.msra.mxu0 %v1672
        %1786 = vmatpush.msra.mxu0 %v1670
        %1787 = vmatpush.msra.mxu0 %v1668
        %1788 = vmatpush.msra.mxu0 %v1666
        %1789 = vmatpush.msra.mxu0 %v1664
        %1790 = vmatpush.msra.mxu0 %v1662
        %1791 = vmatpush.msra.mxu0 %v1660
        %1792 = vmatpush.msra.mxu0 %v1658
        %1793 = vmatpush.msra.mxu0 %v1656
        %1794 = vmatmul.f32.gmra.mxu0 %v1613
        %v1795 = vpop.f32.mrf.mxu0
        %v1796 = vadd.f32 %v1770, %v1795
        %1797 = vmatmul.f32.gmra.mxu0 %v1617
        %v1798 = vpop.f32.mrf.mxu0
        %v1799 = vadd.f32 %v1773, %v1798
        %1800 = vmatmul.f32.gmra.mxu0 %v1621
        %v1801 = vpop.f32.mrf.mxu0
        %v1802 = vadd.f32 %v1776, %v1801
        %1803 = vdwg.mxu0
        %1804 = vmatpush.msra.mxu0 %v1718
        %1805 = vmatpush.msra.mxu0 %v1716
        %1806 = vmatpush.msra.mxu0 %v1714
        %1807 = vmatpush.msra.mxu0 %v1712
        %1808 = vmatpush.msra.mxu0 %v1710
        %1809 = vmatpush.msra.mxu0 %v1708
        %1810 = vmatpush.msra.mxu0 %v1706
        %1811 = vmatpush.msra.mxu0 %v1704
        %1812 = vmatpush.msra.mxu0 %v1702
        %1813 = vmatpush.msra.mxu0 %v1700
        %1814 = vmatpush.msra.mxu0 %v1698
        %1815 = vmatpush.msra.mxu0 %v1696
        %1816 = vmatpush.msra.mxu0 %v1694
        %1817 = vmatpush.msra.mxu0 %v1692
        %1818 = vmatpush.msra.mxu0 %v1690
        %1819 = vmatpush.msra.mxu0 %v1688
        %1820 = vmatmul.f32.gmra.mxu0 %v1614
        %v1821 = vpop.f32.mrf.mxu0
        %v1822 = vadd.f32 %v1796, %v1821
        %1823 = vmatmul.f32.gmra.mxu0 %v1618
        %v1824 = vpop.f32.mrf.mxu0
        %v1825 = vadd.f32 %v1799, %v1824
        %1826 = vmatmul.f32.gmra.mxu0 %v1622
        %v1827 = vpop.f32.mrf.mxu0
        %v1828 = vadd.f32 %v1802, %v1827
        %1829 = vdwg.mxu0
        %1830 = vmatpush.msra.mxu0 0.0
        %1831 = vmatpush.msra.mxu0 0.0
        %1832 = vmatpush.msra.mxu0 0.0
        %1833 = vmatpush.msra.mxu0 0.0
        %1834 = vmatpush.msra.mxu0 0.0
        %1835 = vmatpush.msra.mxu0 0.0
        %1836 = vmatpush.msra.mxu0 0.0
        %1837 = vmatpush.msra.mxu0 0.0
        %1838 = vmatpush.msra.mxu0 0.0
        %1839 = vmatpush.msra.mxu0 0.0
        %1840 = vmatpush.msra.mxu0 0.0
        %1841 = vmatpush.msra.mxu0 0.0
        %1842 = vmatpush.msra.mxu0 0.0
        %1843 = vmatpush.msra.mxu0 0.0
        %1844 = vmatpush.msra.mxu0 %v1722
        %1845 = vmatpush.msra.mxu0 %v1720
        %1846 = vmatmul.f32.gmra.mxu0 %v1744
        %v1847 = vpop.f32.mrf.mxu0
        %v1848 = vadd.f32 %v1822, %v1847
        %1849 = vmatmul.f32.gmra.mxu0 %v1747
        %v1850 = vpop.f32.mrf.mxu0
        %v1851 = vadd.f32 %v1825, %v1850
        %1852 = vmatmul.f32.gmra.mxu0 %v1750
        %v1853 = vpop.f32.mrf.mxu0
        %v1854 = vadd.f32 %v1828, %v1853
        %1855 = vdwg.mxu0
        %1856 = vmatpush.msra.mxu0 %v1655
        %1857 = vmatpush.msra.mxu0 %v1653
        %1858 = vmatpush.msra.mxu0 %v1651
        %1859 = vmatpush.msra.mxu0 %v1649
        %1860 = vmatpush.msra.mxu0 %v1647
        %1861 = vmatpush.msra.mxu0 %v1645
        %1862 = vmatpush.msra.mxu0 %v1643
        %1863 = vmatpush.msra.mxu0 %v1641
        %1864 = vmatpush.msra.mxu0 %v1639
        %1865 = vmatpush.msra.mxu0 %v1637
        %1866 = vmatpush.msra.mxu0 %v1635
        %1867 = vmatpush.msra.mxu0 %v1633
        %1868 = vmatpush.msra.mxu0 %v1631
        %1869 = vmatpush.msra.mxu0 %v1629
        %1870 = vmatpush.msra.mxu0 %v1627
        %1871 = vmatpush.msra.mxu0 %v1625
        %1872 = vmatmul.f32.gmra.mxu0 %v1612
        %v1873 = vpop.f32.mrf.mxu0
        %v1874 = vadd.f32 %v1730, %v1873
        %1875 = vmatmul.f32.gmra.mxu0 %v1616
        %v1876 = vpop.f32.mrf.mxu0
        %v1877 = vadd.f32 %v1735, %v1876
        %1878 = vmatmul.f32.gmra.mxu0 %v1620
        %v1879 = vpop.f32.mrf.mxu0
        %v1880 = vadd.f32 %v1740, %v1879
        %1881 = vdwg.mxu0
        %1882 = vmatpush.msra.mxu0 %v1687
        %1883 = vmatpush.msra.mxu0 %v1685
        %1884 = vmatpush.msra.mxu0 %v1683
        %1885 = vmatpush.msra.mxu0 %v1681
        %1886 = vmatpush.msra.mxu0 %v1679
        %1887 = vmatpush.msra.mxu0 %v1677
        %1888 = vmatpush.msra.mxu0 %v1675
        %1889 = vmatpush.msra.mxu0 %v1673
        %1890 = vmatpush.msra.mxu0 %v1671
        %1891 = vmatpush.msra.mxu0 %v1669
        %1892 = vmatpush.msra.mxu0 %v1667
        %1893 = vmatpush.msra.mxu0 %v1665
        %1894 = vmatpush.msra.mxu0 %v1663
        %1895 = vmatpush.msra.mxu0 %v1661
        %1896 = vmatpush.msra.mxu0 %v1659
        %1897 = vmatpush.msra.mxu0 %v1657
        %1898 = vmatmul.f32.gmra.mxu0 %v1613
        %v1899 = vpop.f32.mrf.mxu0
        %v1900 = vadd.f32 %v1874, %v1899
        %1901 = vmatmul.f32.gmra.mxu0 %v1617
        %v1902 = vpop.f32.mrf.mxu0
        %v1903 = vadd.f32 %v1877, %v1902
        %1904 = vmatmul.f32.gmra.mxu0 %v1621
        %v1905 = vpop.f32.mrf.mxu0
        %v1906 = vadd.f32 %v1880, %v1905
        %1907 = vdwg.mxu0
        %1908 = vmatpush.msra.mxu0 %v1719
        %1909 = vmatpush.msra.mxu0 %v1717
        %1910 = vmatpush.msra.mxu0 %v1715
        %1911 = vmatpush.msra.mxu0 %v1713
        %1912 = vmatpush.msra.mxu0 %v1711
        %1913 = vmatpush.msra.mxu0 %v1709
        %1914 = vmatpush.msra.mxu0 %v1707
        %1915 = vmatpush.msra.mxu0 %v1705
        %1916 = vmatpush.msra.mxu0 %v1703
        %1917 = vmatpush.msra.mxu0 %v1701
        %1918 = vmatpush.msra.mxu0 %v1699
        %1919 = vmatpush.msra.mxu0 %v1697
        %1920 = vmatpush.msra.mxu0 %v1695
        %1921 = vmatpush.msra.mxu0 %v1693
        %1922 = vmatpush.msra.mxu0 %v1691
        %1923 = vmatpush.msra.mxu0 %v1689
        %1924 = vmatmul.f32.gmra.mxu0 %v1614
        %v1925 = vpop.f32.mrf.mxu0
        %v1926 = vadd.f32 %v1900, %v1925
        %1927 = vmatmul.f32.gmra.mxu0 %v1618
        %v1928 = vpop.f32.mrf.mxu0
        %v1929 = vadd.f32 %v1903, %v1928
        %1930 = vmatmul.f32.gmra.mxu0 %v1622
        %v1931 = vpop.f32.mrf.mxu0
        %v1932 = vadd.f32 %v1906, %v1931
        %1933 = vdwg.mxu0
        %1934 = vmatpush.msra.mxu0 0.0
        %1935 = vmatpush.msra.mxu0 0.0
        %1936 = vmatpush.msra.mxu0 0.0
        %1937 = vmatpush.msra.mxu0 0.0
        %1938 = vmatpush.msra.mxu0 0.0
        %1939 = vmatpush.msra.mxu0 0.0
        %1940 = vmatpush.msra.mxu0 0.0
        %1941 = vmatpush.msra.mxu0 0.0
        %1942 = vmatpush.msra.mxu0 0.0
        %1943 = vmatpush.msra.mxu0 0.0
        %1944 = vmatpush.msra.mxu0 0.0
        %1945 = vmatpush.msra.mxu0 0.0
        %1946 = vmatpush.msra.mxu0 0.0
        %1947 = vmatpush.msra.mxu0 0.0
        %1948 = vmatpush.msra.mxu0 %v1723
        %1949 = vmatpush.msra.mxu0 %v1721
        %1950 = vmatmul.f32.gmra.mxu0 %v1744
        %v1951 = vpop.f32.mrf.mxu0
        %v1952 = vadd.f32 %v1926, %v1951
        %1953 = vmatmul.f32.gmra.mxu0 %v1747
        %v1954 = vpop.f32.mrf.mxu0
        %v1955 = vadd.f32 %v1929, %v1954
        %1956 = vmatmul.f32.gmra.mxu0 %v1750
        %v1957 = vpop.f32.mrf.mxu0
        %v1958 = vadd.f32 %v1932, %v1957
        %1959 = vdwg.mxu0
        %v1960 = vtanh.pop %v1848
        %v1961 = vtanh.pop %v1952
        %v1962 = vtanh.pop %v1851
        %v1963 = vtanh.pop %v1955
        %v1964 = vtanh.pop %v1854
        %v1965 = vtanh.pop %v1958
        %1966 = vrot.lane.b32.xlu0 %v1960, 34
        %v1967 = vpop.permute.xlu0 %1966
        %1968 = vrot.lane.b32.xlu0 %v1962, 34
        %v1969 = vpop.permute.xlu0 %1968
        %1970 = vrot.lane.b32.xlu0 %v1964, 34
        %v1971 = vpop.permute.xlu0 %1970
        %1972 = vrot.lane.b32.xlu0 %v1961, 34
        %v1973 = vpop.permute.xlu0 %1972
        %1974 = vrot.lane.b32.xlu0 %v1963, 34
        %v1975 = vpop.permute.xlu0 %1974
        %1976 = vrot.lane.b32.xlu0 %v1965, 34
        %v1977 = vpop.permute.xlu0 %1976
        %v1978 = vsel %vm365, %v1967, %v1973
        %v1979 = vsel %vm365, %v1969, %v1975
        %v1980 = vsel %vm365, %v1971, %v1977
        %v1981 = vsel %vm365, %v1973, %v1967
        %v1982 = vsel %vm365, %v1975, %v1969
        %v1983 = vsel %vm365, %v1977, %v1971
        %v1984 = vld [vmem:[#allocation3] ss:$8 sm:$0x3]
        %v1986 = vperm.slane %v1984, 0
        %v1987 = vperm.slane %v1984, 1
        %v1990 = vmul.f32 %v1981, %v1986
        %v1991 = vmul.f32 %v1978, %v1987
        %v1992 = vmul.f32 %v1982, %v1986
        %v1993 = vmul.f32 %v1979, %v1987
        %v1994 = vmul.f32 %v1983, %v1986
        %v1995 = vmul.f32 %v1980, %v1987
        %1996 = vst [vmem:[#allocation2] sm:$0xff] %v1990
        %1997 = vst [vmem:[#allocation2 + $0x8] sm:$0xff] %v1991
        %1998 = vst [vmem:[#allocation2 + $0x10] sm:$0xff] %v1992
        %1999 = vst [vmem:[#allocation2 + $0x18] sm:$0xff] %v1993
        %2000 = vst [vmem:[#allocation2 + $0x20] sm:$0xff] %v1994
        %2001 = vst [vmem:[#allocation2 + $0x28] sm:$0xff] %v1995
        %2002 = vrot.lane.b32.xlu0 %v1960, 33
        %v2003 = vpop.permute.xlu0 %2002
        %2004 = vrot.lane.b32.xlu0 %v1962, 33
        %v2005 = vpop.permute.xlu0 %2004
        %2006 = vrot.lane.b32.xlu0 %v1964, 33
        %v2007 = vpop.permute.xlu0 %2006
        %2008 = vrot.lane.b32.xlu0 %v1961, 33
        %v2009 = vpop.permute.xlu0 %2008
        %2010 = vrot.lane.b32.xlu0 %v1963, 33
        %v2011 = vpop.permute.xlu0 %2010
        %2012 = vrot.lane.b32.xlu0 %v1965, 33
        %v2013 = vpop.permute.xlu0 %2012
        %v2014 = vsel %vm380, %v2003, %v2009
        %v2015 = vsel %vm380, %v2005, %v2011
        %v2016 = vsel %vm380, %v2007, %v2013
        %v2017 = vsel %vm380, %v2009, %v2003
        %v2018 = vsel %vm380, %v2011, %v2005
        %v2019 = vsel %vm380, %v2013, %v2007
        %v2020 = vld [vmem:[%s383] ss:$8 sm:$0x3]
        %v2022 = vperm.slane %v2020, 0
        %v2023 = vperm.slane %v2020, 1
        %v2026 = vmul.f32 %v2017, %v2022
        %v2027 = vmul.f32 %v2014, %v2023
        %v2028 = vmul.f32 %v2018, %v2022
        %v2029 = vmul.f32 %v2015, %v2023
        %v2030 = vmul.f32 %v2019, %v2022
        %v2031 = vmul.f32 %v2016, %v2023
        %2032 = vst [vmem:[#allocation2 + $0x30] sm:$0xff] %v2026
        %2033 = vst [vmem:[#allocation2 + $0x38] sm:$0xff] %v2027
        %2034 = vst [vmem:[#allocation2 + $0x40] sm:$0xff] %v2028
        %2035 = vst [vmem:[#allocation2 + $0x48] sm:$0xff] %v2029
        %2036 = vst [vmem:[#allocation2 + $0x50] sm:$0xff] %v2030
        %2037 = vst [vmem:[#allocation2 + $0x58] sm:$0xff] %v2031
        %2038 = vrot.lane.b32.xlu0 %v1960, 32
        %v2039 = vpop.permute.xlu0 %2038
        %2040 = vrot.lane.b32.xlu0 %v1962, 32
        %v2041 = vpop.permute.xlu0 %2040
        %2042 = vrot.lane.b32.xlu0 %v1964, 32
        %v2043 = vpop.permute.xlu0 %2042
        %2044 = vrot.lane.b32.xlu0 %v1961, 32
        %v2045 = vpop.permute.xlu0 %2044
        %2046 = vrot.lane.b32.xlu0 %v1963, 32
        %v2047 = vpop.permute.xlu0 %2046
        %2048 = vrot.lane.b32.xlu0 %v1965, 32
        %v2049 = vpop.permute.xlu0 %2048
        %v2050 = vsel %vm396, %v2039, %v2045
        %v2051 = vsel %vm396, %v2041, %v2047
        %v2052 = vsel %vm396, %v2043, %v2049
        %v2053 = vsel %vm396, %v2045, %v2039
        %v2054 = vsel %vm396, %v2047, %v2041
        %v2055 = vsel %vm396, %v2049, %v2043
        %v2056 = vld [vmem:[%s399] ss:$8 sm:$0x3]
        %v2058 = vperm.slane %v2056, 0
        %v2059 = vperm.slane %v2056, 1
        %v2062 = vmul.f32 %v2053, %v2058
        %v2063 = vmul.f32 %v2050, %v2059
        %v2064 = vmul.f32 %v2054, %v2058
        %v2065 = vmul.f32 %v2051, %v2059
        %v2066 = vmul.f32 %v2055, %v2058
        %v2067 = vmul.f32 %v2052, %v2059
        %2068 = vst [vmem:[#allocation2 + $0x60] sm:$0xff] %v2062
        %2069 = vst [vmem:[#allocation2 + $0x68] sm:$0xff] %v2063
        %2070 = vst [vmem:[#allocation2 + $0x70] sm:$0xff] %v2064
        %2071 = vst [vmem:[#allocation2 + $0x78] sm:$0xff] %v2065
        %2072 = vst [vmem:[#allocation2 + $0x80] sm:$0xff] %v2066
        %2073 = vst [vmem:[#allocation2 + $0x88] sm:$0xff] %v2067
        %2074 = vrot.lane.b32.xlu0 %v1960, 31
        %v2075 = vpop.permute.xlu0 %2074
        %2076 = vrot.lane.b32.xlu0 %v1962, 31
        %v2077 = vpop.permute.xlu0 %2076
        %2078 = vrot.lane.b32.xlu0 %v1964, 31
        %v2079 = vpop.permute.xlu0 %2078
        %2080 = vrot.lane.b32.xlu0 %v1961, 31
        %v2081 = vpop.permute.xlu0 %2080
        %2082 = vrot.lane.b32.xlu0 %v1963, 31
        %v2083 = vpop.permute.xlu0 %2082
        %2084 = vrot.lane.b32.xlu0 %v1965, 31
        %v2085 = vpop.permute.xlu0 %2084
        %v2086 = vsel %vm412, %v2075, %v2081
        %v2087 = vsel %vm412, %v2077, %v2083
        %v2088 = vsel %vm412, %v2079, %v2085
        %v2089 = vsel %vm412, %v2081, %v2075
        %v2090 = vsel %vm412, %v2083, %v2077
        %v2091 = vsel %vm412, %v2085, %v2079
        %v2092 = vld [vmem:[%s415] ss:$8 sm:$0x3]
        %v2094 = vperm.slane %v2092, 0
        %v2095 = vperm.slane %v2092, 1
        %v2098 = vmul.f32 %v2089, %v2094
        %v2099 = vmul.f32 %v2086, %v2095
        %v2100 = vmul.f32 %v2090, %v2094
        %v2101 = vmul.f32 %v2087, %v2095
        %v2102 = vmul.f32 %v2091, %v2094
        %v2103 = vmul.f32 %v2088, %v2095
        %2104 = vst [vmem:[#allocation2 + $0x90] sm:$0xff] %v2098
        %2105 = vst [vmem:[#allocation2 + $0x98] sm:$0xff] %v2099
        %2106 = vst [vmem:[#allocation2 + $0xa0] sm:$0xff] %v2100
        %2107 = vst [vmem:[#allocation2 + $0xa8] sm:$0xff] %v2101
        %2108 = vst [vmem:[#allocation2 + $0xb0] sm:$0xff] %v2102
        %2109 = vst [vmem:[#allocation2 + $0xb8] sm:$0xff] %v2103
        %2110 = vrot.lane.b32.xlu0 %v1960, 30
        %v2111 = vpop.permute.xlu0 %2110
        %2112 = vrot.lane.b32.xlu0 %v1962, 30
        %v2113 = vpop.permute.xlu0 %2112
        %2114 = vrot.lane.b32.xlu0 %v1964, 30
        %v2115 = vpop.permute.xlu0 %2114
        %2116 = vrot.lane.b32.xlu0 %v1961, 30
        %v2117 = vpop.permute.xlu0 %2116
        %2118 = vrot.lane.b32.xlu0 %v1963, 30
        %v2119 = vpop.permute.xlu0 %2118
        %2120 = vrot.lane.b32.xlu0 %v1965, 30
        %v2121 = vpop.permute.xlu0 %2120
        %v2122 = vsel %vm428, %v2111, %v2117
        %v2123 = vsel %vm428, %v2113, %v2119
        %v2124 = vsel %vm428, %v2115, %v2121
        %v2125 = vsel %vm428, %v2117, %v2111
        %v2126 = vsel %vm428, %v2119, %v2113
        %v2127 = vsel %vm428, %v2121, %v2115
        %v2128 = vld [vmem:[%s431] ss:$8 sm:$0x3]
        %v2130 = vperm.slane %v2128, 0
        %v2131 = vperm.slane %v2128, 1
        %v2134 = vmul.f32 %v2125, %v2130
        %v2135 = vmul.f32 %v2122, %v2131
        %v2136 = vmul.f32 %v2126, %v2130
        %v2137 = vmul.f32 %v2123, %v2131
        %v2138 = vmul.f32 %v2127, %v2130
        %v2139 = vmul.f32 %v2124, %v2131
        %2140 = vst [vmem:[#allocation2 + $0xc0] sm:$0xff] %v2134
        %2141 = vst [vmem:[#allocation2 + $0xc8] sm:$0xff] %v2135
        %2142 = vst [vmem:[#allocation2 + $0xd0] sm:$0xff] %v2136
        %2143 = vst [vmem:[#allocation2 + $0xd8] sm:$0xff] %v2137
        %2144 = vst [vmem:[#allocation2 + $0xe0] sm:$0xff] %v2138
        %2145 = vst [vmem:[#allocation2 + $0xe8] sm:$0xff] %v2139
        %2146 = vrot.lane.b32.xlu0 %v1960, 18
        %v2147 = vpop.permute.xlu0 %2146
        %2148 = vrot.lane.b32.xlu0 %v1962, 18
        %v2149 = vpop.permute.xlu0 %2148
        %2150 = vrot.lane.b32.xlu0 %v1964, 18
        %v2151 = vpop.permute.xlu0 %2150
        %2152 = vrot.lane.b32.xlu0 %v1961, 18
        %v2153 = vpop.permute.xlu0 %2152
        %2154 = vrot.lane.b32.xlu0 %v1963, 18
        %v2155 = vpop.permute.xlu0 %2154
        %2156 = vrot.lane.b32.xlu0 %v1965, 18
        %v2157 = vpop.permute.xlu0 %2156
        %v2158 = vsel %vm444, %v2147, %v2153
        %v2159 = vsel %vm444, %v2149, %v2155
        %v2160 = vsel %vm444, %v2151, %v2157
        %v2161 = vsel %vm444, %v2153, %v2147
        %v2162 = vsel %vm444, %v2155, %v2149
        %v2163 = vsel %vm444, %v2157, %v2151
        %v2164 = vld [vmem:[%s447] ss:$8 sm:$0x3]
        %v2166 = vperm.slane %v2164, 0
        %v2167 = vperm.slane %v2164, 1
        %v2170 = vmul.f32 %v2161, %v2166
        %v2171 = vmul.f32 %v2158, %v2167
        %v2172 = vmul.f32 %v2162, %v2166
        %v2173 = vmul.f32 %v2159, %v2167
        %v2174 = vmul.f32 %v2163, %v2166
        %v2175 = vmul.f32 %v2160, %v2167
        %2176 = vst [vmem:[#allocation2 + $0xf0] sm:$0xff] %v2170
        %2177 = vst [vmem:[#allocation2 + $0xf8] sm:$0xff] %v2171
        %2178 = vst [vmem:[#allocation2 + $0x100] sm:$0xff] %v2172
        %2179 = vst [vmem:[#allocation2 + $0x108] sm:$0xff] %v2173
        %2180 = vst [vmem:[#allocation2 + $0x110] sm:$0xff] %v2174
        %2181 = vst [vmem:[#allocation2 + $0x118] sm:$0xff] %v2175
        %2182 = vrot.lane.b32.xlu0 %v1960, 17
        %v2183 = vpop.permute.xlu0 %2182
        %2184 = vrot.lane.b32.xlu0 %v1962, 17
        %v2185 = vpop.permute.xlu0 %2184
        %2186 = vrot.lane.b32.xlu0 %v1964, 17
        %v2187 = vpop.permute.xlu0 %2186
        %2188 = vrot.lane.b32.xlu0 %v1961, 17
        %v2189 = vpop.permute.xlu0 %2188
        %2190 = vrot.lane.b32.xlu0 %v1963, 17
        %v2191 = vpop.permute.xlu0 %2190
        %2192 = vrot.lane.b32.xlu0 %v1965, 17
        %v2193 = vpop.permute.xlu0 %2192
        %v2194 = vsel %vm460, %v2183, %v2189
        %v2195 = vsel %vm460, %v2185, %v2191
        %v2196 = vsel %vm460, %v2187, %v2193
        %v2197 = vsel %vm460, %v2189, %v2183
        %v2198 = vsel %vm460, %v2191, %v2185
        %v2199 = vsel %vm460, %v2193, %v2187
        %v2200 = vld [vmem:[%s463] ss:$8 sm:$0x3]
        %v2202 = vperm.slane %v2200, 0
        %v2203 = vperm.slane %v2200, 1
        %v2206 = vmul.f32 %v2197, %v2202
        %v2207 = vmul.f32 %v2194, %v2203
        %v2208 = vmul.f32 %v2198, %v2202
        %v2209 = vmul.f32 %v2195, %v2203
        %v2210 = vmul.f32 %v2199, %v2202
        %v2211 = vmul.f32 %v2196, %v2203
        %2212 = vst [vmem:[#allocation2 + $0x120] sm:$0xff] %v2206
        %2213 = vst [vmem:[#allocation2 + $0x128] sm:$0xff] %v2207
        %2214 = vst [vmem:[#allocation2 + $0x130] sm:$0xff] %v2208
        %2215 = vst [vmem:[#allocation2 + $0x138] sm:$0xff] %v2209
        %2216 = vst [vmem:[#allocation2 + $0x140] sm:$0xff] %v2210
        %2217 = vst [vmem:[#allocation2 + $0x148] sm:$0xff] %v2211
        %2218 = vrot.lane.b32.xlu0 %v1960, 16
        %v2219 = vpop.permute.xlu0 %2218
        %2220 = vrot.lane.b32.xlu0 %v1962, 16
        %v2221 = vpop.permute.xlu0 %2220
        %2222 = vrot.lane.b32.xlu0 %v1964, 16
        %v2223 = vpop.permute.xlu0 %2222
        %2224 = vrot.lane.b32.xlu0 %v1961, 16
        %v2225 = vpop.permute.xlu0 %2224
        %2226 = vrot.lane.b32.xlu0 %v1963, 16
        %v2227 = vpop.permute.xlu0 %2226
        %2228 = vrot.lane.b32.xlu0 %v1965, 16
        %v2229 = vpop.permute.xlu0 %2228
        %v2230 = vsel %vm476, %v2219, %v2225
        %v2231 = vsel %vm476, %v2221, %v2227
        %v2232 = vsel %vm476, %v2223, %v2229
        %v2233 = vsel %vm476, %v2225, %v2219
        %v2234 = vsel %vm476, %v2227, %v2221
        %v2235 = vsel %vm476, %v2229, %v2223
        %v2236 = vld [vmem:[%s479] ss:$8 sm:$0x3]
        %v2238 = vperm.slane %v2236, 0
        %v2239 = vperm.slane %v2236, 1
        %v2242 = vmul.f32 %v2233, %v2238
        %v2243 = vmul.f32 %v2230, %v2239
        %v2244 = vmul.f32 %v2234, %v2238
        %v2245 = vmul.f32 %v2231, %v2239
        %v2246 = vmul.f32 %v2235, %v2238
        %v2247 = vmul.f32 %v2232, %v2239
        %2248 = vst [vmem:[#allocation2 + $0x150] sm:$0xff] %v2242
        %2249 = vst [vmem:[#allocation2 + $0x158] sm:$0xff] %v2243
        %2250 = vst [vmem:[#allocation2 + $0x160] sm:$0xff] %v2244
        %2251 = vst [vmem:[#allocation2 + $0x168] sm:$0xff] %v2245
        %2252 = vst [vmem:[#allocation2 + $0x170] sm:$0xff] %v2246
        %2253 = vst [vmem:[#allocation2 + $0x178] sm:$0xff] %v2247
        %2254 = vrot.lane.b32.xlu0 %v1960, 15
        %v2255 = vpop.permute.xlu0 %2254
        %2256 = vrot.lane.b32.xlu0 %v1962, 15
        %v2257 = vpop.permute.xlu0 %2256
        %2258 = vrot.lane.b32.xlu0 %v1964, 15
        %v2259 = vpop.permute.xlu0 %2258
        %2260 = vrot.lane.b32.xlu0 %v1961, 15
        %v2261 = vpop.permute.xlu0 %2260
        %2262 = vrot.lane.b32.xlu0 %v1963, 15
        %v2263 = vpop.permute.xlu0 %2262
        %2264 = vrot.lane.b32.xlu0 %v1965, 15
        %v2265 = vpop.permute.xlu0 %2264
        %v2266 = vsel %vm492, %v2255, %v2261
        %v2267 = vsel %vm492, %v2257, %v2263
        %v2268 = vsel %vm492, %v2259, %v2265
        %v2269 = vsel %vm492, %v2261, %v2255
        %v2270 = vsel %vm492, %v2263, %v2257
        %v2271 = vsel %vm492, %v2265, %v2259
        %v2272 = vld [vmem:[%s495] ss:$8 sm:$0x3]
        %v2274 = vperm.slane %v2272, 0
        %v2275 = vperm.slane %v2272, 1
        %v2278 = vmul.f32 %v2269, %v2274
        %v2279 = vmul.f32 %v2266, %v2275
        %v2280 = vmul.f32 %v2270, %v2274
        %v2281 = vmul.f32 %v2267, %v2275
        %v2282 = vmul.f32 %v2271, %v2274
        %v2283 = vmul.f32 %v2268, %v2275
        %2284 = vst [vmem:[#allocation2 + $0x180] sm:$0xff] %v2278
        %2285 = vst [vmem:[#allocation2 + $0x188] sm:$0xff] %v2279
        %2286 = vst [vmem:[#allocation2 + $0x190] sm:$0xff] %v2280
        %2287 = vst [vmem:[#allocation2 + $0x198] sm:$0xff] %v2281
        %2288 = vst [vmem:[#allocation2 + $0x1a0] sm:$0xff] %v2282
        %2289 = vst [vmem:[#allocation2 + $0x1a8] sm:$0xff] %v2283
        %2290 = vrot.lane.b32.xlu0 %v1960, 14
        %v2291 = vpop.permute.xlu0 %2290
        %2292 = vrot.lane.b32.xlu0 %v1962, 14
        %v2293 = vpop.permute.xlu0 %2292
        %2294 = vrot.lane.b32.xlu0 %v1964, 14
        %v2295 = vpop.permute.xlu0 %2294
        %2296 = vrot.lane.b32.xlu0 %v1961, 14
        %v2297 = vpop.permute.xlu0 %2296
        %2298 = vrot.lane.b32.xlu0 %v1963, 14
        %v2299 = vpop.permute.xlu0 %2298
        %2300 = vrot.lane.b32.xlu0 %v1965, 14
        %v2301 = vpop.permute.xlu0 %2300
        %v2302 = vsel %vm508, %v2291, %v2297
        %v2303 = vsel %vm508, %v2293, %v2299
        %v2304 = vsel %vm508, %v2295, %v2301
        %v2305 = vsel %vm508, %v2297, %v2291
        %v2306 = vsel %vm508, %v2299, %v2293
        %v2307 = vsel %vm508, %v2301, %v2295
        %v2308 = vld [vmem:[%s511] ss:$8 sm:$0x3]
        %v2310 = vperm.slane %v2308, 0
        %v2311 = vperm.slane %v2308, 1
        %v2314 = vmul.f32 %v2305, %v2310
        %v2315 = vmul.f32 %v2302, %v2311
        %v2316 = vmul.f32 %v2306, %v2310
        %v2317 = vmul.f32 %v2303, %v2311
        %v2318 = vmul.f32 %v2307, %v2310
        %v2319 = vmul.f32 %v2304, %v2311
        %2320 = vst [vmem:[#allocation2 + $0x1b0] sm:$0xff] %v2314
        %2321 = vst [vmem:[#allocation2 + $0x1b8] sm:$0xff] %v2315
        %2322 = vst [vmem:[#allocation2 + $0x1c0] sm:$0xff] %v2316
        %2323 = vst [vmem:[#allocation2 + $0x1c8] sm:$0xff] %v2317
        %2324 = vst [vmem:[#allocation2 + $0x1d0] sm:$0xff] %v2318
        %2325 = vst [vmem:[#allocation2 + $0x1d8] sm:$0xff] %v2319
        %2326 = vrot.lane.b32.xlu0 %v1960, 2
        %v2327 = vpop.permute.xlu0 %2326
        %2328 = vrot.lane.b32.xlu0 %v1962, 2
        %v2329 = vpop.permute.xlu0 %2328
        %2330 = vrot.lane.b32.xlu0 %v1964, 2
        %v2331 = vpop.permute.xlu0 %2330
        %2332 = vrot.lane.b32.xlu0 %v1961, 2
        %v2333 = vpop.permute.xlu0 %2332
        %2334 = vrot.lane.b32.xlu0 %v1963, 2
        %v2335 = vpop.permute.xlu0 %2334
        %2336 = vrot.lane.b32.xlu0 %v1965, 2
        %v2337 = vpop.permute.xlu0 %2336
        %v2338 = vsel %vm524, %v2327, %v2333
        %v2339 = vsel %vm524, %v2329, %v2335
        %v2340 = vsel %vm524, %v2331, %v2337
        %v2341 = vsel %vm524, %v2333, %v2327
        %v2342 = vsel %vm524, %v2335, %v2329
        %v2343 = vsel %vm524, %v2337, %v2331
        %v2344 = vld [vmem:[%s527] ss:$8 sm:$0x3]
        %v2346 = vperm.slane %v2344, 0
        %v2347 = vperm.slane %v2344, 1
        %v2350 = vmul.f32 %v2341, %v2346
        %v2351 = vmul.f32 %v2338, %v2347
        %v2352 = vmul.f32 %v2342, %v2346
        %v2353 = vmul.f32 %v2339, %v2347
        %v2354 = vmul.f32 %v2343, %v2346
        %v2355 = vmul.f32 %v2340, %v2347
        %2356 = vst [vmem:[#allocation2 + $0x1e0] sm:$0xff] %v2350
        %2357 = vst [vmem:[#allocation2 + $0x1e8] sm:$0xff] %v2351
        %2358 = vst [vmem:[#allocation2 + $0x1f0] sm:$0xff] %v2352
        %2359 = vst [vmem:[#allocation2 + $0x1f8] sm:$0xff] %v2353
        %2360 = vst [vmem:[#allocation2 + $0x200] sm:$0xff] %v2354
        %2361 = vst [vmem:[#allocation2 + $0x208] sm:$0xff] %v2355
        %2362 = vrot.lane.b32.xlu0 %v1960, 1
        %v2363 = vpop.permute.xlu0 %2362
        %2364 = vrot.lane.b32.xlu0 %v1962, 1
        %v2365 = vpop.permute.xlu0 %2364
        %2366 = vrot.lane.b32.xlu0 %v1964, 1
        %v2367 = vpop.permute.xlu0 %2366
        %2368 = vrot.lane.b32.xlu0 %v1961, 1
        %v2369 = vpop.permute.xlu0 %2368
        %2370 = vrot.lane.b32.xlu0 %v1963, 1
        %v2371 = vpop.permute.xlu0 %2370
        %2372 = vrot.lane.b32.xlu0 %v1965, 1
        %v2373 = vpop.permute.xlu0 %2372
        %v2374 = vsel %vm540, %v2363, %v2369
        %v2375 = vsel %vm540, %v2365, %v2371
        %v2376 = vsel %vm540, %v2367, %v2373
        %v2377 = vsel %vm540, %v2369, %v2363
        %v2378 = vsel %vm540, %v2371, %v2365
        %v2379 = vsel %vm540, %v2373, %v2367
        %v2380 = vld [vmem:[%s543] ss:$8 sm:$0x3]
        %v2382 = vperm.slane %v2380, 0
        %v2383 = vperm.slane %v2380, 1
        %v2386 = vmul.f32 %v2377, %v2382
        %v2387 = vmul.f32 %v2374, %v2383
        %v2388 = vmul.f32 %v2378, %v2382
        %v2389 = vmul.f32 %v2375, %v2383
        %v2390 = vmul.f32 %v2379, %v2382
        %v2391 = vmul.f32 %v2376, %v2383
        %2392 = vst [vmem:[#allocation2 + $0x210] sm:$0xff] %v2386
        %2393 = vst [vmem:[#allocation2 + $0x218] sm:$0xff] %v2387
        %2394 = vst [vmem:[#allocation2 + $0x220] sm:$0xff] %v2388
        %2395 = vst [vmem:[#allocation2 + $0x228] sm:$0xff] %v2389
        %2396 = vst [vmem:[#allocation2 + $0x230] sm:$0xff] %v2390
        %2397 = vst [vmem:[#allocation2 + $0x238] sm:$0xff] %v2391
        %2398 = vst [vmem:[#allocation2 + $0x240] sm:$0xff] %v1960
        %2399 = vst [vmem:[#allocation2 + $0x248] sm:$0xff] %v1961
        %2400 = vst [vmem:[#allocation2 + $0x250] sm:$0xff] %v1962
        %2401 = vst [vmem:[#allocation2 + $0x258] sm:$0xff] %v1963
        %2402 = vst [vmem:[#allocation2 + $0x260] sm:$0xff] %v1964
        %2403 = vst [vmem:[#allocation2 + $0x268] sm:$0xff] %v1965
        %2404 = vrot.lane.b32.xlu0 %v1960, 127
        %v2405 = vpop.permute.xlu0 %2404
        %2406 = vrot.lane.b32.xlu0 %v1962, 127
        %v2407 = vpop.permute.xlu0 %2406
        %2408 = vrot.lane.b32.xlu0 %v1964, 127
        %v2409 = vpop.permute.xlu0 %2408
        %2410 = vrot.lane.b32.xlu0 %v1961, 127
        %v2411 = vpop.permute.xlu0 %2410
        %2412 = vrot.lane.b32.xlu0 %v1963, 127
        %v2413 = vpop.permute.xlu0 %2412
        %2414 = vrot.lane.b32.xlu0 %v1965, 127
        %v2415 = vpop.permute.xlu0 %2414
        %v2416 = vsel %vm556, %v2405, %v2411
        %v2417 = vsel %vm556, %v2407, %v2413
        %v2418 = vsel %vm556, %v2409, %v2415
        %v2419 = vsel %vm556, %v2411, %v2405
        %v2420 = vsel %vm556, %v2413, %v2407
        %v2421 = vsel %vm556, %v2415, %v2409
        %v2422 = vld [vmem:[%s559] ss:$8 sm:$0x3]
        %v2424 = vperm.slane %v2422, 0
        %v2425 = vperm.slane %v2422, 1
        %v2428 = vmul.f32 %v2416, %v2424
        %v2429 = vmul.f32 %v2419, %v2425
        %v2430 = vmul.f32 %v2417, %v2424
        %v2431 = vmul.f32 %v2420, %v2425
        %v2432 = vmul.f32 %v2418, %v2424
        %v2433 = vmul.f32 %v2421, %v2425
        %2434 = vst [vmem:[#allocation2 + $0x270] sm:$0xff] %v2428
        %2435 = vst [vmem:[#allocation2 + $0x278] sm:$0xff] %v2429
        %2436 = vst [vmem:[#allocation2 + $0x280] sm:$0xff] %v2430
        %2437 = vst [vmem:[#allocation2 + $0x288] sm:$0xff] %v2431
        %2438 = vst [vmem:[#allocation2 + $0x290] sm:$0xff] %v2432
        %2439 = vst [vmem:[#allocation2 + $0x298] sm:$0xff] %v2433
        %2440 = vrot.lane.b32.xlu0 %v1960, 126
        %v2441 = vpop.permute.xlu0 %2440
        %2442 = vrot.lane.b32.xlu0 %v1962, 126
        %v2443 = vpop.permute.xlu0 %2442
        %2444 = vrot.lane.b32.xlu0 %v1964, 126
        %v2445 = vpop.permute.xlu0 %2444
        %2446 = vrot.lane.b32.xlu0 %v1961, 126
        %v2447 = vpop.permute.xlu0 %2446
        %2448 = vrot.lane.b32.xlu0 %v1963, 126
        %v2449 = vpop.permute.xlu0 %2448
        %2450 = vrot.lane.b32.xlu0 %v1965, 126
        %v2451 = vpop.permute.xlu0 %2450
        %v2452 = vsel %vm572, %v2441, %v2447
        %v2453 = vsel %vm572, %v2443, %v2449
        %v2454 = vsel %vm572, %v2445, %v2451
        %v2455 = vsel %vm572, %v2447, %v2441
        %v2456 = vsel %vm572, %v2449, %v2443
        %v2457 = vsel %vm572, %v2451, %v2445
        %v2458 = vld [vmem:[%s575] ss:$8 sm:$0x3]
        %v2460 = vperm.slane %v2458, 0
        %v2461 = vperm.slane %v2458, 1
        %v2464 = vmul.f32 %v2452, %v2460
        %v2465 = vmul.f32 %v2455, %v2461
        %v2466 = vmul.f32 %v2453, %v2460
        %v2467 = vmul.f32 %v2456, %v2461
        %v2468 = vmul.f32 %v2454, %v2460
        %v2469 = vmul.f32 %v2457, %v2461
        %2470 = vst [vmem:[#allocation2 + $0x2a0] sm:$0xff] %v2464
        %2471 = vst [vmem:[#allocation2 + $0x2a8] sm:$0xff] %v2465
        %2472 = vst [vmem:[#allocation2 + $0x2b0] sm:$0xff] %v2466
        %2473 = vst [vmem:[#allocation2 + $0x2b8] sm:$0xff] %v2467
        %2474 = vst [vmem:[#allocation2 + $0x2c0] sm:$0xff] %v2468
        %2475 = vst [vmem:[#allocation2 + $0x2c8] sm:$0xff] %v2469
        %2476 = vrot.lane.b32.xlu0 %v1960, 114
        %v2477 = vpop.permute.xlu0 %2476
        %2478 = vrot.lane.b32.xlu0 %v1962, 114
        %v2479 = vpop.permute.xlu0 %2478
        %2480 = vrot.lane.b32.xlu0 %v1964, 114
        %v2481 = vpop.permute.xlu0 %2480
        %2482 = vrot.lane.b32.xlu0 %v1961, 114
        %v2483 = vpop.permute.xlu0 %2482
        %2484 = vrot.lane.b32.xlu0 %v1963, 114
        %v2485 = vpop.permute.xlu0 %2484
        %2486 = vrot.lane.b32.xlu0 %v1965, 114
        %v2487 = vpop.permute.xlu0 %2486
        %v2488 = vsel %vm588, %v2477, %v2483
        %v2489 = vsel %vm588, %v2479, %v2485
        %v2490 = vsel %vm588, %v2481, %v2487
        %v2491 = vsel %vm588, %v2483, %v2477
        %v2492 = vsel %vm588, %v2485, %v2479
        %v2493 = vsel %vm588, %v2487, %v2481
        %v2494 = vld [vmem:[%s591] ss:$8 sm:$0x3]
        %v2496 = vperm.slane %v2494, 0
        %v2497 = vperm.slane %v2494, 1
        %v2500 = vmul.f32 %v2488, %v2496
        %v2501 = vmul.f32 %v2491, %v2497
        %v2502 = vmul.f32 %v2489, %v2496
        %v2503 = vmul.f32 %v2492, %v2497
        %v2504 = vmul.f32 %v2490, %v2496
        %v2505 = vmul.f32 %v2493, %v2497
        %2506 = vst [vmem:[#allocation2 + $0x2d0] sm:$0xff] %v2500
        %2507 = vst [vmem:[#allocation2 + $0x2d8] sm:$0xff] %v2501
        %2508 = vst [vmem:[#allocation2 + $0x2e0] sm:$0xff] %v2502
        %2509 = vst [vmem:[#allocation2 + $0x2e8] sm:$0xff] %v2503
        %2510 = vst [vmem:[#allocation2 + $0x2f0] sm:$0xff] %v2504
        %2511 = vst [vmem:[#allocation2 + $0x2f8] sm:$0xff] %v2505
        %2512 = vrot.lane.b32.xlu0 %v1960, 113
        %v2513 = vpop.permute.xlu0 %2512
        %2514 = vrot.lane.b32.xlu0 %v1962, 113
        %v2515 = vpop.permute.xlu0 %2514
        %2516 = vrot.lane.b32.xlu0 %v1964, 113
        %v2517 = vpop.permute.xlu0 %2516
        %2518 = vrot.lane.b32.xlu0 %v1961, 113
        %v2519 = vpop.permute.xlu0 %2518
        %2520 = vrot.lane.b32.xlu0 %v1963, 113
        %v2521 = vpop.permute.xlu0 %2520
        %2522 = vrot.lane.b32.xlu0 %v1965, 113
        %v2523 = vpop.permute.xlu0 %2522
        %v2524 = vsel %vm604, %v2513, %v2519
        %v2525 = vsel %vm604, %v2515, %v2521
        %v2526 = vsel %vm604, %v2517, %v2523
        %v2527 = vsel %vm604, %v2519, %v2513
        %v2528 = vsel %vm604, %v2521, %v2515
        %v2529 = vsel %vm604, %v2523, %v2517
        %v2530 = vld [vmem:[%s607] ss:$8 sm:$0x3]
        %v2532 = vperm.slane %v2530, 0
        %v2533 = vperm.slane %v2530, 1
        %v2536 = vmul.f32 %v2524, %v2532
        %v2537 = vmul.f32 %v2527, %v2533
        %v2538 = vmul.f32 %v2525, %v2532
        %v2539 = vmul.f32 %v2528, %v2533
        %v2540 = vmul.f32 %v2526, %v2532
        %v2541 = vmul.f32 %v2529, %v2533
        %2542 = vst [vmem:[#allocation2 + $0x300] sm:$0xff] %v2536
        %2543 = vst [vmem:[#allocation2 + $0x308] sm:$0xff] %v2537
        %2544 = vst [vmem:[#allocation2 + $0x310] sm:$0xff] %v2538
        %2545 = vst [vmem:[#allocation2 + $0x318] sm:$0xff] %v2539
        %2546 = vst [vmem:[#allocation2 + $0x320] sm:$0xff] %v2540
        %2547 = vst [vmem:[#allocation2 + $0x328] sm:$0xff] %v2541
        %2548 = vrot.lane.b32.xlu0 %v1960, 112
        %v2549 = vpop.permute.xlu0 %2548
        %2550 = vrot.lane.b32.xlu0 %v1962, 112
        %v2551 = vpop.permute.xlu0 %2550
        %2552 = vrot.lane.b32.xlu0 %v1964, 112
        %v2553 = vpop.permute.xlu0 %2552
        %2554 = vrot.lane.b32.xlu0 %v1961, 112
        %v2555 = vpop.permute.xlu0 %2554
        %2556 = vrot.lane.b32.xlu0 %v1963, 112
        %v2557 = vpop.permute.xlu0 %2556
        %2558 = vrot.lane.b32.xlu0 %v1965, 112
        %v2559 = vpop.permute.xlu0 %2558
        %v2560 = vsel %vm620, %v2549, %v2555
        %v2561 = vsel %vm620, %v2551, %v2557
        %v2562 = vsel %vm620, %v2553, %v2559
        %v2563 = vsel %vm620, %v2555, %v2549
        %v2564 = vsel %vm620, %v2557, %v2551
        %v2565 = vsel %vm620, %v2559, %v2553
        %v2566 = vld [vmem:[%s623] ss:$8 sm:$0x3]
        %v2568 = vperm.slane %v2566, 0
        %v2569 = vperm.slane %v2566, 1
        %v2572 = vmul.f32 %v2560, %v2568
        %v2573 = vmul.f32 %v2563, %v2569
        %v2574 = vmul.f32 %v2561, %v2568
        %v2575 = vmul.f32 %v2564, %v2569
        %v2576 = vmul.f32 %v2562, %v2568
        %v2577 = vmul.f32 %v2565, %v2569
        %2578 = vst [vmem:[#allocation2 + $0x330] sm:$0xff] %v2572
        %2579 = vst [vmem:[#allocation2 + $0x338] sm:$0xff] %v2573
        %2580 = vst [vmem:[#allocation2 + $0x340] sm:$0xff] %v2574
        %2581 = vst [vmem:[#allocation2 + $0x348] sm:$0xff] %v2575
        %2582 = vst [vmem:[#allocation2 + $0x350] sm:$0xff] %v2576
        %2583 = vst [vmem:[#allocation2 + $0x358] sm:$0xff] %v2577
        %2584 = vrot.lane.b32.xlu0 %v1960, 111
        %v2585 = vpop.permute.xlu0 %2584
        %2586 = vrot.lane.b32.xlu0 %v1962, 111
        %v2587 = vpop.permute.xlu0 %2586
        %2588 = vrot.lane.b32.xlu0 %v1964, 111
        %v2589 = vpop.permute.xlu0 %2588
        %2590 = vrot.lane.b32.xlu0 %v1961, 111
        %v2591 = vpop.permute.xlu0 %2590
        %2592 = vrot.lane.b32.xlu0 %v1963, 111
        %v2593 = vpop.permute.xlu0 %2592
        %2594 = vrot.lane.b32.xlu0 %v1965, 111
        %v2595 = vpop.permute.xlu0 %2594
        %v2596 = vsel %vm636, %v2585, %v2591
        %v2597 = vsel %vm636, %v2587, %v2593
        %v2598 = vsel %vm636, %v2589, %v2595
        %v2599 = vsel %vm636, %v2591, %v2585
        %v2600 = vsel %vm636, %v2593, %v2587
        %v2601 = vsel %vm636, %v2595, %v2589
        %v2602 = vld [vmem:[%s639] ss:$8 sm:$0x3]
        %v2604 = vperm.slane %v2602, 0
        %v2605 = vperm.slane %v2602, 1
        %v2608 = vmul.f32 %v2596, %v2604
        %v2609 = vmul.f32 %v2599, %v2605
        %v2610 = vmul.f32 %v2597, %v2604
        %v2611 = vmul.f32 %v2600, %v2605
        %v2612 = vmul.f32 %v2598, %v2604
        %v2613 = vmul.f32 %v2601, %v2605
        %2614 = vst [vmem:[#allocation2 + $0x360] sm:$0xff] %v2608
        %2615 = vst [vmem:[#allocation2 + $0x368] sm:$0xff] %v2609
        %2616 = vst [vmem:[#allocation2 + $0x370] sm:$0xff] %v2610
        %2617 = vst [vmem:[#allocation2 + $0x378] sm:$0xff] %v2611
        %2618 = vst [vmem:[#allocation2 + $0x380] sm:$0xff] %v2612
        %2619 = vst [vmem:[#allocation2 + $0x388] sm:$0xff] %v2613
        %2620 = vrot.lane.b32.xlu0 %v1960, 110
        %v2621 = vpop.permute.xlu0 %2620
        %2622 = vrot.lane.b32.xlu0 %v1962, 110
        %v2623 = vpop.permute.xlu0 %2622
        %2624 = vrot.lane.b32.xlu0 %v1964, 110
        %v2625 = vpop.permute.xlu0 %2624
        %2626 = vrot.lane.b32.xlu0 %v1961, 110
        %v2627 = vpop.permute.xlu0 %2626
        %2628 = vrot.lane.b32.xlu0 %v1963, 110
        %v2629 = vpop.permute.xlu0 %2628
        %2630 = vrot.lane.b32.xlu0 %v1965, 110
        %v2631 = vpop.permute.xlu0 %2630
        %v2632 = vsel %vm652, %v2621, %v2627
        %v2633 = vsel %vm652, %v2623, %v2629
        %v2634 = vsel %vm652, %v2625, %v2631
        %v2635 = vsel %vm652, %v2627, %v2621
        %v2636 = vsel %vm652, %v2629, %v2623
        %v2637 = vsel %vm652, %v2631, %v2625
        %v2638 = vld [vmem:[%s655] ss:$8 sm:$0x3]
        %v2640 = vperm.slane %v2638, 0
        %v2641 = vperm.slane %v2638, 1
        %v2644 = vmul.f32 %v2632, %v2640
        %v2645 = vmul.f32 %v2635, %v2641
        %v2646 = vmul.f32 %v2633, %v2640
        %v2647 = vmul.f32 %v2636, %v2641
        %v2648 = vmul.f32 %v2634, %v2640
        %v2649 = vmul.f32 %v2637, %v2641
        %2650 = vst [vmem:[#allocation2 + $0x390] sm:$0xff] %v2644
        %2651 = vst [vmem:[#allocation2 + $0x398] sm:$0xff] %v2645
        %2652 = vst [vmem:[#allocation2 + $0x3a0] sm:$0xff] %v2646
        %2653 = vst [vmem:[#allocation2 + $0x3a8] sm:$0xff] %v2647
        %2654 = vst [vmem:[#allocation2 + $0x3b0] sm:$0xff] %v2648
        %2655 = vst [vmem:[#allocation2 + $0x3b8] sm:$0xff] %v2649
        %2656 = vrot.lane.b32.xlu0 %v1960, 98
        %v2657 = vpop.permute.xlu0 %2656
        %2658 = vrot.lane.b32.xlu0 %v1962, 98
        %v2659 = vpop.permute.xlu0 %2658
        %2660 = vrot.lane.b32.xlu0 %v1964, 98
        %v2661 = vpop.permute.xlu0 %2660
        %2662 = vrot.lane.b32.xlu0 %v1961, 98
        %v2663 = vpop.permute.xlu0 %2662
        %2664 = vrot.lane.b32.xlu0 %v1963, 98
        %v2665 = vpop.permute.xlu0 %2664
        %2666 = vrot.lane.b32.xlu0 %v1965, 98
        %v2667 = vpop.permute.xlu0 %2666
        %v2668 = vsel %vm668, %v2657, %v2663
        %v2669 = vsel %vm668, %v2659, %v2665
        %v2670 = vsel %vm668, %v2661, %v2667
        %v2671 = vsel %vm668, %v2663, %v2657
        %v2672 = vsel %vm668, %v2665, %v2659
        %v2673 = vsel %vm668, %v2667, %v2661
        %v2674 = vld [vmem:[%s671] ss:$8 sm:$0x3]
        %v2676 = vperm.slane %v2674, 0
        %v2677 = vperm.slane %v2674, 1
        %v2680 = vmul.f32 %v2668, %v2676
        %v2681 = vmul.f32 %v2671, %v2677
        %v2682 = vmul.f32 %v2669, %v2676
        %v2683 = vmul.f32 %v2672, %v2677
        %v2684 = vmul.f32 %v2670, %v2676
        %v2685 = vmul.f32 %v2673, %v2677
        %2686 = vst [vmem:[#allocation2 + $0x3c0] sm:$0xff] %v2680
        %2687 = vst [vmem:[#allocation2 + $0x3c8] sm:$0xff] %v2681
        %2688 = vst [vmem:[#allocation2 + $0x3d0] sm:$0xff] %v2682
        %2689 = vst [vmem:[#allocation2 + $0x3d8] sm:$0xff] %v2683
        %2690 = vst [vmem:[#allocation2 + $0x3e0] sm:$0xff] %v2684
        %2691 = vst [vmem:[#allocation2 + $0x3e8] sm:$0xff] %v2685
        %2692 = vrot.lane.b32.xlu0 %v1960, 97
        %v2693 = vpop.permute.xlu0 %2692
        %2694 = vrot.lane.b32.xlu0 %v1962, 97
        %v2695 = vpop.permute.xlu0 %2694
        %2696 = vrot.lane.b32.xlu0 %v1964, 97
        %v2697 = vpop.permute.xlu0 %2696
        %2698 = vrot.lane.b32.xlu0 %v1961, 97
        %v2699 = vpop.permute.xlu0 %2698
        %2700 = vrot.lane.b32.xlu0 %v1963, 97
        %v2701 = vpop.permute.xlu0 %2700
        %2702 = vrot.lane.b32.xlu0 %v1965, 97
        %v2703 = vpop.permute.xlu0 %2702
        %v2704 = vsel %vm684, %v2693, %v2699
        %v2705 = vsel %vm684, %v2695, %v2701
        %v2706 = vsel %vm684, %v2697, %v2703
        %v2707 = vsel %vm684, %v2699, %v2693
        %v2708 = vsel %vm684, %v2701, %v2695
        %v2709 = vsel %vm684, %v2703, %v2697
        %v2710 = vld [vmem:[%s687] ss:$8 sm:$0x3]
        %v2712 = vperm.slane %v2710, 0
        %v2713 = vperm.slane %v2710, 1
        %v2716 = vmul.f32 %v2704, %v2712
        %v2717 = vmul.f32 %v2707, %v2713
        %v2718 = vmul.f32 %v2705, %v2712
        %v2719 = vmul.f32 %v2708, %v2713
        %v2720 = vmul.f32 %v2706, %v2712
        %v2721 = vmul.f32 %v2709, %v2713
        %2722 = vst [vmem:[#allocation2 + $0x3f0] sm:$0xff] %v2716
        %2723 = vst [vmem:[#allocation2 + $0x3f8] sm:$0xff] %v2717
        %2724 = vst [vmem:[#allocation2 + $0x400] sm:$0xff] %v2718
        %2725 = vst [vmem:[#allocation2 + $0x408] sm:$0xff] %v2719
        %2726 = vst [vmem:[#allocation2 + $0x410] sm:$0xff] %v2720
        %2727 = vst [vmem:[#allocation2 + $0x418] sm:$0xff] %v2721
        %2728 = vrot.lane.b32.xlu0 %v1960, 96
        %v2729 = vpop.permute.xlu0 %2728
        %2730 = vrot.lane.b32.xlu0 %v1962, 96
        %v2731 = vpop.permute.xlu0 %2730
        %2732 = vrot.lane.b32.xlu0 %v1964, 96
        %v2733 = vpop.permute.xlu0 %2732
        %2734 = vrot.lane.b32.xlu0 %v1961, 96
        %v2735 = vpop.permute.xlu0 %2734
        %2736 = vrot.lane.b32.xlu0 %v1963, 96
        %v2737 = vpop.permute.xlu0 %2736
        %2738 = vrot.lane.b32.xlu0 %v1965, 96
        %v2739 = vpop.permute.xlu0 %2738
        %v2740 = vsel %vm700, %v2729, %v2735
        %v2741 = vsel %vm700, %v2731, %v2737
        %v2742 = vsel %vm700, %v2733, %v2739
        %v2743 = vsel %vm700, %v2735, %v2729
        %v2744 = vsel %vm700, %v2737, %v2731
        %v2745 = vsel %vm700, %v2739, %v2733
        %v2746 = vld [vmem:[%s703] ss:$8 sm:$0x3]
        %v2748 = vperm.slane %v2746, 0
        %v2749 = vperm.slane %v2746, 1
        %v2752 = vmul.f32 %v2740, %v2748
        %v2753 = vmul.f32 %v2743, %v2749
        %v2754 = vmul.f32 %v2741, %v2748
        %v2755 = vmul.f32 %v2744, %v2749
        %v2756 = vmul.f32 %v2742, %v2748
        %v2757 = vmul.f32 %v2745, %v2749
        %2758 = vst [vmem:[#allocation2 + $0x420] sm:$0xff] %v2752
        %2759 = vst [vmem:[#allocation2 + $0x428] sm:$0xff] %v2753
        %2760 = vst [vmem:[#allocation2 + $0x430] sm:$0xff] %v2754
        %2761 = vst [vmem:[#allocation2 + $0x438] sm:$0xff] %v2755
        %2762 = vst [vmem:[#allocation2 + $0x440] sm:$0xff] %v2756
        %2763 = vst [vmem:[#allocation2 + $0x448] sm:$0xff] %v2757
        %2764 = vrot.lane.b32.xlu0 %v1960, 95
        %v2765 = vpop.permute.xlu0 %2764
        %2766 = vrot.lane.b32.xlu0 %v1962, 95
        %v2767 = vpop.permute.xlu0 %2766
        %2768 = vrot.lane.b32.xlu0 %v1964, 95
        %v2769 = vpop.permute.xlu0 %2768
        %2770 = vrot.lane.b32.xlu0 %v1961, 95
        %v2771 = vpop.permute.xlu0 %2770
        %2772 = vrot.lane.b32.xlu0 %v1963, 95
        %v2773 = vpop.permute.xlu0 %2772
        %2774 = vrot.lane.b32.xlu0 %v1965, 95
        %v2775 = vpop.permute.xlu0 %2774
        %v2776 = vsel %vm716, %v2765, %v2771
        %v2777 = vsel %vm716, %v2767, %v2773
        %v2778 = vsel %vm716, %v2769, %v2775
        %v2779 = vsel %vm716, %v2771, %v2765
        %v2780 = vsel %vm716, %v2773, %v2767
        %v2781 = vsel %vm716, %v2775, %v2769
        %v2782 = vld [vmem:[%s719] ss:$8 sm:$0x3]
        %v2784 = vperm.slane %v2782, 0
        %v2785 = vperm.slane %v2782, 1
        %v2788 = vmul.f32 %v2776, %v2784
        %v2789 = vmul.f32 %v2779, %v2785
        %v2790 = vmul.f32 %v2777, %v2784
        %v2791 = vmul.f32 %v2780, %v2785
        %v2792 = vmul.f32 %v2778, %v2784
        %v2793 = vmul.f32 %v2781, %v2785
        %2794 = vst [vmem:[#allocation2 + $0x450] sm:$0xff] %v2788
        %2795 = vst [vmem:[#allocation2 + $0x458] sm:$0xff] %v2789
        %2796 = vst [vmem:[#allocation2 + $0x460] sm:$0xff] %v2790
        %2797 = vst [vmem:[#allocation2 + $0x468] sm:$0xff] %v2791
        %2798 = vst [vmem:[#allocation2 + $0x470] sm:$0xff] %v2792
        %2799 = vst [vmem:[#allocation2 + $0x478] sm:$0xff] %v2793
        %2800 = vrot.lane.b32.xlu0 %v1960, 94
        %v2801 = vpop.permute.xlu0 %2800
        %2802 = vrot.lane.b32.xlu0 %v1962, 94
        %v2803 = vpop.permute.xlu0 %2802
        %2804 = vrot.lane.b32.xlu0 %v1964, 94
        %v2805 = vpop.permute.xlu0 %2804
        %2806 = vrot.lane.b32.xlu0 %v1961, 94
        %v2807 = vpop.permute.xlu0 %2806
        %2808 = vrot.lane.b32.xlu0 %v1963, 94
        %v2809 = vpop.permute.xlu0 %2808
        %2810 = vrot.lane.b32.xlu0 %v1965, 94
        %v2811 = vpop.permute.xlu0 %2810
        %v2812 = vsel %vm732, %v2801, %v2807
        %v2813 = vsel %vm732, %v2803, %v2809
        %v2814 = vsel %vm732, %v2805, %v2811
        %v2815 = vsel %vm732, %v2807, %v2801
        %v2816 = vsel %vm732, %v2809, %v2803
        %v2817 = vsel %vm732, %v2811, %v2805
        %v2818 = vld [vmem:[%s735] ss:$8 sm:$0x3]
        %v2820 = vperm.slane %v2818, 0
        %v2821 = vperm.slane %v2818, 1
        %v2824 = vmul.f32 %v2812, %v2820
        %v2825 = vmul.f32 %v2815, %v2821
        %v2826 = vmul.f32 %v2813, %v2820
        %v2827 = vmul.f32 %v2816, %v2821
        %v2828 = vmul.f32 %v2814, %v2820
        %v2829 = vmul.f32 %v2817, %v2821
        %2830 = vst [vmem:[#allocation2 + $0x480] sm:$0xff] %v2824
        %2831 = vst [vmem:[#allocation2 + $0x488] sm:$0xff] %v2825
        %2832 = vst [vmem:[#allocation2 + $0x490] sm:$0xff] %v2826
        %2833 = vst [vmem:[#allocation2 + $0x498] sm:$0xff] %v2827
        %2834 = vst [vmem:[#allocation2 + $0x4a0] sm:$0xff] %v2828
        %2835 = vst [vmem:[#allocation2 + $0x4a8] sm:$0xff] %v2829
        %v2836 = vld [vmem:[#allocation7] sm:$0xff]
        %v2837 = vld [vmem:[#allocation7 + $0x8] sm:$0xff]
        %v2838 = vld [vmem:[#allocation7 + $0x10] sm:$0xff]
        %v2839 = vld [vmem:[#allocation7 + $0x18] sm:$0xff]
        %v2840 = vld [vmem:[#allocation7 + $0x20] sm:$0xff]
        %v2841 = vld [vmem:[#allocation7 + $0x28] sm:$0xff]
        %v2842 = vld [vmem:[#allocation7 + $0x30] sm:$0xff]
        %v2843 = vld [vmem:[#allocation7 + $0x38] sm:$0xff]
        %v2844 = vld [vmem:[#allocation7 + $0x40] sm:$0xff]
        %v2845 = vld [vmem:[#allocation7 + $0x48] sm:$0xff]
        %v2846 = vld [vmem:[#allocation7 + $0x50] sm:$0x1f]
        %v2847 = vld [vmem:[#allocation7 + $0x58] sm:$0x1f]
        %v2848 = vld [vmem:[#allocation7 + $0x60] sm:$0x1f]
        %v2849 = vld [vmem:[#allocation7 + $0x68] sm:$0x1f]
        %v2850 = vld [vmem:[#allocation7 + $0x70] sm:$0x1f]
        %v2851 = vld [vmem:[#allocation2] sm:$0xff]
        %v2852 = vld [vmem:[#allocation2 + $0x8] sm:$0xff]
        %v2853 = vld [vmem:[#allocation2 + $0x10] sm:$0xff]
        %v2854 = vld [vmem:[#allocation2 + $0x18] sm:$0xff]
        %v2855 = vld [vmem:[#allocation2 + $0x20] sm:$0xff]
        %v2856 = vld [vmem:[#allocation2 + $0x28] sm:$0xff]
        %v2857 = vld [vmem:[#allocation2 + $0x30] sm:$0xff]
        %v2858 = vld [vmem:[#allocation2 + $0x38] sm:$0xff]
        %v2859 = vld [vmem:[#allocation2 + $0x40] sm:$0xff]
        %v2860 = vld [vmem:[#allocation2 + $0x48] sm:$0xff]
        %v2861 = vld [vmem:[#allocation2 + $0x50] sm:$0xff]
        %v2862 = vld [vmem:[#allocation2 + $0x58] sm:$0xff]
        %v2863 = vld [vmem:[#allocation2 + $0x60] sm:$0xff]
        %v2864 = vld [vmem:[#allocation2 + $0x68] sm:$0xff]
        %v2865 = vld [vmem:[#allocation2 + $0x70] sm:$0xff]
        %v2866 = vld [vmem:[#allocation2 + $0x78] sm:$0xff]
        %v2867 = vld [vmem:[#allocation2 + $0x80] sm:$0xff]
        %v2868 = vld [vmem:[#allocation2 + $0x88] sm:$0xff]
        %v2869 = vld [vmem:[#allocation2 + $0x90] sm:$0xff]
        %v2870 = vld [vmem:[#allocation2 + $0x98] sm:$0xff]
        %v2871 = vld [vmem:[#allocation2 + $0xa0] sm:$0xff]
        %v2872 = vld [vmem:[#allocation2 + $0xa8] sm:$0xff]
        %v2873 = vld [vmem:[#allocation2 + $0xb0] sm:$0xff]
        %v2874 = vld [vmem:[#allocation2 + $0xb8] sm:$0xff]
        %v2875 = vld [vmem:[#allocation2 + $0xc0] sm:$0xff]
        %v2876 = vld [vmem:[#allocation2 + $0xc8] sm:$0xff]
        %v2877 = vld [vmem:[#allocation2 + $0xd0] sm:$0xff]
        %v2878 = vld [vmem:[#allocation2 + $0xd8] sm:$0xff]
        %v2879 = vld [vmem:[#allocation2 + $0xe0] sm:$0xff]
        %v2880 = vld [vmem:[#allocation2 + $0xe8] sm:$0xff]
        %v2881 = vld [vmem:[#allocation2 + $0xf0] sm:$0xff]
        %v2882 = vld [vmem:[#allocation2 + $0xf8] sm:$0xff]
        %v2883 = vld [vmem:[#allocation2 + $0x100] sm:$0xff]
        %v2884 = vld [vmem:[#allocation2 + $0x108] sm:$0xff]
        %v2885 = vld [vmem:[#allocation2 + $0x110] sm:$0xff]
        %v2886 = vld [vmem:[#allocation2 + $0x118] sm:$0xff]
        %v2887 = vld [vmem:[#allocation2 + $0x120] sm:$0xff]
        %v2888 = vld [vmem:[#allocation2 + $0x128] sm:$0xff]
        %v2889 = vld [vmem:[#allocation2 + $0x130] sm:$0xff]
        %v2890 = vld [vmem:[#allocation2 + $0x138] sm:$0xff]
        %v2891 = vld [vmem:[#allocation2 + $0x140] sm:$0xff]
        %v2892 = vld [vmem:[#allocation2 + $0x148] sm:$0xff]
        %v2893 = vld [vmem:[#allocation2 + $0x150] sm:$0xff]
        %v2894 = vld [vmem:[#allocation2 + $0x158] sm:$0xff]
        %v2895 = vld [vmem:[#allocation2 + $0x160] sm:$0xff]
        %v2896 = vld [vmem:[#allocation2 + $0x168] sm:$0xff]
        %v2897 = vld [vmem:[#allocation2 + $0x170] sm:$0xff]
        %v2898 = vld [vmem:[#allocation2 + $0x178] sm:$0xff]
        %v2899 = vld [vmem:[#allocation2 + $0x180] sm:$0xff]
        %v2900 = vld [vmem:[#allocation2 + $0x188] sm:$0xff]
        %v2901 = vld [vmem:[#allocation2 + $0x190] sm:$0xff]
        %v2902 = vld [vmem:[#allocation2 + $0x198] sm:$0xff]
        %v2903 = vld [vmem:[#allocation2 + $0x1a0] sm:$0xff]
        %v2904 = vld [vmem:[#allocation2 + $0x1a8] sm:$0xff]
        %v2905 = vld [vmem:[#allocation2 + $0x1b0] sm:$0xff]
        %v2906 = vld [vmem:[#allocation2 + $0x1b8] sm:$0xff]
        %v2907 = vld [vmem:[#allocation2 + $0x1c0] sm:$0xff]
        %v2908 = vld [vmem:[#allocation2 + $0x1c8] sm:$0xff]
        %v2909 = vld [vmem:[#allocation2 + $0x1d0] sm:$0xff]
        %v2910 = vld [vmem:[#allocation2 + $0x1d8] sm:$0xff]
        %v2911 = vld [vmem:[#allocation2 + $0x1e0] sm:$0xff]
        %v2912 = vld [vmem:[#allocation2 + $0x1e8] sm:$0xff]
        %v2913 = vld [vmem:[#allocation2 + $0x1f0] sm:$0xff]
        %v2914 = vld [vmem:[#allocation2 + $0x1f8] sm:$0xff]
        %v2915 = vld [vmem:[#allocation2 + $0x200] sm:$0xff]
        %v2916 = vld [vmem:[#allocation2 + $0x208] sm:$0xff]
        %v2917 = vld [vmem:[#allocation2 + $0x210] sm:$0xff]
        %v2918 = vld [vmem:[#allocation2 + $0x218] sm:$0xff]
        %v2919 = vld [vmem:[#allocation2 + $0x220] sm:$0xff]
        %v2920 = vld [vmem:[#allocation2 + $0x228] sm:$0xff]
        %v2921 = vld [vmem:[#allocation2 + $0x230] sm:$0xff]
        %v2922 = vld [vmem:[#allocation2 + $0x238] sm:$0xff]
        %v2923 = vld [vmem:[#allocation2 + $0x240] sm:$0xff]
        %v2924 = vld [vmem:[#allocation2 + $0x248] sm:$0xff]
        %v2925 = vld [vmem:[#allocation2 + $0x250] sm:$0xff]
        %v2926 = vld [vmem:[#allocation2 + $0x258] sm:$0xff]
        %v2927 = vld [vmem:[#allocation2 + $0x260] sm:$0xff]
        %v2928 = vld [vmem:[#allocation2 + $0x268] sm:$0xff]
        %v2929 = vld [vmem:[#allocation2 + $0x270] sm:$0xff]
        %v2930 = vld [vmem:[#allocation2 + $0x278] sm:$0xff]
        %v2931 = vld [vmem:[#allocation2 + $0x280] sm:$0xff]
        %v2932 = vld [vmem:[#allocation2 + $0x288] sm:$0xff]
        %v2933 = vld [vmem:[#allocation2 + $0x290] sm:$0xff]
        %v2934 = vld [vmem:[#allocation2 + $0x298] sm:$0xff]
        %v2935 = vld [vmem:[#allocation2 + $0x2a0] sm:$0xff]
        %v2936 = vld [vmem:[#allocation2 + $0x2a8] sm:$0xff]
        %v2937 = vld [vmem:[#allocation2 + $0x2b0] sm:$0xff]
        %v2938 = vld [vmem:[#allocation2 + $0x2b8] sm:$0xff]
        %v2939 = vld [vmem:[#allocation2 + $0x2c0] sm:$0xff]
        %v2940 = vld [vmem:[#allocation2 + $0x2c8] sm:$0xff]
        %v2941 = vld [vmem:[#allocation2 + $0x2d0] sm:$0xff]
        %v2942 = vld [vmem:[#allocation2 + $0x2d8] sm:$0xff]
        %v2943 = vld [vmem:[#allocation2 + $0x2e0] sm:$0xff]
        %v2944 = vld [vmem:[#allocation2 + $0x2e8] sm:$0xff]
        %v2945 = vld [vmem:[#allocation2 + $0x2f0] sm:$0xff]
        %v2946 = vld [vmem:[#allocation2 + $0x2f8] sm:$0xff]
        %v2947 = vld [vmem:[#allocation2 + $0x300] sm:$0xff]
        %v2948 = vld [vmem:[#allocation2 + $0x308] sm:$0xff]
        %v2949 = vld [vmem:[#allocation2 + $0x310] sm:$0xff]
        %v2950 = vld [vmem:[#allocation2 + $0x318] sm:$0xff]
        %v2951 = vld [vmem:[#allocation2 + $0x320] sm:$0xff]
        %v2952 = vld [vmem:[#allocation2 + $0x328] sm:$0xff]
        %v2953 = vld [vmem:[#allocation2 + $0x330] sm:$0xff]
        %v2954 = vld [vmem:[#allocation2 + $0x338] sm:$0xff]
        %v2955 = vld [vmem:[#allocation2 + $0x340] sm:$0xff]
        %v2956 = vld [vmem:[#allocation2 + $0x348] sm:$0xff]
        %v2957 = vld [vmem:[#allocation2 + $0x350] sm:$0xff]
        %v2958 = vld [vmem:[#allocation2 + $0x358] sm:$0xff]
        %v2959 = vld [vmem:[#allocation2 + $0x360] sm:$0xff]
        %v2960 = vld [vmem:[#allocation2 + $0x368] sm:$0xff]
        %v2961 = vld [vmem:[#allocation2 + $0x370] sm:$0xff]
        %v2962 = vld [vmem:[#allocation2 + $0x378] sm:$0xff]
        %v2963 = vld [vmem:[#allocation2 + $0x380] sm:$0xff]
        %v2964 = vld [vmem:[#allocation2 + $0x388] sm:$0xff]
        %v2965 = vld [vmem:[#allocation2 + $0x390] sm:$0xff]
        %v2966 = vld [vmem:[#allocation2 + $0x398] sm:$0xff]
        %v2967 = vld [vmem:[#allocation2 + $0x3a0] sm:$0xff]
        %v2968 = vld [vmem:[#allocation2 + $0x3a8] sm:$0xff]
        %v2969 = vld [vmem:[#allocation2 + $0x3b0] sm:$0xff]
        %v2970 = vld [vmem:[#allocation2 + $0x3b8] sm:$0xff]
        %v2971 = vld [vmem:[#allocation2 + $0x3c0] sm:$0xff]
        %v2972 = vld [vmem:[#allocation2 + $0x3c8] sm:$0xff]
        %v2973 = vld [vmem:[#allocation2 + $0x3d0] sm:$0xff]
        %v2974 = vld [vmem:[#allocation2 + $0x3d8] sm:$0xff]
        %v2975 = vld [vmem:[#allocation2 + $0x3e0] sm:$0xff]
        %v2976 = vld [vmem:[#allocation2 + $0x3e8] sm:$0xff]
        %v2977 = vld [vmem:[#allocation2 + $0x3f0] sm:$0xff]
        %v2978 = vld [vmem:[#allocation2 + $0x3f8] sm:$0xff]
        %v2979 = vld [vmem:[#allocation2 + $0x400] sm:$0xff]
        %v2980 = vld [vmem:[#allocation2 + $0x408] sm:$0xff]
        %v2981 = vld [vmem:[#allocation2 + $0x410] sm:$0xff]
        %v2982 = vld [vmem:[#allocation2 + $0x418] sm:$0xff]
        %v2983 = vld [vmem:[#allocation2 + $0x420] sm:$0xff]
        %v2984 = vld [vmem:[#allocation2 + $0x428] sm:$0xff]
        %v2985 = vld [vmem:[#allocation2 + $0x430] sm:$0xff]
        %v2986 = vld [vmem:[#allocation2 + $0x438] sm:$0xff]
        %v2987 = vld [vmem:[#allocation2 + $0x440] sm:$0xff]
        %v2988 = vld [vmem:[#allocation2 + $0x448] sm:$0xff]
        %v2989 = vld [vmem:[#allocation2 + $0x450] sm:$0xff]
        %v2990 = vld [vmem:[#allocation2 + $0x458] sm:$0xff]
        %v2991 = vld [vmem:[#allocation2 + $0x460] sm:$0xff]
        %v2992 = vld [vmem:[#allocation2 + $0x468] sm:$0xff]
        %v2993 = vld [vmem:[#allocation2 + $0x470] sm:$0xff]
        %v2994 = vld [vmem:[#allocation2 + $0x478] sm:$0xff]
        %v2995 = vld [vmem:[#allocation2 + $0x480] sm:$0xff]
        %v2996 = vld [vmem:[#allocation2 + $0x488] sm:$0xff]
        %v2997 = vld [vmem:[#allocation2 + $0x490] sm:$0xff]
        %v2998 = vld [vmem:[#allocation2 + $0x498] sm:$0xff]
        %v2999 = vld [vmem:[#allocation2 + $0x4a0] sm:$0xff]
        %v3000 = vld [vmem:[#allocation2 + $0x4a8] sm:$0xff]
        %v3001 = vld [vmem:[%s7] sm:$0xff]
        %v3002 = vld [vmem:[%s7 + $0x8] sm:$0xff]
        %v3003 = vld [vmem:[%s7 + $0x10] sm:$0x1f]
        %3005 = vset.pattern.permute.xlu0 0
        %3006 = vperm.xlu0 %3005, %v3001
        %v3007 = vpop.permute.xlu0 %3006
        %3010 = vset.pattern.permute.xlu0 0
        %3011 = vperm.xlu0 %3010, %v3002
        %v3012 = vpop.permute.xlu0 %3011
        %3015 = vset.pattern.permute.xlu0 0
        %3016 = vperm.xlu0 %3015, %v3003
        %v3017 = vpop.permute.xlu0 %3016
        %vm3019 = vcmask 719872
        %v3021 = vsel %vm3019, %v2840, 0
        %v3024 = vsel %vm3019, %v2845, 0
        %v3027 = vsel %vm3019, %v2850, 0
        %3029 = vmatpush.msra.mxu0 %v2881
        %3030 = vmatpush.msra.mxu0 %v2879
        %3031 = vmatpush.msra.mxu0 %v2877
        %3032 = vmatpush.msra.mxu0 %v2875
        %3033 = vmatpush.msra.mxu0 %v2873
        %3034 = vmatpush.msra.mxu0 %v2871
        %3035 = vmatpush.msra.mxu0 %v2869
        %3036 = vmatpush.msra.mxu0 %v2867
        %3037 = vmatpush.msra.mxu0 %v2865
        %3038 = vmatpush.msra.mxu0 %v2863
        %3039 = vmatpush.msra.mxu0 %v2861
        %3040 = vmatpush.msra.mxu0 %v2859
        %3041 = vmatpush.msra.mxu0 %v2857
        %3042 = vmatpush.msra.mxu0 %v2855
        %3043 = vmatpush.msra.mxu0 %v2853
        %3044 = vmatpush.msra.mxu0 %v2851
        %3045 = vmatmul.f32.gmra.mxu0 %v2836
        %v3046 = vpop.f32.mrf.mxu0
        %v3047 = vadd.f32 %v3007, %v3046
        %3048 = vmatmul.f32.gmra.mxu0 %v2841
        %v3049 = vpop.f32.mrf.mxu0
        %v3050 = vadd.f32 %v3012, %v3049
        %3051 = vmatmul.f32.gmra.mxu0 %v2846
        %v3052 = vpop.f32.mrf.mxu0
        %v3053 = vadd.f32 %v3017, %v3052
        %3054 = vdwg.mxu0
        %3055 = vmatpush.msra.mxu0 %v2913
        %3056 = vmatpush.msra.mxu0 %v2911
        %3057 = vmatpush.msra.mxu0 %v2909
        %3058 = vmatpush.msra.mxu0 %v2907
        %3059 = vmatpush.msra.mxu0 %v2905
        %3060 = vmatpush.msra.mxu0 %v2903
        %3061 = vmatpush.msra.mxu0 %v2901
        %3062 = vmatpush.msra.mxu0 %v2899
        %3063 = vmatpush.msra.mxu0 %v2897
        %3064 = vmatpush.msra.mxu0 %v2895
        %3065 = vmatpush.msra.mxu0 %v2893
        %3066 = vmatpush.msra.mxu0 %v2891
        %3067 = vmatpush.msra.mxu0 %v2889
        %3068 = vmatpush.msra.mxu0 %v2887
        %3069 = vmatpush.msra.mxu0 %v2885
        %3070 = vmatpush.msra.mxu0 %v2883
        %3071 = vmatmul.f32.gmra.mxu0 %v2837
        %v3072 = vpop.f32.mrf.mxu0
        %v3073 = vadd.f32 %v3047, %v3072
        %3074 = vmatmul.f32.gmra.mxu0 %v2842
        %v3075 = vpop.f32.mrf.mxu0
        %v3076 = vadd.f32 %v3050, %v3075
        %3077 = vmatmul.f32.gmra.mxu0 %v2847
        %v3078 = vpop.f32.mrf.mxu0
        %v3079 = vadd.f32 %v3053, %v3078
        %3080 = vdwg.mxu0
        %3081 = vmatpush.msra.mxu0 %v2945
        %3082 = vmatpush.msra.mxu0 %v2943
        %3083 = vmatpush.msra.mxu0 %v2941
        %3084 = vmatpush.msra.mxu0 %v2939
        %3085 = vmatpush.msra.mxu0 %v2937
        %3086 = vmatpush.msra.mxu0 %v2935
        %3087 = vmatpush.msra.mxu0 %v2933
        %3088 = vmatpush.msra.mxu0 %v2931
        %3089 = vmatpush.msra.mxu0 %v2929
        %3090 = vmatpush.msra.mxu0 %v2927
        %3091 = vmatpush.msra.mxu0 %v2925
        %3092 = vmatpush.msra.mxu0 %v2923
        %3093 = vmatpush.msra.mxu0 %v2921
        %3094 = vmatpush.msra.mxu0 %v2919
        %3095 = vmatpush.msra.mxu0 %v2917
        %3096 = vmatpush.msra.mxu0 %v2915
        %3097 = vmatmul.f32.gmra.mxu0 %v2838
        %v3098 = vpop.f32.mrf.mxu0
        %v3099 = vadd.f32 %v3073, %v3098
        %3100 = vmatmul.f32.gmra.mxu0 %v2843
        %v3101 = vpop.f32.mrf.mxu0
        %v3102 = vadd.f32 %v3076, %v3101
        %3103 = vmatmul.f32.gmra.mxu0 %v2848
        %v3104 = vpop.f32.mrf.mxu0
        %v3105 = vadd.f32 %v3079, %v3104
        %3106 = vdwg.mxu0
        %3107 = vmatpush.msra.mxu0 %v2977
        %3108 = vmatpush.msra.mxu0 %v2975
        %3109 = vmatpush.msra.mxu0 %v2973
        %3110 = vmatpush.msra.mxu0 %v2971
        %3111 = vmatpush.msra.mxu0 %v2969
        %3112 = vmatpush.msra.mxu0 %v2967
        %3113 = vmatpush.msra.mxu0 %v2965
        %3114 = vmatpush.msra.mxu0 %v2963
        %3115 = vmatpush.msra.mxu0 %v2961
        %3116 = vmatpush.msra.mxu0 %v2959
        %3117 = vmatpush.msra.mxu0 %v2957
        %3118 = vmatpush.msra.mxu0 %v2955
        %3119 = vmatpush.msra.mxu0 %v2953
        %3120 = vmatpush.msra.mxu0 %v2951
        %3121 = vmatpush.msra.mxu0 %v2949
        %3122 = vmatpush.msra.mxu0 %v2947
        %3123 = vmatmul.f32.gmra.mxu0 %v2839
        %v3124 = vpop.f32.mrf.mxu0
        %v3125 = vadd.f32 %v3099, %v3124
        %3126 = vmatmul.f32.gmra.mxu0 %v2844
        %v3127 = vpop.f32.mrf.mxu0
        %v3128 = vadd.f32 %v3102, %v3127
        %3129 = vmatmul.f32.gmra.mxu0 %v2849
        %v3130 = vpop.f32.mrf.mxu0
        %v3131 = vadd.f32 %v3105, %v3130
        %3132 = vdwg.mxu0
        %3133 = vmatpush.msra.mxu0 0.0
        %3134 = vmatpush.msra.mxu0 0.0
        %3135 = vmatpush.msra.mxu0 0.0
        %3136 = vmatpush.msra.mxu0 0.0
        %3137 = vmatpush.msra.mxu0 0.0
        %3138 = vmatpush.msra.mxu0 %v2999
        %3139 = vmatpush.msra.mxu0 %v2997
        %3140 = vmatpush.msra.mxu0 %v2995
        %3141 = vmatpush.msra.mxu0 %v2993
        %3142 = vmatpush.msra.mxu0 %v2991
        %3143 = vmatpush.msra.mxu0 %v2989
        %3144 = vmatpush.msra.mxu0 %v2987
        %3145 = vmatpush.msra.mxu0 %v2985
        %3146 = vmatpush.msra.mxu0 %v2983
        %3147 = vmatpush.msra.mxu0 %v2981
        %3148 = vmatpush.msra.mxu0 %v2979
        %3149 = vmatmul.f32.gmra.mxu0 %v3021
        %v3150 = vpop.f32.mrf.mxu0
        %v3151 = vadd.f32 %v3125, %v3150
        %3152 = vmatmul.f32.gmra.mxu0 %v3024
        %v3153 = vpop.f32.mrf.mxu0
        %v3154 = vadd.f32 %v3128, %v3153
        %3155 = vmatmul.f32.gmra.mxu0 %v3027
        %v3156 = vpop.f32.mrf.mxu0
        %v3157 = vadd.f32 %v3131, %v3156
        %3158 = vdwg.mxu0
        %3159 = vmatpush.msra.mxu0 %v2882
        %3160 = vmatpush.msra.mxu0 %v2880
        %3161 = vmatpush.msra.mxu0 %v2878
        %3162 = vmatpush.msra.mxu0 %v2876
        %3163 = vmatpush.msra.mxu0 %v2874
        %3164 = vmatpush.msra.mxu0 %v2872
        %3165 = vmatpush.msra.mxu0 %v2870
        %3166 = vmatpush.msra.mxu0 %v2868
        %3167 = vmatpush.msra.mxu0 %v2866
        %3168 = vmatpush.msra.mxu0 %v2864
        %3169 = vmatpush.msra.mxu0 %v2862
        %3170 = vmatpush.msra.mxu0 %v2860
        %3171 = vmatpush.msra.mxu0 %v2858
        %3172 = vmatpush.msra.mxu0 %v2856
        %3173 = vmatpush.msra.mxu0 %v2854
        %3174 = vmatpush.msra.mxu0 %v2852
        %3175 = vmatmul.f32.gmra.mxu0 %v2836
        %v3176 = vpop.f32.mrf.mxu0
        %v3177 = vadd.f32 %v3007, %v3176
        %3178 = vmatmul.f32.gmra.mxu0 %v2841
        %v3179 = vpop.f32.mrf.mxu0
        %v3180 = vadd.f32 %v3012, %v3179
        %3181 = vmatmul.f32.gmra.mxu0 %v2846
        %v3182 = vpop.f32.mrf.mxu0
        %v3183 = vadd.f32 %v3017, %v3182
        %3184 = vdwg.mxu0
        %3185 = vmatpush.msra.mxu0 %v2914
        %3186 = vmatpush.msra.mxu0 %v2912
        %3187 = vmatpush.msra.mxu0 %v2910
        %3188 = vmatpush.msra.mxu0 %v2908
        %3189 = vmatpush.msra.mxu0 %v2906
        %3190 = vmatpush.msra.mxu0 %v2904
        %3191 = vmatpush.msra.mxu0 %v2902
        %3192 = vmatpush.msra.mxu0 %v2900
        %3193 = vmatpush.msra.mxu0 %v2898
        %3194 = vmatpush.msra.mxu0 %v2896
        %3195 = vmatpush.msra.mxu0 %v2894
        %3196 = vmatpush.msra.mxu0 %v2892
        %3197 = vmatpush.msra.mxu0 %v2890
        %3198 = vmatpush.msra.mxu0 %v2888
        %3199 = vmatpush.msra.mxu0 %v2886
        %3200 = vmatpush.msra.mxu0 %v2884
        %3201 = vmatmul.f32.gmra.mxu0 %v2837
        %v3202 = vpop.f32.mrf.mxu0
        %v3203 = vadd.f32 %v3177, %v3202
        %3204 = vmatmul.f32.gmra.mxu0 %v2842
        %v3205 = vpop.f32.mrf.mxu0
        %v3206 = vadd.f32 %v3180, %v3205
        %3207 = vmatmul.f32.gmra.mxu0 %v2847
        %v3208 = vpop.f32.mrf.mxu0
        %v3209 = vadd.f32 %v3183, %v3208
        %3210 = vdwg.mxu0
        %3211 = vmatpush.msra.mxu0 %v2946
        %3212 = vmatpush.msra.mxu0 %v2944
        %3213 = vmatpush.msra.mxu0 %v2942
        %3214 = vmatpush.msra.mxu0 %v2940
        %3215 = vmatpush.msra.mxu0 %v2938
        %3216 = vmatpush.msra.mxu0 %v2936
        %3217 = vmatpush.msra.mxu0 %v2934
        %3218 = vmatpush.msra.mxu0 %v2932
        %3219 = vmatpush.msra.mxu0 %v2930
        %3220 = vmatpush.msra.mxu0 %v2928
        %3221 = vmatpush.msra.mxu0 %v2926
        %3222 = vmatpush.msra.mxu0 %v2924
        %3223 = vmatpush.msra.mxu0 %v2922
        %3224 = vmatpush.msra.mxu0 %v2920
        %3225 = vmatpush.msra.mxu0 %v2918
        %3226 = vmatpush.msra.mxu0 %v2916
        %3227 = vmatmul.f32.gmra.mxu0 %v2838
        %v3228 = vpop.f32.mrf.mxu0
        %v3229 = vadd.f32 %v3203, %v3228
        %3230 = vmatmul.f32.gmra.mxu0 %v2843
        %v3231 = vpop.f32.mrf.mxu0
        %v3232 = vadd.f32 %v3206, %v3231
        %3233 = vmatmul.f32.gmra.mxu0 %v2848
        %v3234 = vpop.f32.mrf.mxu0
        %v3235 = vadd.f32 %v3209, %v3234
        %3236 = vdwg.mxu0
        %3237 = vmatpush.msra.mxu0 %v2978
        %3238 = vmatpush.msra.mxu0 %v2976
        %3239 = vmatpush.msra.mxu0 %v2974
        %3240 = vmatpush.msra.mxu0 %v2972
        %3241 = vmatpush.msra.mxu0 %v2970
        %3242 = vmatpush.msra.mxu0 %v2968
        %3243 = vmatpush.msra.mxu0 %v2966
        %3244 = vmatpush.msra.mxu0 %v2964
        %3245 = vmatpush.msra.mxu0 %v2962
        %3246 = vmatpush.msra.mxu0 %v2960
        %3247 = vmatpush.msra.mxu0 %v2958
        %3248 = vmatpush.msra.mxu0 %v2956
        %3249 = vmatpush.msra.mxu0 %v2954
        %3250 = vmatpush.msra.mxu0 %v2952
        %3251 = vmatpush.msra.mxu0 %v2950
        %3252 = vmatpush.msra.mxu0 %v2948
        %3253 = vmatmul.f32.gmra.mxu0 %v2839
        %v3254 = vpop.f32.mrf.mxu0
        %v3255 = vadd.f32 %v3229, %v3254
        %3256 = vmatmul.f32.gmra.mxu0 %v2844
        %v3257 = vpop.f32.mrf.mxu0
        %v3258 = vadd.f32 %v3232, %v3257
        %3259 = vmatmul.f32.gmra.mxu0 %v2849
        %v3260 = vpop.f32.mrf.mxu0
        %v3261 = vadd.f32 %v3235, %v3260
        %3262 = vdwg.mxu0
        %3263 = vmatpush.msra.mxu0 0.0
        %3264 = vmatpush.msra.mxu0 0.0
        %3265 = vmatpush.msra.mxu0 0.0
        %3266 = vmatpush.msra.mxu0 0.0
        %3267 = vmatpush.msra.mxu0 0.0
        %3268 = vmatpush.msra.mxu0 %v3000
        %3269 = vmatpush.msra.mxu0 %v2998
        %3270 = vmatpush.msra.mxu0 %v2996
        %3271 = vmatpush.msra.mxu0 %v2994
        %3272 = vmatpush.msra.mxu0 %v2992
        %3273 = vmatpush.msra.mxu0 %v2990
        %3274 = vmatpush.msra.mxu0 %v2988
        %3275 = vmatpush.msra.mxu0 %v2986
        %3276 = vmatpush.msra.mxu0 %v2984
        %3277 = vmatpush.msra.mxu0 %v2982
        %3278 = vmatpush.msra.mxu0 %v2980
        %3279 = vmatmul.f32.gmra.mxu0 %v3021
        %v3280 = vpop.f32.mrf.mxu0
        %v3281 = vadd.f32 %v3255, %v3280
        %3282 = vmatmul.f32.gmra.mxu0 %v3024
        %v3283 = vpop.f32.mrf.mxu0
        %v3284 = vadd.f32 %v3258, %v3283
        %3285 = vmatmul.f32.gmra.mxu0 %v3027
        %v3286 = vpop.f32.mrf.mxu0
        %v3287 = vadd.f32 %v3261, %v3286
        %3288 = vdwg.mxu0
        %v3289 = vtanh.pop %v3151
        %v3290 = vtanh.pop %v3281
        %v3291 = vtanh.pop %v3154
        %v3292 = vtanh.pop %v3284
        %v3293 = vtanh.pop %v3157
        %v3294 = vtanh.pop %v3287
        %3295 = vst [vmem:[%s352] sm:$0xff] %v3289
        %3296 = vst [vmem:[%s352 + $0x8] sm:$0xff] %v3290
        %3297 = vst [vmem:[%s352 + $0x10] sm:$0xff] %v3291
        %3298 = vst [vmem:[%s352 + $0x18] sm:$0xff] %v3292
        %3299 = vst [vmem:[%s352 + $0x20] sm:$0x1f] %v3293
        %3300 = vst [vmem:[%s352 + $0x28] sm:$0x1f] %v3294
        %p3301 = scmp.lt.s32.totalorder %s21, 1
        %s3302 = scalar_select %p3301, %s21, 1
        %s3303 = smul.addr %s3302, 6
        %s3304 = smul.addr %s3303, 8
        %s3305 = scalar_lea.vmem %s8, %s3304
        // Predicated region
        $region65: #{tpu_custom_call.1} parent=51 // pred_check
          %p3306 = pneg %p212
        $region66: #{tpu_custom_call.1} parent=51 // pred_check_branch
          %3308 = sbr.rel (%p3306) target = $region68
        $region67: #{tpu_custom_call.1} parent=51 // pred_region
          _
        $region68: #{tpu_custom_call.1} parent=51 // pred_fallthru
          _
      $region52: #{tpu_custom_call.1} parent=5 // pred_fallthru
        _
      %p3309 = scmp.le.s32.totalorder 2, %s16
      // Predicated region
      $region69: #{tpu_custom_call.1} parent=5 // pred_check
        %p3310 = pneg %p3309
      $region70: #{tpu_custom_call.1} parent=5 // pred_check_branch
        %3312 = sbr.rel (%p3310) target = $region72
      $region71: #{tpu_custom_call.1} parent=5 // pred_region
        %s3313 = ssub.s32 %s16, 2
        // Predicated region
        $region73: #{tpu_custom_call.1} parent=71 // pred_check
          %p3314 = pneg %p218
        $region74: #{tpu_custom_call.1} parent=71 // pred_check_branch
          %3316 = sbr.rel (%p3314) target = $region76
        $region75: #{tpu_custom_call.1} parent=71 // pred_region
          %p3317 = scmp.lt.s32.totalorder %s22, 1
          %s3318 = scalar_select %p3317, %s22, 1
          %s3319 = smul.addr %s3318, 6
          %s3320 = smul.addr %s3319, 8
          %s3321 = scalar_lea.vmem %s8, %s3320
        $region76: #{tpu_custom_call.1} parent=71 // pred_fallthru
          _
      $region72: #{tpu_custom_call.1} parent=5 // pred_fallthru
        _
    $region6: #{tpu_custom_call.1} parent=1 // loop_footer
      %s20 = sadd.s32 1, %s16
    $region7: #{tpu_custom_call.1} parent=1 // loop_footer_branch
      %15 = sbr.rel target = $region3
    $region8: #{tpu_custom_call.1} parent=1 // loop_exit
      _
    %3322 = vsyncpa [#allocation4], 1
    %s3323 = scalar_lea.sflag [#allocation4], 1
    %3324 = vsyncpa %s3323, 1
    %3325 = vsyncpa [#allocation6], 1

</llo_original>
